<compile_context>
chip_gen: v6e
topology: v6e:2x2x1
jax: 0.10.0
libtpu: 0.0.40
codegen_flags: <defaults>
</compile_context>

<pallas_src>
import functools

import numpy as np
import jax
import jax.numpy as jnp
from jax import lax
from jax.experimental import pallas as pl
from jax.experimental.pallas import tpu as pltpu


# ------------------------- small CNNDecoder configuration ----------------------
CDIM = 3                      # output image channels (cdim)
CHANNELS = (16, 32, 32)       # decoder channel schedule (module arg `channels`)
IMAGE_SIZE = 16               # output spatial size (square images assumed)
IN_CH = 8                     # latent channels of z (in_ch)
BATCH = 2
GN_EPS = 1e-4                 # module passes eps=0.0001 to nn.GroupNorm

N_UPSAMPLE = len(CHANNELS) - 1                 # depth_up + len(channels[1:-1])
Z_SIZE = IMAGE_SIZE // (2 ** N_UPSAMPLE)       # spatial size of the latent z


def _decoder_layer_cfg():
    """Mirror CNNDecoder.__init__ for pad_mode='zeros', use_resblock=False."""
    layers = []
    cc = CHANNELS[-1]
    # depth_up: ConvBlock(in_ch, cc, k=3, pad=1, upsample=True, batchnorm=False)
    layers.append(dict(cin=IN_CH, cout=cc, gn=False, upsample=True))
    for ch in reversed(CHANNELS[1:-1]):
        layers.append(dict(cin=cc, cout=ch, gn=True, upsample=True))
        cc = ch
    # last main block: ConvBlock(cc, channels[0], k=3, pad=1, upsample=False)
    layers.append(dict(cin=cc, cout=CHANNELS[0], gn=True, upsample=False))
    return layers


# =============================== fused Pallas kernel ===========================
def decoder_kernel(*refs, plan, batch, eps):
    """Single grid step; batch folded into rows.  Activation layout: (B*H, W*C)."""
    z_ref = refs[0]
    out_ref = refs[-1]
    it = iter(refs[1:-1])

    x = z_ref[...].astype(jnp.float32)                      # (B*H0, W0*Cin)
    for step in plan:
        if step[0] == "conv3":
            _, has_gn, has_up, h = step                     # h = per-image rows (== W)
            k_ref = next(it)                                # (3*W*Cin, W*Cout) bf16
            nrows = x.shape[0]                              # B*h
            rid = lax.broadcasted_iota(jnp.int32, x.shape, 0)
            # +/-1 row shift with zero pad at each image's own boundary (XLU roll + mask).
            x_dn = jnp.where((rid % h) != 0, pltpu.roll(x, 1, axis=0), 0.0)
            x_up = jnp.where((rid % h) != (h - 1), pltpu.roll(x, nrows - 1, axis=0), 0.0)
            # One fused MXU matmul for all three dy taps (3x longer contraction dim).
            x3 = jnp.concatenate([x_dn, x, x_up], axis=1).astype(jnp.bfloat16)
            x = jnp.dot(x3, k_ref[...], preferred_element_type=jnp.float32)

            if has_gn:                                      # GroupNorm, per batch image (f32)
                p_ref = next(it)                            # (W*C, G) indicator / (H*W*Cg)
                q_ref = next(it)                            # (G, W*C) indicator
                g_ref = next(it)                            # (1, W*C) gamma tiled over w
                b_ref = next(it)                            # (1, W*C) beta  tiled over w
                wc = x.shape[1]
                xb = x.reshape(batch, h, wc)                # sublane-aligned (h in {8,16})
                csum = jnp.sum(xb, axis=1)                  # (B, W*C)
                mean = jnp.dot(
                    jnp.dot(csum, p_ref[...], preferred_element_type=jnp.float32),
                    q_ref[...], preferred_element_type=jnp.float32)      # (B, W*C)
                d = xb - mean[:, None, :]
                vsum = jnp.sum(d * d, axis=1)
                var = jnp.dot(
                    jnp.dot(vsum, p_ref[...], preferred_element_type=jnp.float32),
                    q_ref[...], preferred_element_type=jnp.float32)
                x = (d * lax.rsqrt(var + eps)[:, None, :]).reshape(nrows, wc)
                x = x * g_ref[...] + b_ref[...]

            x = jnp.maximum(x, 0.0)                         # ReLU

            if has_up:                                      # bilinear 2x upsample (2 matmuls)
                uy_ref = next(it)                           # (B*2H, B*H) kron(I_B, Uy), bf16
                ku_ref = next(it)                           # (W*C, 2W*C) kron(Ux, I_C).T, bf16
                x = jnp.dot(uy_ref[...], x.astype(jnp.bfloat16),
                            preferred_element_type=jnp.float32)
                x = jnp.dot(x.astype(jnp.bfloat16), ku_ref[...],
                            preferred_element_type=jnp.float32)
        else:                                               # final 1x1 conv + bias + sigmoid
            kf_ref = next(it)                               # (W*C0, W*cdim) kron(I_W, W1), bf16
            bf_ref = next(it)                               # (1, W*cdim) f32
            x = jnp.dot(x.astype(jnp.bfloat16), kf_ref[...],
                        preferred_element_type=jnp.float32) + bf_ref[...]
            x = pl.reciprocal(1.0 + jnp.exp(-x), approx=True)     # sigmoid (EUP reciprocal)
    out_ref[...] = x


# ===================== host-side constant-matrix construction ==================
def _fused_banded_conv(w_hwio, w_spatial):
    """K (3*W*Cin, W*Cout) so that concat([shift_dn(x), x, shift_up(x)], 1) @ K
    equals the 3x3 zero-padded, stride-1 conv in channel-minor (H, W*C) layout."""
    _, _, cin, cout = w_hwio.shape
    k = np.zeros((3, w_spatial * cin, w_spatial * cout), np.float32)
    for dy in range(3):
        for j in range(w_spatial):
            for dx in range(3):
                jj = j + dx - 1
                if 0 <= jj < w_spatial:
                    k[dy, jj * cin:(jj + 1) * cin, j * cout:(j + 1) * cout] = w_hwio[dy, dx]
    return k.reshape(3 * w_spatial * cin, w_spatial * cout)


def _gn_factored(h_spatial, w_spatial, c, n_groups):
    """Skinny GroupNorm factors: P (W*C, G) indicator / (H*W*Cg), Q (G, W*C) indicator."""
    cg = c // n_groups
    cols = np.arange(w_spatial * c)
    gid = (cols % c) // cg
    p = np.zeros((w_spatial * c, n_groups), np.float32)
    p[cols, gid] = 1.0 / float(h_spatial * w_spatial * cg)
    q = np.zeros((n_groups, w_spatial * c), np.float32)
    q[gid, cols] = 1.0
    return p, q


def _upsample_1d(n_in):
    """PyTorch Upsample(scale_factor=2, mode='bilinear', align_corners=False), 1-D."""
    n_out = 2 * n_in
    u = np.zeros((n_out, n_in), np.float32)
    for o in range(n_out):
        src = max((o + 0.5) * (n_in / n_out) - 0.5, 0.0)
        i0 = min(int(np.floor(src)), n_in - 1)
        lam = src - i0
        i1 = min(i0 + 1, n_in - 1)
        u[o, i0] += 1.0 - lam
        u[o, i1] += lam
    return u


def build_decoder(key, batch):
    """Random (deterministic) weights -> (static plan, flat list of constants)."""
    layers = _decoder_layer_cfg()
    keys = jax.random.split(key, len(layers) + 2)
    consts, plan = [], []
    h = Z_SIZE
    for li, lp in enumerate(layers):
        cin, cout = lp["cin"], lp["cout"]
        w = np.asarray(jax.random.normal(keys[li], (3, 3, cin, cout), jnp.float32))
        w = (w / np.sqrt(9.0 * cin)).astype(np.float32)        # conv3x3, bias=False
        consts.append(jnp.asarray(_fused_banded_conv(w, h), jnp.bfloat16))
        if lp["gn"]:
            n_groups = 4 if cout % 4 == 0 else 5               # same rule as the module
            assert cout % n_groups == 0, "GroupNorm requires n_groups to divide channels"
            p, q = _gn_factored(h, h, cout, n_groups)
            gamma = np.ones((cout,), np.float32)               # GroupNorm default affine
            beta = np.zeros((cout,), np.float32)
            consts.append(jnp.asarray(p, jnp.float32))
            consts.append(jnp.asarray(q, jnp.float32))
            consts.append(jnp.asarray(np.tile(gamma, h)[None, :], jnp.float32))
            consts.append(jnp.asarray(np.tile(beta, h)[None, :], jnp.float32))
        if lp["upsample"]:
            u = _upsample_1d(h)                                # values in {0,.25,.75,1}: bf16-exact
            uy_full = np.kron(np.eye(batch, dtype=np.float32), u)           # block-diag rows
            ku = np.kron(u, np.eye(cout, dtype=np.float32)).T.copy()        # columns
            consts.append(jnp.asarray(uy_full, jnp.bfloat16))
            consts.append(jnp.asarray(ku, jnp.bfloat16))
        plan.append(("conv3", lp["gn"], lp["upsample"], h))
        if lp["upsample"]:
            h *= 2
    assert h == IMAGE_SIZE
    # final_conv: 1x1 conv with bias, no norm / activation, then sigmoid
    c0 = CHANNELS[0]
    wf = np.asarray(jax.random.normal(keys[-2], (c0, CDIM), jnp.float32))
    wf = (wf / np.sqrt(float(c0))).astype(np.float32)
    bf = (0.01 * np.asarray(jax.random.normal(keys[-1], (CDIM,), jnp.float32))).astype(np.float32)
    consts.append(jnp.asarray(np.kron(np.eye(h, dtype=np.float32), wf), jnp.bfloat16))
    consts.append(jnp.asarray(np.tile(bf, h)[None, :], jnp.float32))
    plan.append(("conv1",))
    return tuple(plan), consts


# ================================ pallas wrapper ===============================
def cnn_decoder_forward(z, plan, consts):
    """z: (B, in_ch, H0, W0) NCHW -> (B, cdim, IMAGE_SIZE, IMAGE_SIZE)."""
    b, cin, h0, w0 = z.shape
    # NCHW -> batch-major channel-minor rows: (B*H0, W0*Cin)
    z_flat = jnp.transpose(z, (0, 2, 3, 1)).reshape(b * h0, w0 * cin)
    hf = IMAGE_SIZE
    out_cols = hf * CDIM

    vmem = pltpu.MemorySpace.VMEM
    out = pl.pallas_call(
        functools.partial(decoder_kernel, plan=plan, batch=b, eps=GN_EPS),
        out_shape=jax.ShapeDtypeStruct((b * hf, out_cols), jnp.float32),
        in_specs=[pl.BlockSpec(memory_space=vmem)] * (1 + len(consts)),
        out_specs=pl.BlockSpec(memory_space=vmem),
    )(z_flat, *consts)
    # (B*H, W*cdim) -> (B, cdim, H, W)  (PyTorch layout)
    return jnp.transpose(out.reshape(b, hf, hf, CDIM), (0, 3, 1, 2))


# ==================================== main =====================================
if __name__ == "__main__":
    root = jax.random.PRNGKey(0)
    kz, kparams = jax.random.split(root)

    z = jax.random.normal(kz, (BATCH, IN_CH, Z_SIZE, Z_SIZE), jnp.float32)
    plan, consts = build_decoder(kparams, BATCH)

    fwd = jax.jit(lambda zz: cnn_decoder_forward(zz, plan, consts))
    out = jax.block_until_ready(fwd(z))

    assert out.shape == (BATCH, CDIM, IMAGE_SIZE, IMAGE_SIZE), out.shape
    assert bool(jnp.all(jnp.isfinite(out)))
    # sigmoid output range (small tolerance for the approximate EUP reciprocal)
    assert bool(jnp.all((out >= -1e-3) & (out <= 1.0 + 1e-3)))
    print("KERNEL_OK")
</pallas_src>

<mosaic_0001>
module attributes {stable_mosaic.version = 11 : i64} {
  func.func @decoder_kernel(%arg0: memref<8x32xf32, #tpu.memory_space<vmem>>, %arg1: memref<96x128xbf16, #tpu.memory_space<vmem>>, %arg2: memref<16x8xbf16, #tpu.memory_space<vmem>>, %arg3: memref<128x256xbf16, #tpu.memory_space<vmem>>, %arg4: memref<768x256xbf16, #tpu.memory_space<vmem>>, %arg5: memref<256x4xf32, #tpu.memory_space<vmem>>, %arg6: memref<4x256xf32, #tpu.memory_space<vmem>>, %arg7: memref<1x256xf32, #tpu.memory_space<vmem>>, %arg8: memref<1x256xf32, #tpu.memory_space<vmem>>, %arg9: memref<32x16xbf16, #tpu.memory_space<vmem>>, %arg10: memref<256x512xbf16, #tpu.memory_space<vmem>>, %arg11: memref<1536x256xbf16, #tpu.memory_space<vmem>>, %arg12: memref<256x4xf32, #tpu.memory_space<vmem>>, %arg13: memref<4x256xf32, #tpu.memory_space<vmem>>, %arg14: memref<1x256xf32, #tpu.memory_space<vmem>>, %arg15: memref<1x256xf32, #tpu.memory_space<vmem>>, %arg16: memref<256x48xbf16, #tpu.memory_space<vmem>>, %arg17: memref<1x48xf32, #tpu.memory_space<vmem>>, %arg18: memref<32x48xf32, #tpu.memory_space<vmem>>) attributes {dimension_semantics = [], scalar_prefetch = 0 : i64, scratch_operands = 0 : i64, tpu.core_type = #tpu.core_type<tc>} {
    %c0 = arith.constant 0 : index
    %c0_0 = arith.constant 0 : index
    %0 = vector.load %arg0[%c0, %c0_0] : memref<8x32xf32, #tpu.memory_space<vmem>>, vector<8x32xf32>
    %1 = tpu.iota {dimensions = array<i32: 0>} : vector<8x32xi32>
    %c4_i32 = arith.constant 4 : i32
    %c0_i32 = arith.constant 0 : i32
    %2 = arith.cmpi eq, %c4_i32, %c0_i32 : i32
    %c1_i32 = arith.constant 1 : i32
    %3 = arith.select %2, %c1_i32, %c4_i32 : i32
    %4 = vector.broadcast %3 : i32 to vector<8x32xi32>
    %5 = arith.remsi %1, %4 : vector<8x32xi32>
    %c0_i32_1 = arith.constant 0 : i32
    %6 = vector.broadcast %c0_i32_1 : i32 to vector<8x32xi32>
    %7 = arith.cmpi ne, %5, %6 : vector<8x32xi32>
    %c0_i32_2 = arith.constant 0 : i32
    %8 = vector.broadcast %c0_i32_2 : i32 to vector<8x32xi32>
    %9 = arith.cmpi slt, %5, %8 : vector<8x32xi32>
    %c0_i32_3 = arith.constant 0 : i32
    %10 = arith.cmpi slt, %3, %c0_i32_3 : i32
    %11 = vector.broadcast %10 : i1 to vector<8x32xi1>
    %12 = vector.broadcast %11 : vector<8x32xi1> to vector<8x32xi1>
    %13 = arith.xori %9, %12 : vector<8x32xi1>
    %14 = arith.andi %13, %7 : vector<8x32xi1>
    %15 = vector.broadcast %3 : i32 to vector<8x32xi32>
    %16 = arith.addi %5, %15 : vector<8x32xi32>
    %17 = arith.select %14, %16, %5 : vector<8x32xi1>, vector<8x32xi32>
    %c0_i32_4 = arith.constant 0 : i32
    %18 = vector.broadcast %c0_i32_4 : i32 to vector<8x32xi32>
    %19 = arith.cmpi ne, %17, %18 : vector<8x32xi32>
    %c1_i32_5 = arith.constant 1 : i32
    %20 = tpu.dynamic_rotate %0 by %c1_i32_5 dim 0 : vector<8x32xf32>, i32 -> vector<8x32xf32>
    %cst = arith.constant 0.000000e+00 : f32
    %21 = vector.broadcast %cst : f32 to vector<8x32xf32>
    %22 = arith.select %19, %20, %21 : vector<8x32xi1>, vector<8x32xf32>
    %c4_i32_6 = arith.constant 4 : i32
    %c0_i32_7 = arith.constant 0 : i32
    %23 = arith.cmpi eq, %c4_i32_6, %c0_i32_7 : i32
    %c1_i32_8 = arith.constant 1 : i32
    %24 = arith.select %23, %c1_i32_8, %c4_i32_6 : i32
    %25 = vector.broadcast %24 : i32 to vector<8x32xi32>
    %26 = arith.remsi %1, %25 : vector<8x32xi32>
    %c0_i32_9 = arith.constant 0 : i32
    %27 = vector.broadcast %c0_i32_9 : i32 to vector<8x32xi32>
    %28 = arith.cmpi ne, %26, %27 : vector<8x32xi32>
    %c0_i32_10 = arith.constant 0 : i32
    %29 = vector.broadcast %c0_i32_10 : i32 to vector<8x32xi32>
    %30 = arith.cmpi slt, %26, %29 : vector<8x32xi32>
    %c0_i32_11 = arith.constant 0 : i32
    %31 = arith.cmpi slt, %24, %c0_i32_11 : i32
    %32 = vector.broadcast %31 : i1 to vector<8x32xi1>
    %33 = vector.broadcast %32 : vector<8x32xi1> to vector<8x32xi1>
    %34 = arith.xori %30, %33 : vector<8x32xi1>
    %35 = arith.andi %34, %28 : vector<8x32xi1>
    %36 = vector.broadcast %24 : i32 to vector<8x32xi32>
    %37 = arith.addi %26, %36 : vector<8x32xi32>
    %38 = arith.select %35, %37, %26 : vector<8x32xi1>, vector<8x32xi32>
    %c3_i32 = arith.constant 3 : i32
    %39 = vector.broadcast %c3_i32 : i32 to vector<8x32xi32>
    %40 = arith.cmpi ne, %38, %39 : vector<8x32xi32>
    %c7_i32 = arith.constant 7 : i32
    %41 = tpu.dynamic_rotate %0 by %c7_i32 dim 0 : vector<8x32xf32>, i32 -> vector<8x32xf32>
    %cst_12 = arith.constant 0.000000e+00 : f32
    %42 = vector.broadcast %cst_12 : f32 to vector<8x32xf32>
    %43 = arith.select %40, %41, %42 : vector<8x32xi1>, vector<8x32xf32>
    %44 = tpu.concatenate %22, %0, %43 in 1 : vector<8x32xf32>, vector<8x32xf32>, vector<8x32xf32> -> vector<8x96xf32>
    %45 = arith.truncf %44 : vector<8x96xf32> to vector<8x96xbf16>
    %c0_13 = arith.constant 0 : index
    %c0_14 = arith.constant 0 : index
    %46 = vector.load %arg1[%c0_13, %c0_14] : memref<96x128xbf16, #tpu.memory_space<vmem>>, vector<96x128xbf16>
    %cst_15 = arith.constant dense<0.000000e+00> : vector<8x128xf32>
    %47 = tpu.matmul %45, %46, %cst_15 {dimension_numbers = #tpu.dot_dimension_numbers<[1], [0], [0], [1], [0, 0, 1, 1], [], []>} : vector<8x96xbf16>, vector<96x128xbf16>, vector<8x128xf32> -> vector<8x128xf32>
    %cst_16 = arith.constant 0.000000e+00 : f32
    %48 = vector.broadcast %cst_16 : f32 to vector<8x128xf32>
    %49 = arith.maximumf %47, %48 : vector<8x128xf32>
    %c0_17 = arith.constant 0 : index
    %c0_18 = arith.constant 0 : index
    %50 = vector.load %arg2[%c0_17, %c0_18] : memref<16x8xbf16, #tpu.memory_space<vmem>>, vector<16x8xbf16>
    %51 = arith.truncf %49 : vector<8x128xf32> to vector<8x128xbf16>
    %cst_19 = arith.constant dense<0.000000e+00> : vector<16x128xf32>
    %52 = tpu.matmul %50, %51, %cst_19 {dimension_numbers = #tpu.dot_dimension_numbers<[1], [0], [0], [1], [0, 0, 1, 1], [], []>} : vector<16x8xbf16>, vector<8x128xbf16>, vector<16x128xf32> -> vector<16x128xf32>
    %53 = arith.truncf %52 : vector<16x128xf32> to vector<16x128xbf16>
    %c0_20 = arith.constant 0 : index
    %c0_21 = arith.constant 0 : index
    %54 = vector.load %arg3[%c0_20, %c0_21] : memref<128x256xbf16, #tpu.memory_space<vmem>>, vector<128x256xbf16>
    %cst_22 = arith.constant dense<0.000000e+00> : vector<16x256xf32>
    %55 = tpu.matmul %53, %54, %cst_22 {dimension_numbers = #tpu.dot_dimension_numbers<[1], [0], [0], [1], [0, 0, 1, 1], [], []>} : vector<16x128xbf16>, vector<128x256xbf16>, vector<16x256xf32> -> vector<16x256xf32>
    %56 = tpu.iota {dimensions = array<i32: 0>} : vector<16x256xi32>
    %c8_i32 = arith.constant 8 : i32
    %c0_i32_23 = arith.constant 0 : i32
    %57 = arith.cmpi eq, %c8_i32, %c0_i32_23 : i32
    %c1_i32_24 = arith.constant 1 : i32
    %58 = arith.select %57, %c1_i32_24, %c8_i32 : i32
    %59 = vector.broadcast %58 : i32 to vector<16x256xi32>
    %60 = arith.remsi %56, %59 : vector<16x256xi32>
    %c0_i32_25 = arith.constant 0 : i32
    %61 = vector.broadcast %c0_i32_25 : i32 to vector<16x256xi32>
    %62 = arith.cmpi ne, %60, %61 : vector<16x256xi32>
    %c0_i32_26 = arith.constant 0 : i32
    %63 = vector.broadcast %c0_i32_26 : i32 to vector<16x256xi32>
    %64 = arith.cmpi slt, %60, %63 : vector<16x256xi32>
    %c0_i32_27 = arith.constant 0 : i32
    %65 = arith.cmpi slt, %58, %c0_i32_27 : i32
    %66 = vector.broadcast %65 : i1 to vector<16x256xi1>
    %67 = vector.broadcast %66 : vector<16x256xi1> to vector<16x256xi1>
    %68 = arith.xori %64, %67 : vector<16x256xi1>
    %69 = arith.andi %68, %62 : vector<16x256xi1>
    %70 = vector.broadcast %58 : i32 to vector<16x256xi32>
    %71 = arith.addi %60, %70 : vector<16x256xi32>
    %72 = arith.select %69, %71, %60 : vector<16x256xi1>, vector<16x256xi32>
    %c0_i32_28 = arith.constant 0 : i32
    %73 = vector.broadcast %c0_i32_28 : i32 to vector<16x256xi32>
    %74 = arith.cmpi ne, %72, %73 : vector<16x256xi32>
    %c1_i32_29 = arith.constant 1 : i32
    %75 = tpu.dynamic_rotate %55 by %c1_i32_29 dim 0 : vector<16x256xf32>, i32 -> vector<16x256xf32>
    %cst_30 = arith.constant 0.000000e+00 : f32
    %76 = vector.broadcast %cst_30 : f32 to vector<16x256xf32>
    %77 = arith.select %74, %75, %76 : vector<16x256xi1>, vector<16x256xf32>
    %c8_i32_31 = arith.constant 8 : i32
    %c0_i32_32 = arith.constant 0 : i32
    %78 = arith.cmpi eq, %c8_i32_31, %c0_i32_32 : i32
    %c1_i32_33 = arith.constant 1 : i32
    %79 = arith.select %78, %c1_i32_33, %c8_i32_31 : i32
    %80 = vector.broadcast %79 : i32 to vector<16x256xi32>
    %81 = arith.remsi %56, %80 : vector<16x256xi32>
    %c0_i32_34 = arith.constant 0 : i32
    %82 = vector.broadcast %c0_i32_34 : i32 to vector<16x256xi32>
    %83 = arith.cmpi ne, %81, %82 : vector<16x256xi32>
    %c0_i32_35 = arith.constant 0 : i32
    %84 = vector.broadcast %c0_i32_35 : i32 to vector<16x256xi32>
    %85 = arith.cmpi slt, %81, %84 : vector<16x256xi32>
    %c0_i32_36 = arith.constant 0 : i32
    %86 = arith.cmpi slt, %79, %c0_i32_36 : i32
    %87 = vector.broadcast %86 : i1 to vector<16x256xi1>
    %88 = vector.broadcast %87 : vector<16x256xi1> to vector<16x256xi1>
    %89 = arith.xori %85, %88 : vector<16x256xi1>
    %90 = arith.andi %89, %83 : vector<16x256xi1>
    %91 = vector.broadcast %79 : i32 to vector<16x256xi32>
    %92 = arith.addi %81, %91 : vector<16x256xi32>
    %93 = arith.select %90, %92, %81 : vector<16x256xi1>, vector<16x256xi32>
    %c7_i32_37 = arith.constant 7 : i32
    %94 = vector.broadcast %c7_i32_37 : i32 to vector<16x256xi32>
    %95 = arith.cmpi ne, %93, %94 : vector<16x256xi32>
    %c15_i32 = arith.constant 15 : i32
    %96 = tpu.dynamic_rotate %55 by %c15_i32 dim 0 : vector<16x256xf32>, i32 -> vector<16x256xf32>
    %cst_38 = arith.constant 0.000000e+00 : f32
    %97 = vector.broadcast %cst_38 : f32 to vector<16x256xf32>
    %98 = arith.select %95, %96, %97 : vector<16x256xi1>, vector<16x256xf32>
    %99 = tpu.concatenate %77, %55, %98 in 1 : vector<16x256xf32>, vector<16x256xf32>, vector<16x256xf32> -> vector<16x768xf32>
    %100 = arith.truncf %99 : vector<16x768xf32> to vector<16x768xbf16>
    %c0_39 = arith.constant 0 : index
    %c0_40 = arith.constant 0 : index
    %101 = vector.load %arg4[%c0_39, %c0_40] : memref<768x256xbf16, #tpu.memory_space<vmem>>, vector<768x256xbf16>
    %cst_41 = arith.constant dense<0.000000e+00> : vector<16x256xf32>
    %102 = tpu.matmul %100, %101, %cst_41 {dimension_numbers = #tpu.dot_dimension_numbers<[1], [0], [0], [1], [0, 0, 1, 1], [], []>} : vector<16x768xbf16>, vector<768x256xbf16>, vector<16x256xf32> -> vector<16x256xf32>
    %103 = vector.shape_cast %102 : vector<16x256xf32> to vector<2x8x256xf32>
    %cst_42 = arith.constant dense<0.000000e+00> : vector<2x256xf32>
    %104 = vector.multi_reduction <add>, %103, %cst_42 [1] : vector<2x8x256xf32> to vector<2x256xf32>
    %c0_43 = arith.constant 0 : index
    %c0_44 = arith.constant 0 : index
    %105 = vector.load %arg5[%c0_43, %c0_44] : memref<256x4xf32, #tpu.memory_space<vmem>>, vector<256x4xf32>
    %cst_45 = arith.constant dense<0.000000e+00> : vector<2x4xf32>
    %106 = tpu.matmul %104, %105, %cst_45 {dimension_numbers = #tpu.dot_dimension_numbers<[1], [0], [0], [1], [0, 0, 1, 1], [], []>} : vector<2x256xf32>, vector<256x4xf32>, vector<2x4xf32> -> vector<2x4xf32>
    %c0_46 = arith.constant 0 : index
    %c0_47 = arith.constant 0 : index
    %107 = vector.load %arg6[%c0_46, %c0_47] : memref<4x256xf32, #tpu.memory_space<vmem>>, vector<4x256xf32>
    %cst_48 = arith.constant dense<0.000000e+00> : vector<2x256xf32>
    %108 = tpu.matmul %106, %107, %cst_48 {dimension_numbers = #tpu.dot_dimension_numbers<[1], [0], [0], [1], [0, 0, 1, 1], [], []>} : vector<2x4xf32>, vector<4x256xf32>, vector<2x256xf32> -> vector<2x256xf32>
    %109 = vector.shape_cast %108 : vector<2x256xf32> to vector<2x1x256xf32>
    %110 = vector.broadcast %109 : vector<2x1x256xf32> to vector<2x8x256xf32>
    %111 = arith.subf %103, %110 : vector<2x8x256xf32>
    %112 = arith.mulf %111, %111 : vector<2x8x256xf32>
    %cst_49 = arith.constant dense<0.000000e+00> : vector<2x256xf32>
    %113 = vector.multi_reduction <add>, %112, %cst_49 [1] : vector<2x8x256xf32> to vector<2x256xf32>
    %c0_50 = arith.constant 0 : index
    %c0_51 = arith.constant 0 : index
    %114 = vector.load %arg5[%c0_50, %c0_51] : memref<256x4xf32, #tpu.memory_space<vmem>>, vector<256x4xf32>
    %cst_52 = arith.constant dense<0.000000e+00> : vector<2x4xf32>
    %115 = tpu.matmul %113, %114, %cst_52 {dimension_numbers = #tpu.dot_dimension_numbers<[1], [0], [0], [1], [0, 0, 1, 1], [], []>} : vector<2x256xf32>, vector<256x4xf32>, vector<2x4xf32> -> vector<2x4xf32>
    %c0_53 = arith.constant 0 : index
    %c0_54 = arith.constant 0 : index
    %116 = vector.load %arg6[%c0_53, %c0_54] : memref<4x256xf32, #tpu.memory_space<vmem>>, vector<4x256xf32>
    %cst_55 = arith.constant dense<0.000000e+00> : vector<2x256xf32>
    %117 = tpu.matmul %115, %116, %cst_55 {dimension_numbers = #tpu.dot_dimension_numbers<[1], [0], [0], [1], [0, 0, 1, 1], [], []>} : vector<2x4xf32>, vector<4x256xf32>, vector<2x256xf32> -> vector<2x256xf32>
    %cst_56 = arith.constant 9.99999974E-5 : f32
    %118 = vector.broadcast %cst_56 : f32 to vector<2x256xf32>
    %119 = arith.addf %117, %118 : vector<2x256xf32>
    %120 = math.rsqrt %119 : vector<2x256xf32>
    %121 = vector.shape_cast %120 : vector<2x256xf32> to vector<2x1x256xf32>
    %122 = vector.broadcast %121 : vector<2x1x256xf32> to vector<2x8x256xf32>
    %123 = arith.mulf %111, %122 : vector<2x8x256xf32>
    %124 = vector.shape_cast %123 : vector<2x8x256xf32> to vector<16x256xf32>
    %c0_57 = arith.constant 0 : index
    %c0_58 = arith.constant 0 : index
    %125 = vector.load %arg7[%c0_57, %c0_58] : memref<1x256xf32, #tpu.memory_space<vmem>>, vector<1x256xf32>
    %126 = vector.broadcast %125 : vector<1x256xf32> to vector<16x256xf32>
    %127 = arith.mulf %124, %126 : vector<16x256xf32>
    %c0_59 = arith.constant 0 : index
    %c0_60 = arith.constant 0 : index
    %128 = vector.load %arg8[%c0_59, %c0_60] : memref<1x256xf32, #tpu.memory_space<vmem>>, vector<1x256xf32>
    %129 = vector.broadcast %128 : vector<1x256xf32> to vector<16x256xf32>
    %130 = arith.addf %127, %129 : vector<16x256xf32>
    %cst_61 = arith.constant 0.000000e+00 : f32
    %131 = vector.broadcast %cst_61 : f32 to vector<16x256xf32>
    %132 = arith.maximumf %130, %131 : vector<16x256xf32>
    %c0_62 = arith.constant 0 : index
    %c0_63 = arith.constant 0 : index
    %133 = vector.load %arg9[%c0_62, %c0_63] : memref<32x16xbf16, #tpu.memory_space<vmem>>, vector<32x16xbf16>
    %134 = arith.truncf %132 : vector<16x256xf32> to vector<16x256xbf16>
    %cst_64 = arith.constant dense<0.000000e+00> : vector<32x256xf32>
    %135 = tpu.matmul %133, %134, %cst_64 {dimension_numbers = #tpu.dot_dimension_numbers<[1], [0], [0], [1], [0, 0, 1, 1], [], []>} : vector<32x16xbf16>, vector<16x256xbf16>, vector<32x256xf32> -> vector<32x256xf32>
    %136 = arith.truncf %135 : vector<32x256xf32> to vector<32x256xbf16>
    %c0_65 = arith.constant 0 : index
    %c0_66 = arith.constant 0 : index
    %137 = vector.load %arg10[%c0_65, %c0_66] : memref<256x512xbf16, #tpu.memory_space<vmem>>, vector<256x512xbf16>
    %cst_67 = arith.constant dense<0.000000e+00> : vector<32x512xf32>
    %138 = tpu.matmul %136, %137, %cst_67 {dimension_numbers = #tpu.dot_dimension_numbers<[1], [0], [0], [1], [0, 0, 1, 1], [], []>} : vector<32x256xbf16>, vector<256x512xbf16>, vector<32x512xf32> -> vector<32x512xf32>
    %139 = tpu.iota {dimensions = array<i32: 0>} : vector<32x512xi32>
    %c16_i32 = arith.constant 16 : i32
    %c0_i32_68 = arith.constant 0 : i32
    %140 = arith.cmpi eq, %c16_i32, %c0_i32_68 : i32
    %c1_i32_69 = arith.constant 1 : i32
    %141 = arith.select %140, %c1_i32_69, %c16_i32 : i32
    %142 = vector.broadcast %141 : i32 to vector<32x512xi32>
    %143 = arith.remsi %139, %142 : vector<32x512xi32>
    %c0_i32_70 = arith.constant 0 : i32
    %144 = vector.broadcast %c0_i32_70 : i32 to vector<32x512xi32>
    %145 = arith.cmpi ne, %143, %144 : vector<32x512xi32>
    %c0_i32_71 = arith.constant 0 : i32
    %146 = vector.broadcast %c0_i32_71 : i32 to vector<32x512xi32>
    %147 = arith.cmpi slt, %143, %146 : vector<32x512xi32>
    %c0_i32_72 = arith.constant 0 : i32
    %148 = arith.cmpi slt, %141, %c0_i32_72 : i32
    %149 = vector.broadcast %148 : i1 to vector<32x512xi1>
    %150 = vector.broadcast %149 : vector<32x512xi1> to vector<32x512xi1>
    %151 = arith.xori %147, %150 : vector<32x512xi1>
    %152 = arith.andi %151, %145 : vector<32x512xi1>
    %153 = vector.broadcast %141 : i32 to vector<32x512xi32>
    %154 = arith.addi %143, %153 : vector<32x512xi32>
    %155 = arith.select %152, %154, %143 : vector<32x512xi1>, vector<32x512xi32>
    %c0_i32_73 = arith.constant 0 : i32
    %156 = vector.broadcast %c0_i32_73 : i32 to vector<32x512xi32>
    %157 = arith.cmpi ne, %155, %156 : vector<32x512xi32>
    %c1_i32_74 = arith.constant 1 : i32
    %158 = tpu.dynamic_rotate %138 by %c1_i32_74 dim 0 : vector<32x512xf32>, i32 -> vector<32x512xf32>
    %cst_75 = arith.constant 0.000000e+00 : f32
    %159 = vector.broadcast %cst_75 : f32 to vector<32x512xf32>
    %160 = arith.select %157, %158, %159 : vector<32x512xi1>, vector<32x512xf32>
    %c16_i32_76 = arith.constant 16 : i32
    %c0_i32_77 = arith.constant 0 : i32
    %161 = arith.cmpi eq, %c16_i32_76, %c0_i32_77 : i32
    %c1_i32_78 = arith.constant 1 : i32
    %162 = arith.select %161, %c1_i32_78, %c16_i32_76 : i32
    %163 = vector.broadcast %162 : i32 to vector<32x512xi32>
    %164 = arith.remsi %139, %163 : vector<32x512xi32>
    %c0_i32_79 = arith.constant 0 : i32
    %165 = vector.broadcast %c0_i32_79 : i32 to vector<32x512xi32>
    %166 = arith.cmpi ne, %164, %165 : vector<32x512xi32>
    %c0_i32_80 = arith.constant 0 : i32
    %167 = vector.broadcast %c0_i32_80 : i32 to vector<32x512xi32>
    %168 = arith.cmpi slt, %164, %167 : vector<32x512xi32>
    %c0_i32_81 = arith.constant 0 : i32
    %169 = arith.cmpi slt, %162, %c0_i32_81 : i32
    %170 = vector.broadcast %169 : i1 to vector<32x512xi1>
    %171 = vector.broadcast %170 : vector<32x512xi1> to vector<32x512xi1>
    %172 = arith.xori %168, %171 : vector<32x512xi1>
    %173 = arith.andi %172, %166 : vector<32x512xi1>
    %174 = vector.broadcast %162 : i32 to vector<32x512xi32>
    %175 = arith.addi %164, %174 : vector<32x512xi32>
    %176 = arith.select %173, %175, %164 : vector<32x512xi1>, vector<32x512xi32>
    %c15_i32_82 = arith.constant 15 : i32
    %177 = vector.broadcast %c15_i32_82 : i32 to vector<32x512xi32>
    %178 = arith.cmpi ne, %176, %177 : vector<32x512xi32>
    %c31_i32 = arith.constant 31 : i32
    %179 = tpu.dynamic_rotate %138 by %c31_i32 dim 0 : vector<32x512xf32>, i32 -> vector<32x512xf32>
    %cst_83 = arith.constant 0.000000e+00 : f32
    %180 = vector.broadcast %cst_83 : f32 to vector<32x512xf32>
    %181 = arith.select %178, %179, %180 : vector<32x512xi1>, vector<32x512xf32>
    %182 = tpu.concatenate %160, %138, %181 in 1 : vector<32x512xf32>, vector<32x512xf32>, vector<32x512xf32> -> vector<32x1536xf32>
    %183 = arith.truncf %182 : vector<32x1536xf32> to vector<32x1536xbf16>
    %c0_84 = arith.constant 0 : index
    %c0_85 = arith.constant 0 : index
    %184 = vector.load %arg11[%c0_84, %c0_85] : memref<1536x256xbf16, #tpu.memory_space<vmem>>, vector<1536x256xbf16>
    %cst_86 = arith.constant dense<0.000000e+00> : vector<32x256xf32>
    %185 = tpu.matmul %183, %184, %cst_86 {dimension_numbers = #tpu.dot_dimension_numbers<[1], [0], [0], [1], [0, 0, 1, 1], [], []>} : vector<32x1536xbf16>, vector<1536x256xbf16>, vector<32x256xf32> -> vector<32x256xf32>
    %186 = vector.shape_cast %185 : vector<32x256xf32> to vector<2x16x256xf32>
    %cst_87 = arith.constant dense<0.000000e+00> : vector<2x256xf32>
    %187 = vector.multi_reduction <add>, %186, %cst_87 [1] : vector<2x16x256xf32> to vector<2x256xf32>
    %c0_88 = arith.constant 0 : index
    %c0_89 = arith.constant 0 : index
    %188 = vector.load %arg12[%c0_88, %c0_89] : memref<256x4xf32, #tpu.memory_space<vmem>>, vector<256x4xf32>
    %cst_90 = arith.constant dense<0.000000e+00> : vector<2x4xf32>
    %189 = tpu.matmul %187, %188, %cst_90 {dimension_numbers = #tpu.dot_dimension_numbers<[1], [0], [0], [1], [0, 0, 1, 1], [], []>} : vector<2x256xf32>, vector<256x4xf32>, vector<2x4xf32> -> vector<2x4xf32>
    %c0_91 = arith.constant 0 : index
    %c0_92 = arith.constant 0 : index
    %190 = vector.load %arg13[%c0_91, %c0_92] : memref<4x256xf32, #tpu.memory_space<vmem>>, vector<4x256xf32>
    %cst_93 = arith.constant dense<0.000000e+00> : vector<2x256xf32>
    %191 = tpu.matmul %189, %190, %cst_93 {dimension_numbers = #tpu.dot_dimension_numbers<[1], [0], [0], [1], [0, 0, 1, 1], [], []>} : vector<2x4xf32>, vector<4x256xf32>, vector<2x256xf32> -> vector<2x256xf32>
    %192 = vector.shape_cast %191 : vector<2x256xf32> to vector<2x1x256xf32>
    %193 = vector.broadcast %192 : vector<2x1x256xf32> to vector<2x16x256xf32>
    %194 = arith.subf %186, %193 : vector<2x16x256xf32>
    %195 = arith.mulf %194, %194 : vector<2x16x256xf32>
    %cst_94 = arith.constant dense<0.000000e+00> : vector<2x256xf32>
    %196 = vector.multi_reduction <add>, %195, %cst_94 [1] : vector<2x16x256xf32> to vector<2x256xf32>
    %c0_95 = arith.constant 0 : index
    %c0_96 = arith.constant 0 : index
    %197 = vector.load %arg12[%c0_95, %c0_96] : memref<256x4xf32, #tpu.memory_space<vmem>>, vector<256x4xf32>
    %cst_97 = arith.constant dense<0.000000e+00> : vector<2x4xf32>
    %198 = tpu.matmul %196, %197, %cst_97 {dimension_numbers = #tpu.dot_dimension_numbers<[1], [0], [0], [1], [0, 0, 1, 1], [], []>} : vector<2x256xf32>, vector<256x4xf32>, vector<2x4xf32> -> vector<2x4xf32>
    %c0_98 = arith.constant 0 : index
    %c0_99 = arith.constant 0 : index
    %199 = vector.load %arg13[%c0_98, %c0_99] : memref<4x256xf32, #tpu.memory_space<vmem>>, vector<4x256xf32>
    %cst_100 = arith.constant dense<0.000000e+00> : vector<2x256xf32>
    %200 = tpu.matmul %198, %199, %cst_100 {dimension_numbers = #tpu.dot_dimension_numbers<[1], [0], [0], [1], [0, 0, 1, 1], [], []>} : vector<2x4xf32>, vector<4x256xf32>, vector<2x256xf32> -> vector<2x256xf32>
    %cst_101 = arith.constant 9.99999974E-5 : f32
    %201 = vector.broadcast %cst_101 : f32 to vector<2x256xf32>
    %202 = arith.addf %200, %201 : vector<2x256xf32>
    %203 = math.rsqrt %202 : vector<2x256xf32>
    %204 = vector.shape_cast %203 : vector<2x256xf32> to vector<2x1x256xf32>
    %205 = vector.broadcast %204 : vector<2x1x256xf32> to vector<2x16x256xf32>
    %206 = arith.mulf %194, %205 : vector<2x16x256xf32>
    %207 = vector.shape_cast %206 : vector<2x16x256xf32> to vector<32x256xf32>
    %c0_102 = arith.constant 0 : index
    %c0_103 = arith.constant 0 : index
    %208 = vector.load %arg14[%c0_102, %c0_103] : memref<1x256xf32, #tpu.memory_space<vmem>>, vector<1x256xf32>
    %209 = vector.broadcast %208 : vector<1x256xf32> to vector<32x256xf32>
    %210 = arith.mulf %207, %209 : vector<32x256xf32>
    %c0_104 = arith.constant 0 : index
    %c0_105 = arith.constant 0 : index
    %211 = vector.load %arg15[%c0_104, %c0_105] : memref<1x256xf32, #tpu.memory_space<vmem>>, vector<1x256xf32>
    %212 = vector.broadcast %211 : vector<1x256xf32> to vector<32x256xf32>
    %213 = arith.addf %210, %212 : vector<32x256xf32>
    %cst_106 = arith.constant 0.000000e+00 : f32
    %214 = vector.broadcast %cst_106 : f32 to vector<32x256xf32>
    %215 = arith.maximumf %213, %214 : vector<32x256xf32>
    %216 = arith.truncf %215 : vector<32x256xf32> to vector<32x256xbf16>
    %c0_107 = arith.constant 0 : index
    %c0_108 = arith.constant 0 : index
    %217 = vector.load %arg16[%c0_107, %c0_108] : memref<256x48xbf16, #tpu.memory_space<vmem>>, vector<256x48xbf16>
    %cst_109 = arith.constant dense<0.000000e+00> : vector<32x48xf32>
    %218 = tpu.matmul %216, %217, %cst_109 {dimension_numbers = #tpu.dot_dimension_numbers<[1], [0], [0], [1], [0, 0, 1, 1], [], []>} : vector<32x256xbf16>, vector<256x48xbf16>, vector<32x48xf32> -> vector<32x48xf32>
    %c0_110 = arith.constant 0 : index
    %c0_111 = arith.constant 0 : index
    %219 = vector.load %arg17[%c0_110, %c0_111] : memref<1x48xf32, #tpu.memory_space<vmem>>, vector<1x48xf32>
    %220 = vector.broadcast %219 : vector<1x48xf32> to vector<32x48xf32>
    %221 = arith.addf %218, %220 : vector<32x48xf32>
    %cst_112 = arith.constant 0.000000e+00 : f32
    %222 = vector.broadcast %cst_112 : f32 to vector<32x48xf32>
    %223 = arith.subf %222, %221 : vector<32x48xf32>
    %224 = math.exp %223 : vector<32x48xf32>
    %cst_113 = arith.constant 1.000000e+00 : f32
    %225 = vector.broadcast %cst_113 : f32 to vector<32x48xf32>
    %226 = arith.addf %225, %224 : vector<32x48xf32>
    %227 = tpu.reciprocal %226 {approx = true} : vector<32x48xf32> -> vector<32x48xf32>
    %c0_114 = arith.constant 0 : index
    %c0_115 = arith.constant 0 : index
    %228 = vector.load %arg18[%c0_114, %c0_115] : memref<32x48xf32, #tpu.memory_space<vmem>>, vector<32x48xf32>
    tpu.vector_store %arg18[%c0_114, %c0_115], %227 {strides = array<i32>} : memref<32x48xf32, #tpu.memory_space<vmem>>, vector<32x48xf32>,
    return
  }
}

</mosaic_0001>

<llo_original>
// kernel: _lambda_.1
$region0: #{_lambda_.1}
  #allocation0 [shape = 'u32[]', space=smem, size = 0x4, offset = 0x4, fixed_abs, tag = 'smem constant byte address 0x4 - core index']
  #allocation1 [shape = 'u32[144,128]{1,0:T(1,128)}', space=vmem, size = 0x12000, scoped, tag = 'internal scratch']
  %s0 = inlined_call_operand.vmem [shape: f32[8,32], index: 0, kind: input, shape index: {}]
  %s1 = inlined_call_operand.vmem [shape: bf16[96,128], index: 1, kind: input, shape index: {}]
  %s2 = inlined_call_operand.hbm [shape: bf16[16,8], index: 2, kind: input, shape index: {}]
  %s3 = inlined_call_operand.hbm [shape: bf16[128,256], index: 3, kind: input, shape index: {}]
  %s4 = inlined_call_operand.hbm [shape: bf16[768,256], index: 4, kind: input, shape index: {}]
  %s5 = inlined_call_operand.hbm [shape: f32[256,4], index: 5, kind: input, shape index: {}]
  %s6 = inlined_call_operand.hbm [shape: f32[4,256], index: 6, kind: input, shape index: {}]
  %s7 = inlined_call_operand.vmem [shape: f32[1,256], index: 7, kind: input, shape index: {}, may-alias: {7,14}]
  %s8 = inlined_call_operand.vmem [shape: f32[1,256], index: 8, kind: input, shape index: {}, may-alias: {8,15}]
  %s9 = inlined_call_operand.vmem [shape: bf16[32,16], index: 9, kind: input, shape index: {}]
  %s10 = inlined_call_operand.hbm [shape: bf16[256,512], index: 10, kind: input, shape index: {}]
  %s11 = inlined_call_operand.hbm [shape: bf16[1536,256], index: 11, kind: input, shape index: {}]
  %s12 = inlined_call_operand.hbm [shape: f32[256,4], index: 12, kind: input, shape index: {}]
  %s13 = inlined_call_operand.hbm [shape: f32[4,256], index: 13, kind: input, shape index: {}]
  %s14 = inlined_call_operand.vmem [shape: f32[1,256], index: 14, kind: input, shape index: {}, may-alias: {7,14}]
  %s15 = inlined_call_operand.vmem [shape: f32[1,256], index: 15, kind: input, shape index: {}, may-alias: {8,15}]
  %s16 = inlined_call_operand.hbm [shape: bf16[256,48], index: 16, kind: input, shape index: {}]
  %s17 = inlined_call_operand.vmem [shape: f32[1,48], index: 17, kind: input, shape index: {}]
  %s18 = inlined_call_operand.vmem [shape: f32[32,48], index: 18, kind: output, shape index: {}]
  %s19 = sld [smem:[#allocation0]]
  $region122: #{_lambda_.1} parent=0
    _
  %s21 = ssub.s32 1, %s19
  %s22 = scalar_select 0, %s21, %s19
  $region1: #{_lambda_.1} parent=0
    #allocation2 [shape = 'u8[4096]{0}', space=vmem, size = 0x1000, scoped, tag = 'input window, operand 2, single buffered']
    #allocation3 [shape = 's32[1]{0}', space=sflag, size = 0x4, scoped, tag = 'scoped memory for _lambda_.1']
    #allocation4 [shape = 'u8[65536]{0}', space=vmem, size = 0x10000, scoped, tag = 'input window, operand 3, single buffered']
    #allocation5 [shape = 's32[1]{0}', space=sflag, size = 0x4, scoped, tag = 'scoped memory for _lambda_.1']
    #allocation6 [shape = 'u8[393216]{0}', space=vmem, size = 0x60000, scoped, tag = 'input window, operand 4, single buffered']
    #allocation7 [shape = 'u8[131072]{0}', space=vmem, size = 0x20000, scoped, tag = 'input window, operand 5, single buffered']
    #allocation8 [shape = 's32[1]{0}', space=sflag, size = 0x4, scoped, tag = 'scoped memory for _lambda_.1']
    #allocation9 [shape = 'u8[4096]{0}', space=vmem, size = 0x1000, scoped, tag = 'input window, operand 6, single buffered']
    #allocation10 [shape = 'u8[262144]{0}', space=vmem, size = 0x40000, scoped, tag = 'input window, operand 10, single buffered']
    #allocation11 [shape = 's32[1]{0}', space=sflag, size = 0x4, scoped, tag = 'scoped memory for _lambda_.1']
    #allocation12 [shape = 'u8[786432]{0}', space=vmem, size = 0xc0000, scoped, tag = 'input window, operand 11, single buffered']
    #allocation13 [shape = 'u8[131072]{0}', space=vmem, size = 0x20000, scoped, tag = 'input window, operand 12, single buffered']
    #allocation14 [shape = 's32[1]{0}', space=sflag, size = 0x4, scoped, tag = 'scoped memory for _lambda_.1']
    #allocation15 [shape = 'u8[4096]{0}', space=vmem, size = 0x1000, scoped, tag = 'input window, operand 13, single buffered']
    #allocation16 [shape = 'u8[65536]{0}', space=vmem, size = 0x10000, scoped, tag = 'input window, operand 16, single buffered']
    #allocation17 [shape = 's32[1]{0}', space=sflag, size = 0x4, scoped, tag = 'scoped memory for _lambda_.1']
    %23 = vsyncpa [#allocation3], 0
    %24 = vsyncpa [#allocation5], 0
    %25 = vsyncpa [#allocation8], 0
    %26 = vsyncpa [#allocation11], 0
    %27 = vsyncpa [#allocation14], 0
    %28 = vsyncpa [#allocation17], 0
    // Predicated region
    $region2: #{_lambda_.1} parent=1 // pred_check
      _
    $region3: #{_lambda_.1} parent=1 // pred_check_branch
      %30 = sbr.rel (0) target = $region5
    $region4: #{_lambda_.1} parent=1 // pred_region
      _
    $region5: #{_lambda_.1} parent=1 // pred_fallthru
      _
    // Predicated region
    $region6: #{_lambda_.1} parent=1 // pred_check
      _
    $region7: #{_lambda_.1} parent=1 // pred_check_branch
      %32 = sbr.rel (0) target = $region9
    $region8: #{_lambda_.1} parent=1 // pred_region
      _
    $region9: #{_lambda_.1} parent=1 // pred_fallthru
      _
    // Predicated region
    $region10: #{_lambda_.1} parent=1 // pred_check
      _
    $region11: #{_lambda_.1} parent=1 // pred_check_branch
      %34 = sbr.rel (0) target = $region13
    $region12: #{_lambda_.1} parent=1 // pred_region
      %s36 = ssub.s32 128, 128
      %37 = vsyncadd [#allocation3], %s36
      %s38 = sshll.u32 [#allocation2], 4
      %s39 = int_to_ptr.vmem [resolvable:$true] %s38
      %44 = dma.hbm_to_vmem [thread:$0]  %s2, 128, %s39, [#allocation3], 64, 64, 4
    $region13: #{_lambda_.1} parent=1 // pred_fallthru
      _
    // Predicated region
    $region14: #{_lambda_.1} parent=1 // pred_check
      _
    $region15: #{_lambda_.1} parent=1 // pred_check_branch
      %46 = sbr.rel (0) target = $region17
    $region16: #{_lambda_.1} parent=1 // pred_region
      %s48 = ssub.s32 2048, 2048
      %49 = vsyncadd [#allocation5], %s48
      %s50 = sshll.u32 [#allocation4], 4
      %s51 = int_to_ptr.vmem [resolvable:$true] %s50
      %56 = dma.hbm_to_vmem [thread:$0]  %s3, 2048, %s51, [#allocation5], 128, 128, 8
    $region17: #{_lambda_.1} parent=1 // pred_fallthru
      _
    // Predicated region
    $region18: #{_lambda_.1} parent=1 // pred_check
      _
    $region19: #{_lambda_.1} parent=1 // pred_check_branch
      %58 = sbr.rel (0) target = $region21
    $region20: #{_lambda_.1} parent=1 // pred_region
      %s60 = ssub.s32 12288, 12288
      %61 = vsyncadd [#allocation5], %s60
      %s62 = sshll.u32 [#allocation6], 4
      %s63 = int_to_ptr.vmem [resolvable:$true] %s62
      %68 = dma.hbm_to_vmem [thread:$0]  %s4, 12288, %s63, [#allocation5], 128, 128, 8
    $region21: #{_lambda_.1} parent=1 // pred_fallthru
      _
    // Predicated region
    $region22: #{_lambda_.1} parent=1 // pred_check
      _
    $region23: #{_lambda_.1} parent=1 // pred_check_branch
      %70 = sbr.rel (0) target = $region25
    $region24: #{_lambda_.1} parent=1 // pred_region
      %s72 = ssub.s32 4096, 4096
      %73 = vsyncadd [#allocation8], %s72
      %s74 = sshll.u32 [#allocation7], 4
      %s75 = int_to_ptr.vmem [resolvable:$true] %s74
      %80 = dma.hbm_to_vmem [thread:$0]  %s5, 4096, %s75, [#allocation8], 128, 128, 8
    $region25: #{_lambda_.1} parent=1 // pred_fallthru
      _
    // Predicated region
    $region26: #{_lambda_.1} parent=1 // pred_check
      _
    $region27: #{_lambda_.1} parent=1 // pred_check_branch
      %82 = sbr.rel (0) target = $region29
    $region28: #{_lambda_.1} parent=1 // pred_region
      %s84 = ssub.s32 128, 128
      %85 = vsyncadd [#allocation8], %s84
      %s87 = sshll.u32 [#allocation9], 4
      %s88 = int_to_ptr.vmem [resolvable:$true] %s87
      %90 = dma.hbm_to_vmem [thread:$0]  %s6, 128, %s88, [#allocation8]
    $region29: #{_lambda_.1} parent=1 // pred_fallthru
      _
    // Predicated region
    $region30: #{_lambda_.1} parent=1 // pred_check
      _
    $region31: #{_lambda_.1} parent=1 // pred_check_branch
      %92 = sbr.rel (0) target = $region33
    $region32: #{_lambda_.1} parent=1 // pred_region
      _
    $region33: #{_lambda_.1} parent=1 // pred_fallthru
      _
    // Predicated region
    $region34: #{_lambda_.1} parent=1 // pred_check
      _
    $region35: #{_lambda_.1} parent=1 // pred_check_branch
      %94 = sbr.rel (0) target = $region37
    $region36: #{_lambda_.1} parent=1 // pred_region
      _
    $region37: #{_lambda_.1} parent=1 // pred_fallthru
      _
    // Predicated region
    $region38: #{_lambda_.1} parent=1 // pred_check
      _
    $region39: #{_lambda_.1} parent=1 // pred_check_branch
      %96 = sbr.rel (0) target = $region41
    $region40: #{_lambda_.1} parent=1 // pred_region
      _
    $region41: #{_lambda_.1} parent=1 // pred_fallthru
      _
    // Predicated region
    $region42: #{_lambda_.1} parent=1 // pred_check
      _
    $region43: #{_lambda_.1} parent=1 // pred_check_branch
      %98 = sbr.rel (0) target = $region45
    $region44: #{_lambda_.1} parent=1 // pred_region
      %s100 = ssub.s32 8192, 8192
      %101 = vsyncadd [#allocation11], %s100
      %s102 = sshll.u32 [#allocation10], 4
      %s103 = int_to_ptr.vmem [resolvable:$true] %s102
      %108 = dma.hbm_to_vmem [thread:$0]  %s10, 8192, %s103, [#allocation11], 256, 256, 16
    $region45: #{_lambda_.1} parent=1 // pred_fallthru
      _
    // Predicated region
    $region46: #{_lambda_.1} parent=1 // pred_check
      _
    $region47: #{_lambda_.1} parent=1 // pred_check_branch
      %110 = sbr.rel (0) target = $region49
    $region48: #{_lambda_.1} parent=1 // pred_region
      %s112 = ssub.s32 24576, 24576
      %113 = vsyncadd [#allocation11], %s112
      %s114 = sshll.u32 [#allocation12], 4
      %s115 = int_to_ptr.vmem [resolvable:$true] %s114
      %120 = dma.hbm_to_vmem [thread:$0]  %s11, 24576, %s115, [#allocation11], 128, 128, 8
    $region49: #{_lambda_.1} parent=1 // pred_fallthru
      _
    // Predicated region
    $region50: #{_lambda_.1} parent=1 // pred_check
      _
    $region51: #{_lambda_.1} parent=1 // pred_check_branch
      %122 = sbr.rel (0) target = $region53
    $region52: #{_lambda_.1} parent=1 // pred_region
      %s124 = ssub.s32 4096, 4096
      %125 = vsyncadd [#allocation14], %s124
      %s126 = sshll.u32 [#allocation13], 4
      %s127 = int_to_ptr.vmem [resolvable:$true] %s126
      %132 = dma.hbm_to_vmem [thread:$0]  %s12, 4096, %s127, [#allocation14], 128, 128, 8
    $region53: #{_lambda_.1} parent=1 // pred_fallthru
      _
    // Predicated region
    $region54: #{_lambda_.1} parent=1 // pred_check
      _
    $region55: #{_lambda_.1} parent=1 // pred_check_branch
      %134 = sbr.rel (0) target = $region57
    $region56: #{_lambda_.1} parent=1 // pred_region
      %s136 = ssub.s32 128, 128
      %137 = vsyncadd [#allocation14], %s136
      %s139 = sshll.u32 [#allocation15], 4
      %s140 = int_to_ptr.vmem [resolvable:$true] %s139
      %142 = dma.hbm_to_vmem [thread:$0]  %s13, 128, %s140, [#allocation14]
    $region57: #{_lambda_.1} parent=1 // pred_fallthru
      _
    // Predicated region
    $region58: #{_lambda_.1} parent=1 // pred_check
      _
    $region59: #{_lambda_.1} parent=1 // pred_check_branch
      %144 = sbr.rel (0) target = $region61
    $region60: #{_lambda_.1} parent=1 // pred_region
      _
    $region61: #{_lambda_.1} parent=1 // pred_fallthru
      _
    // Predicated region
    $region62: #{_lambda_.1} parent=1 // pred_check
      _
    $region63: #{_lambda_.1} parent=1 // pred_check_branch
      %146 = sbr.rel (0) target = $region65
    $region64: #{_lambda_.1} parent=1 // pred_region
      _
    $region65: #{_lambda_.1} parent=1 // pred_fallthru
      _
    // Predicated region
    $region66: #{_lambda_.1} parent=1 // pred_check
      _
    $region67: #{_lambda_.1} parent=1 // pred_check_branch
      %148 = sbr.rel (0) target = $region69
    $region68: #{_lambda_.1} parent=1 // pred_region
      %s150 = ssub.s32 2048, 2048
      %151 = vsyncadd [#allocation17], %s150
      %s152 = sshll.u32 [#allocation16], 4
      %s153 = int_to_ptr.vmem [resolvable:$true] %s152
      %158 = dma.hbm_to_vmem [thread:$0]  %s16, 2048, %s153, [#allocation17], 64, 64, 4
    $region69: #{_lambda_.1} parent=1 // pred_fallthru
      _
    // Predicated region
    $region70: #{_lambda_.1} parent=1 // pred_check
      _
    $region71: #{_lambda_.1} parent=1 // pred_check_branch
      %160 = sbr.rel (0) target = $region73
    $region72: #{_lambda_.1} parent=1 // pred_region
      _
    $region73: #{_lambda_.1} parent=1 // pred_fallthru
      _
    // Predicated region
    $region74: #{_lambda_.1} parent=1 // pred_check
      _
    $region75: #{_lambda_.1} parent=1 // pred_check_branch
      %162 = sbr.rel (0) target = $region77
    $region76: #{_lambda_.1} parent=1 // pred_region
      %163 = dma.done [#allocation3], 128
    $region77: #{_lambda_.1} parent=1 // pred_fallthru
      _
    // Predicated region
    $region78: #{_lambda_.1} parent=1 // pred_check
      _
    $region79: #{_lambda_.1} parent=1 // pred_check_branch
      %165 = sbr.rel (0) target = $region81
    $region80: #{_lambda_.1} parent=1 // pred_region
      %166 = dma.done [#allocation5], 2048
    $region81: #{_lambda_.1} parent=1 // pred_fallthru
      _
    // Predicated region
    $region82: #{_lambda_.1} parent=1 // pred_check
      _
    $region83: #{_lambda_.1} parent=1 // pred_check_branch
      %168 = sbr.rel (0) target = $region85
    $region84: #{_lambda_.1} parent=1 // pred_region
      %169 = dma.done [#allocation5], 12288
    $region85: #{_lambda_.1} parent=1 // pred_fallthru
      _
    // Predicated region
    $region86: #{_lambda_.1} parent=1 // pred_check
      _
    $region87: #{_lambda_.1} parent=1 // pred_check_branch
      %171 = sbr.rel (0) target = $region89
    $region88: #{_lambda_.1} parent=1 // pred_region
      %172 = dma.done [#allocation8], 4096
    $region89: #{_lambda_.1} parent=1 // pred_fallthru
      _
    // Predicated region
    $region90: #{_lambda_.1} parent=1 // pred_check
      _
    $region91: #{_lambda_.1} parent=1 // pred_check_branch
      %174 = sbr.rel (0) target = $region93
    $region92: #{_lambda_.1} parent=1 // pred_region
      %175 = dma.done [#allocation8], 128
    $region93: #{_lambda_.1} parent=1 // pred_fallthru
      _
    // Predicated region
    $region94: #{_lambda_.1} parent=1 // pred_check
      _
    $region95: #{_lambda_.1} parent=1 // pred_check_branch
      %177 = sbr.rel (0) target = $region97
    $region96: #{_lambda_.1} parent=1 // pred_region
      %178 = dma.done [#allocation11], 8192
    $region97: #{_lambda_.1} parent=1 // pred_fallthru
      _
    // Predicated region
    $region98: #{_lambda_.1} parent=1 // pred_check
      _
    $region99: #{_lambda_.1} parent=1 // pred_check_branch
      %180 = sbr.rel (0) target = $region101
    $region100: #{_lambda_.1} parent=1 // pred_region
      %181 = dma.done [#allocation11], 24576
    $region101: #{_lambda_.1} parent=1 // pred_fallthru
      _
    // Predicated region
    $region102: #{_lambda_.1} parent=1 // pred_check
      _
    $region103: #{_lambda_.1} parent=1 // pred_check_branch
      %183 = sbr.rel (0) target = $region105
    $region104: #{_lambda_.1} parent=1 // pred_region
      %184 = dma.done [#allocation14], 4096
    $region105: #{_lambda_.1} parent=1 // pred_fallthru
      _
    // Predicated region
    $region106: #{_lambda_.1} parent=1 // pred_check
      _
    $region107: #{_lambda_.1} parent=1 // pred_check_branch
      %186 = sbr.rel (0) target = $region109
    $region108: #{_lambda_.1} parent=1 // pred_region
      %187 = dma.done [#allocation14], 128
    $region109: #{_lambda_.1} parent=1 // pred_fallthru
      _
    // Predicated region
    $region110: #{_lambda_.1} parent=1 // pred_check
      _
    $region111: #{_lambda_.1} parent=1 // pred_check_branch
      %189 = sbr.rel (0) target = $region113
    $region112: #{_lambda_.1} parent=1 // pred_region
      %190 = dma.done [#allocation17], 2048
    $region113: #{_lambda_.1} parent=1 // pred_fallthru
      _
    %v192 = vld [vmem:[%s0] sm:$0xff]
    %v193 = vlaneseq
    %v194 = vshrl.u32 %v193, 7
    %vm195 = vcmp.lt.s32.totalorder %v194, 0
    %v196 = vsub.s32 0, %v194
    %v197 = vsel %vm195, %v196, %v194
    %v198 = vshrl.u32 %v197, 2
    %v199 = vand.u32 %v197, 3
    %v200 = vsub.s32 0, %v199
    %v201 = vsel %vm195, %v200, %v199
    %vm202 = vcmp.ne.s32.totalorder %v201, 0
    %vm203 = vcmp.lt.s32.totalorder %v201, 0
    %vm204 = vmand %vm203, %vm202
    %v205 = vadd.s32 %v201, 4
    %v206 = vsel %vm204, %v205, %v201
    %vm207 = vcmp.ne.s32.totalorder %v206, 0
    %v208 = vrot.slane %v192, 7
    %v209 = vsel %vm207, %v208, 0.0
    %vm210 = vcmp.ne.s32.totalorder %v206, 3
    %v211 = vrot.slane %v192, 1
    %v212 = vsel %vm210, %v211, 0.0
    %214 = vrot.lane.b32.xlu0 %v192, 32
    %v215 = vpop.permute.xlu0 %214
    %218 = vrot.lane.b32.xlu0 %v212, 64
    %v219 = vpop.permute.xlu0 %218
    %vm221 = vcmask 261120
    %v222 = vsel %vm221, %v209, %v215
    %vm223 = vcmask 523264
    %v224 = vsel %vm223, %v222, %v219
    %v225 = vpack.c.bf16 %v224, %v224
    %v226 = vld [vmem:[%s1] sm:$0xf]
    %v227 = vld [vmem:[%s1 + $0x4] sm:$0xf]
    %v228 = vld [vmem:[%s1 + $0x8] sm:$0xf]
    %v229 = vld [vmem:[%s1 + $0xc] sm:$0xf]
    %v230 = vld [vmem:[%s1 + $0x10] sm:$0xf]
    %v231 = vld [vmem:[%s1 + $0x14] sm:$0xf]
    %v232 = vld [vmem:[%s1 + $0x18] sm:$0xf]
    %v233 = vld [vmem:[%s1 + $0x1c] sm:$0xf]
    %v234 = vld [vmem:[%s1 + $0x20] sm:$0xf]
    %v235 = vld [vmem:[%s1 + $0x24] sm:$0xf]
    %v236 = vld [vmem:[%s1 + $0x28] sm:$0xf]
    %v237 = vld [vmem:[%s1 + $0x2c] sm:$0xf]
    %v250 = vunpack.c.l.b16 %v226
    %v251 = vunpack.c.l.b16 %v227
    %v252 = vunpack.c.l.b16 %v228
    %v253 = vunpack.c.l.b16 %v229
    %v254 = vunpack.c.l.b16 %v230
    %v255 = vunpack.c.l.b16 %v231
    %v256 = vunpack.c.l.b16 %v232
    %v257 = vunpack.c.l.b16 %v233
    %v258 = vunpack.c.l.b16 %v234
    %v259 = vunpack.c.l.b16 %v235
    %v260 = vunpack.c.l.b16 %v236
    %v261 = vunpack.c.l.b16 %v237
    %v262 = vpack.c.b16 %v251, %v250
    %v263 = vpack.c.b16 %v253, %v252
    %v264 = vpack.c.b16 %v255, %v254
    %v265 = vpack.c.b16 %v257, %v256
    %v266 = vpack.c.b16 %v259, %v258
    %v267 = vpack.c.b16 %v261, %v260
    %vm274 = vcmask 785408
    %v276 = vsel %vm274, %v225, 0
    %278 = vmatprep.subr.bf16.mxu0 0
    %279 = vmatpush1.bf16.msra.mxu0 0
    %280 = vmatprep.subr.bf16.mxu0 0
    %281 = vmatpush1.bf16.msra.mxu0 0
    %282 = vmatprep.subr.bf16.mxu0 0
    %283 = vmatpush1.bf16.msra.mxu0 %v267
    %284 = vmatprep.subr.bf16.mxu0 0
    %285 = vmatpush1.bf16.msra.mxu0 %v266
    %286 = vmatprep.subr.bf16.mxu0 0
    %287 = vmatpush1.bf16.msra.mxu0 %v265
    %288 = vmatprep.subr.bf16.mxu0 0
    %289 = vmatpush1.bf16.msra.mxu0 %v264
    %290 = vmatprep.subr.bf16.mxu0 0
    %291 = vmatpush1.bf16.msra.mxu0 %v263
    %292 = vmatprep.subr.bf16.mxu0 0
    %293 = vmatpush1.bf16.msra.mxu0 %v262
    %294 = vmatprep.subr.bf16.mxu0 0
    %295 = vmatpush2.bf16.msra.mxu0 0
    %296 = vmatprep.subr.bf16.mxu0 0
    %297 = vmatpush2.bf16.msra.mxu0 0
    %298 = vmatprep.subr.bf16.mxu0 0
    %299 = vmatpush2.bf16.msra.mxu0 0
    %300 = vmatprep.subr.bf16.mxu0 0
    %301 = vmatpush2.bf16.msra.mxu0 0
    %302 = vmatprep.subr.bf16.mxu0 0
    %303 = vmatpush2.bf16.msra.mxu0 0
    %304 = vmatprep.subr.bf16.mxu0 0
    %305 = vmatpush2.bf16.msra.mxu0 0
    %306 = vmatprep.subr.bf16.mxu0 0
    %307 = vmatpush2.bf16.msra.mxu0 0
    %308 = vmatprep.subr.bf16.mxu0 0
    %309 = vmatpush2.bf16.msra.mxu0 0
    %310 = vmatprep.mubr.bf16.mxu0 0
    %311 = vmatmul.mubr.bf16.gmra.mxu0 %v276
    %v312 = vpop.f32.mrf.mxu0
    %v313 = vadd.f32 0.0, %v312
    %v314 = vpop.f32.mrf.mxu0
    %v315 = vpop.f32.mrf.mxu0
    %v316 = vpop.f32.mrf.mxu0
    %317 = vdwg.mxu0
    %v318 = vmax.f32 %v313, 0.0
    %v319 = vld [vmem:[#allocation2] sm:$0xf]
    %v320 = vld [vmem:[#allocation2 + $0x4] sm:$0xf]
    %v321 = vpack.c.bf16 %v318, %v318
    %v324 = vunpack.c.l.b16 %v319
    %v325 = vunpack.c.l.b16 %v320
    %v326 = vpack.c.b16 %v325, %v324
    %vm327 = vcmask 64512
    %v329 = vsel %vm327, %v326, 0
    %vm331 = vcmask 1043456
    %v333 = vsel %vm331, %v321, 0
    %335 = vmatprep.subr.bf16.mxu0 0
    %336 = vmatpush1.bf16.msra.mxu0 0
    %337 = vmatprep.subr.bf16.mxu0 0
    %338 = vmatpush1.bf16.msra.mxu0 0
    %339 = vmatprep.subr.bf16.mxu0 0
    %340 = vmatpush1.bf16.msra.mxu0 0
    %341 = vmatprep.subr.bf16.mxu0 0
    %342 = vmatpush1.bf16.msra.mxu0 0
    %343 = vmatprep.subr.bf16.mxu0 0
    %344 = vmatpush1.bf16.msra.mxu0 0
    %345 = vmatprep.subr.bf16.mxu0 0
    %346 = vmatpush1.bf16.msra.mxu0 0
    %347 = vmatprep.subr.bf16.mxu0 0
    %348 = vmatpush1.bf16.msra.mxu0 0
    %349 = vmatprep.subr.bf16.mxu0 0
    %350 = vmatpush1.bf16.msra.mxu0 %v333
    %351 = vmatprep.subr.bf16.mxu0 0
    %352 = vmatpush2.bf16.msra.mxu0 0
    %353 = vmatprep.subr.bf16.mxu0 0
    %354 = vmatpush2.bf16.msra.mxu0 0
    %355 = vmatprep.subr.bf16.mxu0 0
    %356 = vmatpush2.bf16.msra.mxu0 0
    %357 = vmatprep.subr.bf16.mxu0 0
    %358 = vmatpush2.bf16.msra.mxu0 0
    %359 = vmatprep.subr.bf16.mxu0 0
    %360 = vmatpush2.bf16.msra.mxu0 0
    %361 = vmatprep.subr.bf16.mxu0 0
    %362 = vmatpush2.bf16.msra.mxu0 0
    %363 = vmatprep.subr.bf16.mxu0 0
    %364 = vmatpush2.bf16.msra.mxu0 0
    %365 = vmatprep.subr.bf16.mxu0 0
    %366 = vmatpush2.bf16.msra.mxu0 0
    %367 = vmatprep.mubr.bf16.mxu0 0
    %368 = vmatmul.mubr.bf16.gmra.mxu0 %v329
    %v369 = vpop.f32.mrf.mxu0
    %v370 = vadd.f32 0.0, %v369
    %v371 = vpop.f32.mrf.mxu0
    %v372 = vpop.f32.mrf.mxu0
    %v373 = vadd.f32 0.0, %v372
    %v374 = vpop.f32.mrf.mxu0
    %375 = vdwg.mxu0
    %v376 = vpack.c.bf16 %v373, %v370
    %v377 = vld [vmem:[#allocation4] sm:$0xff]
    %v378 = vld [vmem:[#allocation4 + $0x8] sm:$0xff]
    %v379 = vld [vmem:[#allocation4 + $0x10] sm:$0xff]
    %v380 = vld [vmem:[#allocation4 + $0x18] sm:$0xff]
    %v381 = vld [vmem:[#allocation4 + $0x20] sm:$0xff]
    %v382 = vld [vmem:[#allocation4 + $0x28] sm:$0xff]
    %v383 = vld [vmem:[#allocation4 + $0x30] sm:$0xff]
    %v384 = vld [vmem:[#allocation4 + $0x38] sm:$0xff]
    %v385 = vld [vmem:[#allocation4 + $0x40] sm:$0xff]
    %v386 = vld [vmem:[#allocation4 + $0x48] sm:$0xff]
    %v387 = vld [vmem:[#allocation4 + $0x50] sm:$0xff]
    %v388 = vld [vmem:[#allocation4 + $0x58] sm:$0xff]
    %v389 = vld [vmem:[#allocation4 + $0x60] sm:$0xff]
    %v390 = vld [vmem:[#allocation4 + $0x68] sm:$0xff]
    %v391 = vld [vmem:[#allocation4 + $0x70] sm:$0xff]
    %v392 = vld [vmem:[#allocation4 + $0x78] sm:$0xff]
    %v409 = vunpack.c.l.b16 %v377
    %v410 = vunpack.c.h.b16 %v377
    %v411 = vunpack.c.l.b16 %v378
    %v412 = vunpack.c.h.b16 %v378
    %v413 = vunpack.c.l.b16 %v379
    %v414 = vunpack.c.h.b16 %v379
    %v415 = vunpack.c.l.b16 %v380
    %v416 = vunpack.c.h.b16 %v380
    %v417 = vunpack.c.l.b16 %v381
    %v418 = vunpack.c.h.b16 %v381
    %v419 = vunpack.c.l.b16 %v382
    %v420 = vunpack.c.h.b16 %v382
    %v421 = vunpack.c.l.b16 %v383
    %v422 = vunpack.c.h.b16 %v383
    %v423 = vunpack.c.l.b16 %v384
    %v424 = vunpack.c.h.b16 %v384
    %v425 = vunpack.c.l.b16 %v385
    %v426 = vunpack.c.h.b16 %v385
    %v427 = vunpack.c.l.b16 %v386
    %v428 = vunpack.c.h.b16 %v386
    %v429 = vunpack.c.l.b16 %v387
    %v430 = vunpack.c.h.b16 %v387
    %v431 = vunpack.c.l.b16 %v388
    %v432 = vunpack.c.h.b16 %v388
    %v433 = vunpack.c.l.b16 %v389
    %v434 = vunpack.c.h.b16 %v389
    %v435 = vunpack.c.l.b16 %v390
    %v436 = vunpack.c.h.b16 %v390
    %v437 = vunpack.c.l.b16 %v391
    %v438 = vunpack.c.h.b16 %v391
    %v439 = vunpack.c.l.b16 %v392
    %v440 = vunpack.c.h.b16 %v392
    %v441 = vpack.c.b16 %v411, %v409
    %v442 = vpack.c.b16 %v412, %v410
    %v443 = vpack.c.b16 %v415, %v413
    %v444 = vpack.c.b16 %v416, %v414
    %v445 = vpack.c.b16 %v419, %v417
    %v446 = vpack.c.b16 %v420, %v418
    %v447 = vpack.c.b16 %v423, %v421
    %v448 = vpack.c.b16 %v424, %v422
    %v449 = vpack.c.b16 %v427, %v425
    %v450 = vpack.c.b16 %v428, %v426
    %v451 = vpack.c.b16 %v431, %v429
    %v452 = vpack.c.b16 %v432, %v430
    %v453 = vpack.c.b16 %v435, %v433
    %v454 = vpack.c.b16 %v436, %v434
    %v455 = vpack.c.b16 %v439, %v437
    %v456 = vpack.c.b16 %v440, %v438
    %473 = vmatprep.subr.bf16.mxu0 %v456
    %474 = vmatpush1.bf16.msra.mxu0 %v455
    %475 = vmatprep.subr.bf16.mxu0 %v454
    %476 = vmatpush1.bf16.msra.mxu0 %v453
    %477 = vmatprep.subr.bf16.mxu0 %v452
    %478 = vmatpush1.bf16.msra.mxu0 %v451
    %479 = vmatprep.subr.bf16.mxu0 %v450
    %480 = vmatpush1.bf16.msra.mxu0 %v449
    %481 = vmatprep.subr.bf16.mxu0 %v448
    %482 = vmatpush1.bf16.msra.mxu0 %v447
    %483 = vmatprep.subr.bf16.mxu0 %v446
    %484 = vmatpush1.bf16.msra.mxu0 %v445
    %485 = vmatprep.subr.bf16.mxu0 %v444
    %486 = vmatpush1.bf16.msra.mxu0 %v443
    %487 = vmatprep.subr.bf16.mxu0 %v442
    %488 = vmatpush1.bf16.msra.mxu0 %v441
    %489 = vmatprep.subr.bf16.mxu0 0
    %490 = vmatpush2.bf16.msra.mxu0 0
    %491 = vmatprep.subr.bf16.mxu0 0
    %492 = vmatpush2.bf16.msra.mxu0 0
    %493 = vmatprep.subr.bf16.mxu0 0
    %494 = vmatpush2.bf16.msra.mxu0 0
    %495 = vmatprep.subr.bf16.mxu0 0
    %496 = vmatpush2.bf16.msra.mxu0 0
    %497 = vmatprep.subr.bf16.mxu0 0
    %498 = vmatpush2.bf16.msra.mxu0 0
    %499 = vmatprep.subr.bf16.mxu0 0
    %500 = vmatpush2.bf16.msra.mxu0 0
    %501 = vmatprep.subr.bf16.mxu0 0
    %502 = vmatpush2.bf16.msra.mxu0 0
    %503 = vmatprep.subr.bf16.mxu0 0
    %504 = vmatpush2.bf16.msra.mxu0 0
    %505 = vmatprep.mubr.bf16.mxu0 0
    %506 = vmatmul.mubr.bf16.gmra.mxu0 %v376
    %v507 = vpop.f32.mrf.mxu0
    %v508 = vadd.f32 0.0, %v507
    %v509 = vpop.f32.mrf.mxu0
    %v510 = vadd.f32 0.0, %v509
    %v511 = vpop.f32.mrf.mxu0
    %v512 = vadd.f32 0.0, %v511
    %v513 = vpop.f32.mrf.mxu0
    %v514 = vadd.f32 0.0, %v513
    %515 = vdwg.mxu0
    %v516 = vadd.s32 %v194, 8
    %vm517 = vcmp.lt.s32.totalorder %v194, 0
    %v518 = vsub.s32 0, %v194
    %v519 = vsel %vm517, %v518, %v194
    %v520 = vshrl.u32 %v519, 3
    %v521 = vand.u32 %v519, 7
    %v522 = vsub.s32 0, %v521
    %v523 = vsel %vm517, %v522, %v521
    %vm524 = vcmp.lt.s32.totalorder %v516, 0
    %v525 = vsub.s32 0, %v516
    %v526 = vsel %vm524, %v525, %v516
    %v527 = vshrl.u32 %v526, 3
    %v528 = vand.u32 %v526, 7
    %v529 = vsub.s32 0, %v528
    %v530 = vsel %vm524, %v529, %v528
    %vm531 = vcmp.ne.s32.totalorder %v523, 0
    %vm532 = vcmp.ne.s32.totalorder %v530, 0
    %vm533 = vcmp.lt.s32.totalorder %v523, 0
    %vm534 = vcmp.lt.s32.totalorder %v530, 0
    %vm535 = vmand %vm533, %vm531
    %vm536 = vmand %vm534, %vm532
    %v537 = vadd.s32 %v523, 8
    %v538 = vadd.s32 %v530, 8
    %v539 = vsel %vm535, %v537, %v523
    %v540 = vsel %vm536, %v538, %v530
    %vm541 = vcmp.ne.s32.totalorder %v539, 0
    %vm542 = vcmp.ne.s32.totalorder %v540, 0
    %v543 = vrot.slane %v508, 7
    %v544 = vrot.slane %v510, 7
    %v545 = vrot.slane %v512, 7
    %v546 = vrot.slane %v514, 7
    %vm547 = vcmp.lt.s32.totalorder %v194, 1
    %v548 = vsel %vm547, %v543, %v545
    %v549 = vsel %vm547, %v544, %v546
    %v550 = vsel %vm547, %v545, %v543
    %v551 = vsel %vm547, %v546, %v544
    %v552 = vsel %vm541, %v550, 0.0
    %v553 = vsel %vm541, %v551, 0.0
    %v554 = vsel %vm542, %v548, 0.0
    %v555 = vsel %vm542, %v549, 0.0
    %vm556 = vcmp.ne.s32.totalorder %v539, 7
    %vm557 = vcmp.ne.s32.totalorder %v540, 7
    %v558 = vrot.slane %v508, 1
    %v559 = vrot.slane %v510, 1
    %v560 = vrot.slane %v512, 1
    %v561 = vrot.slane %v514, 1
    %vm562 = vcmp.lt.s32.totalorder %v194, 7
    %v563 = vsel %vm562, %v558, %v560
    %v564 = vsel %vm562, %v559, %v561
    %v565 = vsel %vm562, %v560, %v558
    %v566 = vsel %vm562, %v561, %v559
    %v567 = vsel %vm556, %v563, 0.0
    %v568 = vsel %vm556, %v564, 0.0
    %v569 = vsel %vm557, %v565, 0.0
    %v570 = vsel %vm557, %v566, 0.0
    %v571 = vpack.c.bf16 %v554, %v552
    %v572 = vpack.c.bf16 %v555, %v553
    %v573 = vpack.c.bf16 %v512, %v508
    %v574 = vpack.c.bf16 %v514, %v510
    %v575 = vpack.c.bf16 %v569, %v567
    %v576 = vpack.c.bf16 %v570, %v568
    %v577 = vld [vmem:[#allocation6] sm:$0xff]
    %v578 = vld [vmem:[#allocation6 + $0x8] sm:$0xff]
    %v579 = vld [vmem:[#allocation6 + $0x10] sm:$0xff]
    %v580 = vld [vmem:[#allocation6 + $0x18] sm:$0xff]
    %v581 = vld [vmem:[#allocation6 + $0x20] sm:$0xff]
    %v582 = vld [vmem:[#allocation6 + $0x28] sm:$0xff]
    %v583 = vld [vmem:[#allocation6 + $0x30] sm:$0xff]
    %v584 = vld [vmem:[#allocation6 + $0x38] sm:$0xff]
    %v585 = vld [vmem:[#allocation6 + $0x40] sm:$0xff]
    %v586 = vld [vmem:[#allocation6 + $0x48] sm:$0xff]
    %v587 = vld [vmem:[#allocation6 + $0x50] sm:$0xff]
    %v588 = vld [vmem:[#allocation6 + $0x58] sm:$0xff]
    %v589 = vld [vmem:[#allocation6 + $0x60] sm:$0xff]
    %v590 = vld [vmem:[#allocation6 + $0x68] sm:$0xff]
    %v591 = vld [vmem:[#allocation6 + $0x70] sm:$0xff]
    %v592 = vld [vmem:[#allocation6 + $0x78] sm:$0xff]
    %v593 = vld [vmem:[#allocation6 + $0x80] sm:$0xff]
    %v594 = vld [vmem:[#allocation6 + $0x88] sm:$0xff]
    %v595 = vld [vmem:[#allocation6 + $0x90] sm:$0xff]
    %v596 = vld [vmem:[#allocation6 + $0x98] sm:$0xff]
    %v597 = vld [vmem:[#allocation6 + $0xa0] sm:$0xff]
    %v598 = vld [vmem:[#allocation6 + $0xa8] sm:$0xff]
    %v599 = vld [vmem:[#allocation6 + $0xb0] sm:$0xff]
    %v600 = vld [vmem:[#allocation6 + $0xb8] sm:$0xff]
    %v601 = vld [vmem:[#allocation6 + $0xc0] sm:$0xff]
    %v602 = vld [vmem:[#allocation6 + $0xc8] sm:$0xff]
    %v603 = vld [vmem:[#allocation6 + $0xd0] sm:$0xff]
    %v604 = vld [vmem:[#allocation6 + $0xd8] sm:$0xff]
    %v605 = vld [vmem:[#allocation6 + $0xe0] sm:$0xff]
    %v606 = vld [vmem:[#allocation6 + $0xe8] sm:$0xff]
    %v607 = vld [vmem:[#allocation6 + $0xf0] sm:$0xff]
    %v608 = vld [vmem:[#allocation6 + $0xf8] sm:$0xff]
    %v609 = vld [vmem:[#allocation6 + $0x100] sm:$0xff]
    %v610 = vld [vmem:[#allocation6 + $0x108] sm:$0xff]
    %v611 = vld [vmem:[#allocation6 + $0x110] sm:$0xff]
    %v612 = vld [vmem:[#allocation6 + $0x118] sm:$0xff]
    %v613 = vld [vmem:[#allocation6 + $0x120] sm:$0xff]
    %v614 = vld [vmem:[#allocation6 + $0x128] sm:$0xff]
    %v615 = vld [vmem:[#allocation6 + $0x130] sm:$0xff]
    %v616 = vld [vmem:[#allocation6 + $0x138] sm:$0xff]
    %v617 = vld [vmem:[#allocation6 + $0x140] sm:$0xff]
    %v618 = vld [vmem:[#allocation6 + $0x148] sm:$0xff]
    %v619 = vld [vmem:[#allocation6 + $0x150] sm:$0xff]
    %v620 = vld [vmem:[#allocation6 + $0x158] sm:$0xff]
    %v621 = vld [vmem:[#allocation6 + $0x160] sm:$0xff]
    %v622 = vld [vmem:[#allocation6 + $0x168] sm:$0xff]
    %v623 = vld [vmem:[#allocation6 + $0x170] sm:$0xff]
    %v624 = vld [vmem:[#allocation6 + $0x178] sm:$0xff]
    %v625 = vld [vmem:[#allocation6 + $0x180] sm:$0xff]
    %v626 = vld [vmem:[#allocation6 + $0x188] sm:$0xff]
    %v627 = vld [vmem:[#allocation6 + $0x190] sm:$0xff]
    %v628 = vld [vmem:[#allocation6 + $0x198] sm:$0xff]
    %v629 = vld [vmem:[#allocation6 + $0x1a0] sm:$0xff]
    %v630 = vld [vmem:[#allocation6 + $0x1a8] sm:$0xff]
    %v631 = vld [vmem:[#allocation6 + $0x1b0] sm:$0xff]
    %v632 = vld [vmem:[#allocation6 + $0x1b8] sm:$0xff]
    %v633 = vld [vmem:[#allocation6 + $0x1c0] sm:$0xff]
    %v634 = vld [vmem:[#allocation6 + $0x1c8] sm:$0xff]
    %v635 = vld [vmem:[#allocation6 + $0x1d0] sm:$0xff]
    %v636 = vld [vmem:[#allocation6 + $0x1d8] sm:$0xff]
    %v637 = vld [vmem:[#allocation6 + $0x1e0] sm:$0xff]
    %v638 = vld [vmem:[#allocation6 + $0x1e8] sm:$0xff]
    %v639 = vld [vmem:[#allocation6 + $0x1f0] sm:$0xff]
    %v640 = vld [vmem:[#allocation6 + $0x1f8] sm:$0xff]
    %v641 = vld [vmem:[#allocation6 + $0x200] sm:$0xff]
    %v642 = vld [vmem:[#allocation6 + $0x208] sm:$0xff]
    %v643 = vld [vmem:[#allocation6 + $0x210] sm:$0xff]
    %v644 = vld [vmem:[#allocation6 + $0x218] sm:$0xff]
    %v645 = vld [vmem:[#allocation6 + $0x220] sm:$0xff]
    %v646 = vld [vmem:[#allocation6 + $0x228] sm:$0xff]
    %v647 = vld [vmem:[#allocation6 + $0x230] sm:$0xff]
    %v648 = vld [vmem:[#allocation6 + $0x238] sm:$0xff]
    %v649 = vld [vmem:[#allocation6 + $0x240] sm:$0xff]
    %v650 = vld [vmem:[#allocation6 + $0x248] sm:$0xff]
    %v651 = vld [vmem:[#allocation6 + $0x250] sm:$0xff]
    %v652 = vld [vmem:[#allocation6 + $0x258] sm:$0xff]
    %v653 = vld [vmem:[#allocation6 + $0x260] sm:$0xff]
    %v654 = vld [vmem:[#allocation6 + $0x268] sm:$0xff]
    %v655 = vld [vmem:[#allocation6 + $0x270] sm:$0xff]
    %v656 = vld [vmem:[#allocation6 + $0x278] sm:$0xff]
    %v657 = vld [vmem:[#allocation6 + $0x280] sm:$0xff]
    %v658 = vld [vmem:[#allocation6 + $0x288] sm:$0xff]
    %v659 = vld [vmem:[#allocation6 + $0x290] sm:$0xff]
    %v660 = vld [vmem:[#allocation6 + $0x298] sm:$0xff]
    %v661 = vld [vmem:[#allocation6 + $0x2a0] sm:$0xff]
    %v662 = vld [vmem:[#allocation6 + $0x2a8] sm:$0xff]
    %v663 = vld [vmem:[#allocation6 + $0x2b0] sm:$0xff]
    %v664 = vld [vmem:[#allocation6 + $0x2b8] sm:$0xff]
    %v665 = vld [vmem:[#allocation6 + $0x2c0] sm:$0xff]
    %v666 = vld [vmem:[#allocation6 + $0x2c8] sm:$0xff]
    %v667 = vld [vmem:[#allocation6 + $0x2d0] sm:$0xff]
    %v668 = vld [vmem:[#allocation6 + $0x2d8] sm:$0xff]
    %v669 = vld [vmem:[#allocation6 + $0x2e0] sm:$0xff]
    %v670 = vld [vmem:[#allocation6 + $0x2e8] sm:$0xff]
    %v671 = vld [vmem:[#allocation6 + $0x2f0] sm:$0xff]
    %v672 = vld [vmem:[#allocation6 + $0x2f8] sm:$0xff]
    %v769 = vunpack.c.l.b16 %v577
    %v770 = vunpack.c.h.b16 %v577
    %v771 = vunpack.c.l.b16 %v578
    %v772 = vunpack.c.h.b16 %v578
    %v773 = vunpack.c.l.b16 %v579
    %v774 = vunpack.c.h.b16 %v579
    %v775 = vunpack.c.l.b16 %v580
    %v776 = vunpack.c.h.b16 %v580
    %v777 = vunpack.c.l.b16 %v581
    %v778 = vunpack.c.h.b16 %v581
    %v779 = vunpack.c.l.b16 %v582
    %v780 = vunpack.c.h.b16 %v582
    %v781 = vunpack.c.l.b16 %v583
    %v782 = vunpack.c.h.b16 %v583
    %v783 = vunpack.c.l.b16 %v584
    %v784 = vunpack.c.h.b16 %v584
    %v785 = vunpack.c.l.b16 %v585
    %v786 = vunpack.c.h.b16 %v585
    %v787 = vunpack.c.l.b16 %v586
    %v788 = vunpack.c.h.b16 %v586
    %v789 = vunpack.c.l.b16 %v587
    %v790 = vunpack.c.h.b16 %v587
    %v791 = vunpack.c.l.b16 %v588
    %v792 = vunpack.c.h.b16 %v588
    %v793 = vunpack.c.l.b16 %v589
    %v794 = vunpack.c.h.b16 %v589
    %v795 = vunpack.c.l.b16 %v590
    %v796 = vunpack.c.h.b16 %v590
    %v797 = vunpack.c.l.b16 %v591
    %v798 = vunpack.c.h.b16 %v591
    %v799 = vunpack.c.l.b16 %v592
    %v800 = vunpack.c.h.b16 %v592
    %v801 = vunpack.c.l.b16 %v593
    %v802 = vunpack.c.h.b16 %v593
    %v803 = vunpack.c.l.b16 %v594
    %v804 = vunpack.c.h.b16 %v594
    %v805 = vunpack.c.l.b16 %v595
    %v806 = vunpack.c.h.b16 %v595
    %v807 = vunpack.c.l.b16 %v596
    %v808 = vunpack.c.h.b16 %v596
    %v809 = vunpack.c.l.b16 %v597
    %v810 = vunpack.c.h.b16 %v597
    %v811 = vunpack.c.l.b16 %v598
    %v812 = vunpack.c.h.b16 %v598
    %v813 = vunpack.c.l.b16 %v599
    %v814 = vunpack.c.h.b16 %v599
    %v815 = vunpack.c.l.b16 %v600
    %v816 = vunpack.c.h.b16 %v600
    %v817 = vunpack.c.l.b16 %v601
    %v818 = vunpack.c.h.b16 %v601
    %v819 = vunpack.c.l.b16 %v602
    %v820 = vunpack.c.h.b16 %v602
    %v821 = vunpack.c.l.b16 %v603
    %v822 = vunpack.c.h.b16 %v603
    %v823 = vunpack.c.l.b16 %v604
    %v824 = vunpack.c.h.b16 %v604
    %v825 = vunpack.c.l.b16 %v605
    %v826 = vunpack.c.h.b16 %v605
    %v827 = vunpack.c.l.b16 %v606
    %v828 = vunpack.c.h.b16 %v606
    %v829 = vunpack.c.l.b16 %v607
    %v830 = vunpack.c.h.b16 %v607
    %v831 = vunpack.c.l.b16 %v608
    %v832 = vunpack.c.h.b16 %v608
    %v833 = vunpack.c.l.b16 %v609
    %v834 = vunpack.c.h.b16 %v609
    %v835 = vunpack.c.l.b16 %v610
    %v836 = vunpack.c.h.b16 %v610
    %v837 = vunpack.c.l.b16 %v611
    %v838 = vunpack.c.h.b16 %v611
    %v839 = vunpack.c.l.b16 %v612
    %v840 = vunpack.c.h.b16 %v612
    %v841 = vunpack.c.l.b16 %v613
    %v842 = vunpack.c.h.b16 %v613
    %v843 = vunpack.c.l.b16 %v614
    %v844 = vunpack.c.h.b16 %v614
    %v845 = vunpack.c.l.b16 %v615
    %v846 = vunpack.c.h.b16 %v615
    %v847 = vunpack.c.l.b16 %v616
    %v848 = vunpack.c.h.b16 %v616
    %v849 = vunpack.c.l.b16 %v617
    %v850 = vunpack.c.h.b16 %v617
    %v851 = vunpack.c.l.b16 %v618
    %v852 = vunpack.c.h.b16 %v618
    %v853 = vunpack.c.l.b16 %v619
    %v854 = vunpack.c.h.b16 %v619
    %v855 = vunpack.c.l.b16 %v620
    %v856 = vunpack.c.h.b16 %v620
    %v857 = vunpack.c.l.b16 %v621
    %v858 = vunpack.c.h.b16 %v621
    %v859 = vunpack.c.l.b16 %v622
    %v860 = vunpack.c.h.b16 %v622
    %v861 = vunpack.c.l.b16 %v623
    %v862 = vunpack.c.h.b16 %v623
    %v863 = vunpack.c.l.b16 %v624
    %v864 = vunpack.c.h.b16 %v624
    %v865 = vunpack.c.l.b16 %v625
    %v866 = vunpack.c.h.b16 %v625
    %v867 = vunpack.c.l.b16 %v626
    %v868 = vunpack.c.h.b16 %v626
    %v869 = vunpack.c.l.b16 %v627
    %v870 = vunpack.c.h.b16 %v627
    %v871 = vunpack.c.l.b16 %v628
    %v872 = vunpack.c.h.b16 %v628
    %v873 = vunpack.c.l.b16 %v629
    %v874 = vunpack.c.h.b16 %v629
    %v875 = vunpack.c.l.b16 %v630
    %v876 = vunpack.c.h.b16 %v630
    %v877 = vunpack.c.l.b16 %v631
    %v878 = vunpack.c.h.b16 %v631
    %v879 = vunpack.c.l.b16 %v632
    %v880 = vunpack.c.h.b16 %v632
    %v881 = vunpack.c.l.b16 %v633
    %v882 = vunpack.c.h.b16 %v633
    %v883 = vunpack.c.l.b16 %v634
    %v884 = vunpack.c.h.b16 %v634
    %v885 = vunpack.c.l.b16 %v635
    %v886 = vunpack.c.h.b16 %v635
    %v887 = vunpack.c.l.b16 %v636
    %v888 = vunpack.c.h.b16 %v636
    %v889 = vunpack.c.l.b16 %v637
    %v890 = vunpack.c.h.b16 %v637
    %v891 = vunpack.c.l.b16 %v638
    %v892 = vunpack.c.h.b16 %v638
    %v893 = vunpack.c.l.b16 %v639
    %v894 = vunpack.c.h.b16 %v639
    %v895 = vunpack.c.l.b16 %v640
    %v896 = vunpack.c.h.b16 %v640
    %v897 = vunpack.c.l.b16 %v641
    %v898 = vunpack.c.h.b16 %v641
    %v899 = vunpack.c.l.b16 %v642
    %v900 = vunpack.c.h.b16 %v642
    %v901 = vunpack.c.l.b16 %v643
    %v902 = vunpack.c.h.b16 %v643
    %v903 = vunpack.c.l.b16 %v644
    %v904 = vunpack.c.h.b16 %v644
    %v905 = vunpack.c.l.b16 %v645
    %v906 = vunpack.c.h.b16 %v645
    %v907 = vunpack.c.l.b16 %v646
    %v908 = vunpack.c.h.b16 %v646
    %v909 = vunpack.c.l.b16 %v647
    %v910 = vunpack.c.h.b16 %v647
    %v911 = vunpack.c.l.b16 %v648
    %v912 = vunpack.c.h.b16 %v648
    %v913 = vunpack.c.l.b16 %v649
    %v914 = vunpack.c.h.b16 %v649
    %v915 = vunpack.c.l.b16 %v650
    %v916 = vunpack.c.h.b16 %v650
    %v917 = vunpack.c.l.b16 %v651
    %v918 = vunpack.c.h.b16 %v651
    %v919 = vunpack.c.l.b16 %v652
    %v920 = vunpack.c.h.b16 %v652
    %v921 = vunpack.c.l.b16 %v653
    %v922 = vunpack.c.h.b16 %v653
    %v923 = vunpack.c.l.b16 %v654
    %v924 = vunpack.c.h.b16 %v654
    %v925 = vunpack.c.l.b16 %v655
    %v926 = vunpack.c.h.b16 %v655
    %v927 = vunpack.c.l.b16 %v656
    %v928 = vunpack.c.h.b16 %v656
    %v929 = vunpack.c.l.b16 %v657
    %v930 = vunpack.c.h.b16 %v657
    %v931 = vunpack.c.l.b16 %v658
    %v932 = vunpack.c.h.b16 %v658
    %v933 = vunpack.c.l.b16 %v659
    %v934 = vunpack.c.h.b16 %v659
    %v935 = vunpack.c.l.b16 %v660
    %v936 = vunpack.c.h.b16 %v660
    %v937 = vunpack.c.l.b16 %v661
    %v938 = vunpack.c.h.b16 %v661
    %v939 = vunpack.c.l.b16 %v662
    %v940 = vunpack.c.h.b16 %v662
    %v941 = vunpack.c.l.b16 %v663
    %v942 = vunpack.c.h.b16 %v663
    %v943 = vunpack.c.l.b16 %v664
    %v944 = vunpack.c.h.b16 %v664
    %v945 = vunpack.c.l.b16 %v665
    %v946 = vunpack.c.h.b16 %v665
    %v947 = vunpack.c.l.b16 %v666
    %v948 = vunpack.c.h.b16 %v666
    %v949 = vunpack.c.l.b16 %v667
    %v950 = vunpack.c.h.b16 %v667
    %v951 = vunpack.c.l.b16 %v668
    %v952 = vunpack.c.h.b16 %v668
    %v953 = vunpack.c.l.b16 %v669
    %v954 = vunpack.c.h.b16 %v669
    %v955 = vunpack.c.l.b16 %v670
    %v956 = vunpack.c.h.b16 %v670
    %v957 = vunpack.c.l.b16 %v671
    %v958 = vunpack.c.h.b16 %v671
    %v959 = vunpack.c.l.b16 %v672
    %v960 = vunpack.c.h.b16 %v672
    %v961 = vpack.c.b16 %v771, %v769
    %v962 = vpack.c.b16 %v772, %v770
    %v963 = vpack.c.b16 %v775, %v773
    %v964 = vpack.c.b16 %v776, %v774
    %v965 = vpack.c.b16 %v779, %v777
    %v966 = vpack.c.b16 %v780, %v778
    %v967 = vpack.c.b16 %v783, %v781
    %v968 = vpack.c.b16 %v784, %v782
    %v969 = vpack.c.b16 %v787, %v785
    %v970 = vpack.c.b16 %v788, %v786
    %v971 = vpack.c.b16 %v791, %v789
    %v972 = vpack.c.b16 %v792, %v790
    %v973 = vpack.c.b16 %v795, %v793
    %v974 = vpack.c.b16 %v796, %v794
    %v975 = vpack.c.b16 %v799, %v797
    %v976 = vpack.c.b16 %v800, %v798
    %v977 = vpack.c.b16 %v803, %v801
    %v978 = vpack.c.b16 %v804, %v802
    %v979 = vpack.c.b16 %v807, %v805
    %v980 = vpack.c.b16 %v808, %v806
    %v981 = vpack.c.b16 %v811, %v809
    %v982 = vpack.c.b16 %v812, %v810
    %v983 = vpack.c.b16 %v815, %v813
    %v984 = vpack.c.b16 %v816, %v814
    %v985 = vpack.c.b16 %v819, %v817
    %v986 = vpack.c.b16 %v820, %v818
    %v987 = vpack.c.b16 %v823, %v821
    %v988 = vpack.c.b16 %v824, %v822
    %v989 = vpack.c.b16 %v827, %v825
    %v990 = vpack.c.b16 %v828, %v826
    %v991 = vpack.c.b16 %v831, %v829
    %v992 = vpack.c.b16 %v832, %v830
    %v993 = vpack.c.b16 %v835, %v833
    %v994 = vpack.c.b16 %v836, %v834
    %v995 = vpack.c.b16 %v839, %v837
    %v996 = vpack.c.b16 %v840, %v838
    %v997 = vpack.c.b16 %v843, %v841
    %v998 = vpack.c.b16 %v844, %v842
    %v999 = vpack.c.b16 %v847, %v845
    %v1000 = vpack.c.b16 %v848, %v846
    %v1001 = vpack.c.b16 %v851, %v849
    %v1002 = vpack.c.b16 %v852, %v850
    %v1003 = vpack.c.b16 %v855, %v853
    %v1004 = vpack.c.b16 %v856, %v854
    %v1005 = vpack.c.b16 %v859, %v857
    %v1006 = vpack.c.b16 %v860, %v858
    %v1007 = vpack.c.b16 %v863, %v861
    %v1008 = vpack.c.b16 %v864, %v862
    %v1009 = vpack.c.b16 %v867, %v865
    %v1010 = vpack.c.b16 %v868, %v866
    %v1011 = vpack.c.b16 %v871, %v869
    %v1012 = vpack.c.b16 %v872, %v870
    %v1013 = vpack.c.b16 %v875, %v873
    %v1014 = vpack.c.b16 %v876, %v874
    %v1015 = vpack.c.b16 %v879, %v877
    %v1016 = vpack.c.b16 %v880, %v878
    %v1017 = vpack.c.b16 %v883, %v881
    %v1018 = vpack.c.b16 %v884, %v882
    %v1019 = vpack.c.b16 %v887, %v885
    %v1020 = vpack.c.b16 %v888, %v886
    %v1021 = vpack.c.b16 %v891, %v889
    %v1022 = vpack.c.b16 %v892, %v890
    %v1023 = vpack.c.b16 %v895, %v893
    %v1024 = vpack.c.b16 %v896, %v894
    %v1025 = vpack.c.b16 %v899, %v897
    %v1026 = vpack.c.b16 %v900, %v898
    %v1027 = vpack.c.b16 %v903, %v901
    %v1028 = vpack.c.b16 %v904, %v902
    %v1029 = vpack.c.b16 %v907, %v905
    %v1030 = vpack.c.b16 %v908, %v906
    %v1031 = vpack.c.b16 %v911, %v909
    %v1032 = vpack.c.b16 %v912, %v910
    %v1033 = vpack.c.b16 %v915, %v913
    %v1034 = vpack.c.b16 %v916, %v914
    %v1035 = vpack.c.b16 %v919, %v917
    %v1036 = vpack.c.b16 %v920, %v918
    %v1037 = vpack.c.b16 %v923, %v921
    %v1038 = vpack.c.b16 %v924, %v922
    %v1039 = vpack.c.b16 %v927, %v925
    %v1040 = vpack.c.b16 %v928, %v926
    %v1041 = vpack.c.b16 %v931, %v929
    %v1042 = vpack.c.b16 %v932, %v930
    %v1043 = vpack.c.b16 %v935, %v933
    %v1044 = vpack.c.b16 %v936, %v934
    %v1045 = vpack.c.b16 %v939, %v937
    %v1046 = vpack.c.b16 %v940, %v938
    %v1047 = vpack.c.b16 %v943, %v941
    %v1048 = vpack.c.b16 %v944, %v942
    %v1049 = vpack.c.b16 %v947, %v945
    %v1050 = vpack.c.b16 %v948, %v946
    %v1051 = vpack.c.b16 %v951, %v949
    %v1052 = vpack.c.b16 %v952, %v950
    %v1053 = vpack.c.b16 %v955, %v953
    %v1054 = vpack.c.b16 %v956, %v954
    %v1055 = vpack.c.b16 %v959, %v957
    %v1056 = vpack.c.b16 %v960, %v958
    %1153 = vmatprep.subr.bf16.mxu0 %v976
    %1154 = vmatpush1.bf16.msra.mxu0 %v975
    %1155 = vmatprep.subr.bf16.mxu0 %v974
    %1156 = vmatpush1.bf16.msra.mxu0 %v973
    %1157 = vmatprep.subr.bf16.mxu0 %v972
    %1158 = vmatpush1.bf16.msra.mxu0 %v971
    %1159 = vmatprep.subr.bf16.mxu0 %v970
    %1160 = vmatpush1.bf16.msra.mxu0 %v969
    %1161 = vmatprep.subr.bf16.mxu0 %v968
    %1162 = vmatpush1.bf16.msra.mxu0 %v967
    %1163 = vmatprep.subr.bf16.mxu0 %v966
    %1164 = vmatpush1.bf16.msra.mxu0 %v965
    %1165 = vmatprep.subr.bf16.mxu0 %v964
    %1166 = vmatpush1.bf16.msra.mxu0 %v963
    %1167 = vmatprep.subr.bf16.mxu0 %v962
    %1168 = vmatpush1.bf16.msra.mxu0 %v961
    %1169 = vmatprep.subr.bf16.mxu0 %v992
    %1170 = vmatpush2.bf16.msra.mxu0 %v991
    %1171 = vmatprep.subr.bf16.mxu0 %v990
    %1172 = vmatpush2.bf16.msra.mxu0 %v989
    %1173 = vmatprep.subr.bf16.mxu0 %v988
    %1174 = vmatpush2.bf16.msra.mxu0 %v987
    %1175 = vmatprep.subr.bf16.mxu0 %v986
    %1176 = vmatpush2.bf16.msra.mxu0 %v985
    %1177 = vmatprep.subr.bf16.mxu0 %v984
    %1178 = vmatpush2.bf16.msra.mxu0 %v983
    %1179 = vmatprep.subr.bf16.mxu0 %v982
    %1180 = vmatpush2.bf16.msra.mxu0 %v981
    %1181 = vmatprep.subr.bf16.mxu0 %v980
    %1182 = vmatpush2.bf16.msra.mxu0 %v979
    %1183 = vmatprep.subr.bf16.mxu0 %v978
    %1184 = vmatpush2.bf16.msra.mxu0 %v977
    %1185 = vmatprep.mubr.bf16.mxu0 %v572
    %1186 = vmatmul.mubr.bf16.gmra.mxu0 %v571
    %v1187 = vpop.f32.mrf.mxu0
    %v1188 = vadd.f32 0.0, %v1187
    %v1189 = vpop.f32.mrf.mxu0
    %v1190 = vadd.f32 0.0, %v1189
    %v1191 = vpop.f32.mrf.mxu0
    %v1192 = vadd.f32 0.0, %v1191
    %v1193 = vpop.f32.mrf.mxu0
    %v1194 = vadd.f32 0.0, %v1193
    %1195 = vdwg.mxu0
    %1196 = vmatprep.subr.bf16.mxu0 %v1008
    %1197 = vmatpush1.bf16.msra.mxu0 %v1007
    %1198 = vmatprep.subr.bf16.mxu0 %v1006
    %1199 = vmatpush1.bf16.msra.mxu0 %v1005
    %1200 = vmatprep.subr.bf16.mxu0 %v1004
    %1201 = vmatpush1.bf16.msra.mxu0 %v1003
    %1202 = vmatprep.subr.bf16.mxu0 %v1002
    %1203 = vmatpush1.bf16.msra.mxu0 %v1001
    %1204 = vmatprep.subr.bf16.mxu0 %v1000
    %1205 = vmatpush1.bf16.msra.mxu0 %v999
    %1206 = vmatprep.subr.bf16.mxu0 %v998
    %1207 = vmatpush1.bf16.msra.mxu0 %v997
    %1208 = vmatprep.subr.bf16.mxu0 %v996
    %1209 = vmatpush1.bf16.msra.mxu0 %v995
    %1210 = vmatprep.subr.bf16.mxu0 %v994
    %1211 = vmatpush1.bf16.msra.mxu0 %v993
    %1212 = vmatprep.subr.bf16.mxu0 %v1024
    %1213 = vmatpush2.bf16.msra.mxu0 %v1023
    %1214 = vmatprep.subr.bf16.mxu0 %v1022
    %1215 = vmatpush2.bf16.msra.mxu0 %v1021
    %1216 = vmatprep.subr.bf16.mxu0 %v1020
    %1217 = vmatpush2.bf16.msra.mxu0 %v1019
    %1218 = vmatprep.subr.bf16.mxu0 %v1018
    %1219 = vmatpush2.bf16.msra.mxu0 %v1017
    %1220 = vmatprep.subr.bf16.mxu0 %v1016
    %1221 = vmatpush2.bf16.msra.mxu0 %v1015
    %1222 = vmatprep.subr.bf16.mxu0 %v1014
    %1223 = vmatpush2.bf16.msra.mxu0 %v1013
    %1224 = vmatprep.subr.bf16.mxu0 %v1012
    %1225 = vmatpush2.bf16.msra.mxu0 %v1011
    %1226 = vmatprep.subr.bf16.mxu0 %v1010
    %1227 = vmatpush2.bf16.msra.mxu0 %v1009
    %1228 = vmatprep.mubr.bf16.mxu0 %v574
    %1229 = vmatmul.mubr.bf16.gmra.mxu0 %v573
    %v1230 = vpop.f32.mrf.mxu0
    %v1231 = vadd.f32 %v1188, %v1230
    %v1232 = vpop.f32.mrf.mxu0
    %v1233 = vadd.f32 %v1190, %v1232
    %v1234 = vpop.f32.mrf.mxu0
    %v1235 = vadd.f32 %v1192, %v1234
    %v1236 = vpop.f32.mrf.mxu0
    %v1237 = vadd.f32 %v1194, %v1236
    %1238 = vdwg.mxu0
    %1239 = vmatprep.subr.bf16.mxu0 %v1040
    %1240 = vmatpush1.bf16.msra.mxu0 %v1039
    %1241 = vmatprep.subr.bf16.mxu0 %v1038
    %1242 = vmatpush1.bf16.msra.mxu0 %v1037
    %1243 = vmatprep.subr.bf16.mxu0 %v1036
    %1244 = vmatpush1.bf16.msra.mxu0 %v1035
    %1245 = vmatprep.subr.bf16.mxu0 %v1034
    %1246 = vmatpush1.bf16.msra.mxu0 %v1033
    %1247 = vmatprep.subr.bf16.mxu0 %v1032
    %1248 = vmatpush1.bf16.msra.mxu0 %v1031
    %1249 = vmatprep.subr.bf16.mxu0 %v1030
    %1250 = vmatpush1.bf16.msra.mxu0 %v1029
    %1251 = vmatprep.subr.bf16.mxu0 %v1028
    %1252 = vmatpush1.bf16.msra.mxu0 %v1027
    %1253 = vmatprep.subr.bf16.mxu0 %v1026
    %1254 = vmatpush1.bf16.msra.mxu0 %v1025
    %1255 = vmatprep.subr.bf16.mxu0 %v1056
    %1256 = vmatpush2.bf16.msra.mxu0 %v1055
    %1257 = vmatprep.subr.bf16.mxu0 %v1054
    %1258 = vmatpush2.bf16.msra.mxu0 %v1053
    %1259 = vmatprep.subr.bf16.mxu0 %v1052
    %1260 = vmatpush2.bf16.msra.mxu0 %v1051
    %1261 = vmatprep.subr.bf16.mxu0 %v1050
    %1262 = vmatpush2.bf16.msra.mxu0 %v1049
    %1263 = vmatprep.subr.bf16.mxu0 %v1048
    %1264 = vmatpush2.bf16.msra.mxu0 %v1047
    %1265 = vmatprep.subr.bf16.mxu0 %v1046
    %1266 = vmatpush2.bf16.msra.mxu0 %v1045
    %1267 = vmatprep.subr.bf16.mxu0 %v1044
    %1268 = vmatpush2.bf16.msra.mxu0 %v1043
    %1269 = vmatprep.subr.bf16.mxu0 %v1042
    %1270 = vmatpush2.bf16.msra.mxu0 %v1041
    %1271 = vmatprep.mubr.bf16.mxu0 %v576
    %1272 = vmatmul.mubr.bf16.gmra.mxu0 %v575
    %v1273 = vpop.f32.mrf.mxu0
    %v1274 = vadd.f32 %v1231, %v1273
    %v1275 = vpop.f32.mrf.mxu0
    %v1276 = vadd.f32 %v1233, %v1275
    %v1277 = vpop.f32.mrf.mxu0
    %v1278 = vadd.f32 %v1235, %v1277
    %v1279 = vpop.f32.mrf.mxu0
    %v1280 = vadd.f32 %v1237, %v1279
    %1281 = vdwg.mxu0
    %v1282 = vrot.slane %v1274, 4
    %v1283 = vadd.f32 %v1274, %v1282
    %v1284 = vrot.slane %v1283, 2
    %v1285 = vadd.f32 %v1283, %v1284
    %v1286 = vrot.slane %v1285, 1
    %v1287 = vadd.f32 %v1285, %v1286
    %v1288 = vrot.slane %v1276, 4
    %v1289 = vadd.f32 %v1276, %v1288
    %v1290 = vrot.slane %v1289, 2
    %v1291 = vadd.f32 %v1289, %v1290
    %v1292 = vrot.slane %v1291, 1
    %v1293 = vadd.f32 %v1291, %v1292
    %v1294 = vrot.slane %v1278, 4
    %v1295 = vadd.f32 %v1278, %v1294
    %v1296 = vrot.slane %v1295, 2
    %v1297 = vadd.f32 %v1295, %v1296
    %v1298 = vrot.slane %v1297, 1
    %v1299 = vadd.f32 %v1297, %v1298
    %v1300 = vrot.slane %v1280, 4
    %v1301 = vadd.f32 %v1280, %v1300
    %v1302 = vrot.slane %v1301, 2
    %v1303 = vadd.f32 %v1301, %v1302
    %v1304 = vrot.slane %v1303, 1
    %v1305 = vadd.f32 %v1303, %v1304
    %v1306 = vld [vmem:[#allocation7] sm:$0xff]
    %v1307 = vld [vmem:[#allocation7 + $0x8] sm:$0xff]
    %v1308 = vld [vmem:[#allocation7 + $0x10] sm:$0xff]
    %v1309 = vld [vmem:[#allocation7 + $0x18] sm:$0xff]
    %v1310 = vld [vmem:[#allocation7 + $0x20] sm:$0xff]
    %v1311 = vld [vmem:[#allocation7 + $0x28] sm:$0xff]
    %v1312 = vld [vmem:[#allocation7 + $0x30] sm:$0xff]
    %v1313 = vld [vmem:[#allocation7 + $0x38] sm:$0xff]
    %v1314 = vld [vmem:[#allocation7 + $0x40] sm:$0xff]
    %v1315 = vld [vmem:[#allocation7 + $0x48] sm:$0xff]
    %v1316 = vld [vmem:[#allocation7 + $0x50] sm:$0xff]
    %v1317 = vld [vmem:[#allocation7 + $0x58] sm:$0xff]
    %v1318 = vld [vmem:[#allocation7 + $0x60] sm:$0xff]
    %v1319 = vld [vmem:[#allocation7 + $0x68] sm:$0xff]
    %v1320 = vld [vmem:[#allocation7 + $0x70] sm:$0xff]
    %v1321 = vld [vmem:[#allocation7 + $0x78] sm:$0xff]
    %v1322 = vld [vmem:[#allocation7 + $0x80] sm:$0xff]
    %v1323 = vld [vmem:[#allocation7 + $0x88] sm:$0xff]
    %v1324 = vld [vmem:[#allocation7 + $0x90] sm:$0xff]
    %v1325 = vld [vmem:[#allocation7 + $0x98] sm:$0xff]
    %v1326 = vld [vmem:[#allocation7 + $0xa0] sm:$0xff]
    %v1327 = vld [vmem:[#allocation7 + $0xa8] sm:$0xff]
    %v1328 = vld [vmem:[#allocation7 + $0xb0] sm:$0xff]
    %v1329 = vld [vmem:[#allocation7 + $0xb8] sm:$0xff]
    %v1330 = vld [vmem:[#allocation7 + $0xc0] sm:$0xff]
    %v1331 = vld [vmem:[#allocation7 + $0xc8] sm:$0xff]
    %v1332 = vld [vmem:[#allocation7 + $0xd0] sm:$0xff]
    %v1333 = vld [vmem:[#allocation7 + $0xd8] sm:$0xff]
    %v1334 = vld [vmem:[#allocation7 + $0xe0] sm:$0xff]
    %v1335 = vld [vmem:[#allocation7 + $0xe8] sm:$0xff]
    %v1336 = vld [vmem:[#allocation7 + $0xf0] sm:$0xff]
    %v1337 = vld [vmem:[#allocation7 + $0xf8] sm:$0xff]
    %vm1342 = vcmask 1041409
    %v1343 = vsel %vm1342, %v1299, %v1287
    %v1344 = vsel %vm1342, %v1305, %v1293
    %1347 = vmatprep.subr.mxu0 0.0
    %1348 = vmatpush1.msra.mxu0 %v1321
    %1349 = vmatprep.subr.mxu0 0.0
    %1350 = vmatpush1.msra.mxu0 %v1320
    %1351 = vmatprep.subr.mxu0 0.0
    %1352 = vmatpush1.msra.mxu0 %v1319
    %1353 = vmatprep.subr.mxu0 0.0
    %1354 = vmatpush1.msra.mxu0 %v1318
    %1355 = vmatprep.subr.mxu0 0.0
    %1356 = vmatpush1.msra.mxu0 %v1317
    %1357 = vmatprep.subr.mxu0 0.0
    %1358 = vmatpush1.msra.mxu0 %v1316
    %1359 = vmatprep.subr.mxu0 0.0
    %1360 = vmatpush1.msra.mxu0 %v1315
    %1361 = vmatprep.subr.mxu0 0.0
    %1362 = vmatpush1.msra.mxu0 %v1314
    %1363 = vmatprep.subr.mxu0 0.0
    %1364 = vmatpush1.msra.mxu0 %v1313
    %1365 = vmatprep.subr.mxu0 0.0
    %1366 = vmatpush1.msra.mxu0 %v1312
    %1367 = vmatprep.subr.mxu0 0.0
    %1368 = vmatpush1.msra.mxu0 %v1311
    %1369 = vmatprep.subr.mxu0 0.0
    %1370 = vmatpush1.msra.mxu0 %v1310
    %1371 = vmatprep.subr.mxu0 0.0
    %1372 = vmatpush1.msra.mxu0 %v1309
    %1373 = vmatprep.subr.mxu0 0.0
    %1374 = vmatpush1.msra.mxu0 %v1308
    %1375 = vmatprep.subr.mxu0 0.0
    %1376 = vmatpush1.msra.mxu0 %v1307
    %1377 = vmatprep.subr.mxu0 0.0
    %1378 = vmatpush1.msra.mxu0 %v1306
    %1379 = vmatprep.subr.mxu0 0.0
    %1380 = vmatpush2.msra.mxu0 %v1337
    %1381 = vmatprep.subr.mxu0 0.0
    %1382 = vmatpush2.msra.mxu0 %v1336
    %1383 = vmatprep.subr.mxu0 0.0
    %1384 = vmatpush2.msra.mxu0 %v1335
    %1385 = vmatprep.subr.mxu0 0.0
    %1386 = vmatpush2.msra.mxu0 %v1334
    %1387 = vmatprep.subr.mxu0 0.0
    %1388 = vmatpush2.msra.mxu0 %v1333
    %1389 = vmatprep.subr.mxu0 0.0
    %1390 = vmatpush2.msra.mxu0 %v1332
    %1391 = vmatprep.subr.mxu0 0.0
    %1392 = vmatpush2.msra.mxu0 %v1331
    %1393 = vmatprep.subr.mxu0 0.0
    %1394 = vmatpush2.msra.mxu0 %v1330
    %1395 = vmatprep.subr.mxu0 0.0
    %1396 = vmatpush2.msra.mxu0 %v1329
    %1397 = vmatprep.subr.mxu0 0.0
    %1398 = vmatpush2.msra.mxu0 %v1328
    %1399 = vmatprep.subr.mxu0 0.0
    %1400 = vmatpush2.msra.mxu0 %v1327
    %1401 = vmatprep.subr.mxu0 0.0
    %1402 = vmatpush2.msra.mxu0 %v1326
    %1403 = vmatprep.subr.mxu0 0.0
    %1404 = vmatpush2.msra.mxu0 %v1325
    %1405 = vmatprep.subr.mxu0 0.0
    %1406 = vmatpush2.msra.mxu0 %v1324
    %1407 = vmatprep.subr.mxu0 0.0
    %1408 = vmatpush2.msra.mxu0 %v1323
    %1409 = vmatprep.subr.mxu0 0.0
    %1410 = vmatpush2.msra.mxu0 %v1322
    %1411 = vmatprep.mubr.f32.mxu0 %v1344
    %1412 = vmatmul.mubr.f32.gmra.mxu0 %v1343
    %v1413 = vpop.f32.mrf.mxu0
    %v1414 = vadd.f32 0.0, %v1413
    %v1415 = vpop.f32.mrf.mxu0
    %1416 = vdwg.mxu0
    %v1417 = vld [vmem:[#allocation9] sm:$0xff]
    %v1419 = vcombine.high %v1417, %v1417
    %vm1420 = vcmask 31744
    %v1422 = vsel %vm1420, %v1414, 0
    %v1424 = vsel %vm331, %v1417, 0
    %v1426 = vsel %vm331, %v1419, 0
    %1428 = vmatprep.subr.mxu0 0.0
    %1429 = vmatpush1.msra.mxu0 0.0
    %1430 = vmatprep.subr.mxu0 0.0
    %1431 = vmatpush1.msra.mxu0 0.0
    %1432 = vmatprep.subr.mxu0 0.0
    %1433 = vmatpush1.msra.mxu0 0.0
    %1434 = vmatprep.subr.mxu0 0.0
    %1435 = vmatpush1.msra.mxu0 0.0
    %1436 = vmatprep.subr.mxu0 0.0
    %1437 = vmatpush1.msra.mxu0 0.0
    %1438 = vmatprep.subr.mxu0 0.0
    %1439 = vmatpush1.msra.mxu0 0.0
    %1440 = vmatprep.subr.mxu0 0.0
    %1441 = vmatpush1.msra.mxu0 0.0
    %1442 = vmatprep.subr.mxu0 0.0
    %1443 = vmatpush1.msra.mxu0 0.0
    %1444 = vmatprep.subr.mxu0 0.0
    %1445 = vmatpush1.msra.mxu0 0.0
    %1446 = vmatprep.subr.mxu0 0.0
    %1447 = vmatpush1.msra.mxu0 0.0
    %1448 = vmatprep.subr.mxu0 0.0
    %1449 = vmatpush1.msra.mxu0 0.0
    %1450 = vmatprep.subr.mxu0 0.0
    %1451 = vmatpush1.msra.mxu0 0.0
    %1452 = vmatprep.subr.mxu0 0.0
    %1453 = vmatpush1.msra.mxu0 0.0
    %1454 = vmatprep.subr.mxu0 0.0
    %1455 = vmatpush1.msra.mxu0 0.0
    %1456 = vmatprep.subr.mxu0 0.0
    %1457 = vmatpush1.msra.mxu0 0.0
    %1458 = vmatprep.subr.mxu0 %v1426
    %1459 = vmatpush1.msra.mxu0 %v1424
    %1460 = vmatprep.subr.mxu0 0.0
    %1461 = vmatpush2.msra.mxu0 0.0
    %1462 = vmatprep.subr.mxu0 0.0
    %1463 = vmatpush2.msra.mxu0 0.0
    %1464 = vmatprep.subr.mxu0 0.0
    %1465 = vmatpush2.msra.mxu0 0.0
    %1466 = vmatprep.subr.mxu0 0.0
    %1467 = vmatpush2.msra.mxu0 0.0
    %1468 = vmatprep.subr.mxu0 0.0
    %1469 = vmatpush2.msra.mxu0 0.0
    %1470 = vmatprep.subr.mxu0 0.0
    %1471 = vmatpush2.msra.mxu0 0.0
    %1472 = vmatprep.subr.mxu0 0.0
    %1473 = vmatpush2.msra.mxu0 0.0
    %1474 = vmatprep.subr.mxu0 0.0
    %1475 = vmatpush2.msra.mxu0 0.0
    %1476 = vmatprep.subr.mxu0 0.0
    %1477 = vmatpush2.msra.mxu0 0.0
    %1478 = vmatprep.subr.mxu0 0.0
    %1479 = vmatpush2.msra.mxu0 0.0
    %1480 = vmatprep.subr.mxu0 0.0
    %1481 = vmatpush2.msra.mxu0 0.0
    %1482 = vmatprep.subr.mxu0 0.0
    %1483 = vmatpush2.msra.mxu0 0.0
    %1484 = vmatprep.subr.mxu0 0.0
    %1485 = vmatpush2.msra.mxu0 0.0
    %1486 = vmatprep.subr.mxu0 0.0
    %1487 = vmatpush2.msra.mxu0 0.0
    %1488 = vmatprep.subr.mxu0 0.0
    %1489 = vmatpush2.msra.mxu0 0.0
    %1490 = vmatprep.subr.mxu0 0.0
    %1491 = vmatpush2.msra.mxu0 0.0
    %1492 = vmatprep.mubr.f32.mxu0 0.0
    %1493 = vmatmul.mubr.f32.gmra.mxu0 %v1422
    %v1494 = vpop.f32.mrf.mxu0
    %v1495 = vadd.f32 0.0, %v1494
    %v1496 = vpop.f32.mrf.mxu0
    %v1497 = vadd.f32 0.0, %v1496
    %1498 = vdwg.mxu0
    %v1501 = vcombine.low %v1495, %v1497
    %v1503 = vunpack.c.l.s4 1966171168
    %v1504 = vunpack.c.0.s8 %v1503
    %v1505 = vlaneseq
    %v1506 = vshrl.u32 %v1505, 7
    %v1507 = vsub.s32 %v1504, %v1506
    %v1508 = vrot.slane %v1501, %v1507
    %v1509 = vcombine.high %v1508, %v1508
    %v1511 = vunpack.c.l.s4 1966171168
    %v1512 = vunpack.c.0.s8 %v1511
    %v1513 = vlaneseq
    %v1514 = vshrl.u32 %v1513, 7
    %v1515 = vsub.s32 %v1512, %v1514
    %v1516 = vrot.slane %v1508, %v1515
    %v1518 = vunpack.c.l.s4 1966171168
    %v1519 = vunpack.c.0.s8 %v1518
    %v1520 = vlaneseq
    %v1521 = vshrl.u32 %v1520, 7
    %v1522 = vsub.s32 %v1519, %v1521
    %v1523 = vrot.slane %v1509, %v1522
    %v1524 = vlaneseq
    %v1525 = vshrl.u32 %v1524, 7
    %v1526 = vsub.s32 0, %v1525
    %v1527 = vrot.slane %v1516, %v1526
    %v1528 = vlaneseq
    %v1529 = vshrl.u32 %v1528, 7
    %v1530 = vsub.s32 1, %v1529
    %v1531 = vrot.slane %v1516, %v1530
    %v1532 = vlaneseq
    %v1533 = vshrl.u32 %v1532, 7
    %v1534 = vsub.s32 0, %v1533
    %v1535 = vrot.slane %v1523, %v1534
    %v1536 = vlaneseq
    %v1537 = vshrl.u32 %v1536, 7
    %v1538 = vsub.s32 1, %v1537
    %v1539 = vrot.slane %v1523, %v1538
    %v1544 = vsub.f32 %v1274, %v1527
    %v1545 = vsub.f32 %v1276, %v1531
    %v1546 = vsub.f32 %v1278, %v1535
    %v1547 = vsub.f32 %v1280, %v1539
    %v1548 = vmul.f32 %v1544, %v1544
    %v1549 = vmul.f32 %v1545, %v1545
    %v1550 = vmul.f32 %v1546, %v1546
    %v1551 = vmul.f32 %v1547, %v1547
    %v1552 = vrot.slane %v1548, 4
    %v1553 = vadd.f32 %v1548, %v1552
    %v1554 = vrot.slane %v1553, 2
    %v1555 = vadd.f32 %v1553, %v1554
    %v1556 = vrot.slane %v1555, 1
    %v1557 = vadd.f32 %v1555, %v1556
    %v1558 = vrot.slane %v1549, 4
    %v1559 = vadd.f32 %v1549, %v1558
    %v1560 = vrot.slane %v1559, 2
    %v1561 = vadd.f32 %v1559, %v1560
    %v1562 = vrot.slane %v1561, 1
    %v1563 = vadd.f32 %v1561, %v1562
    %v1564 = vrot.slane %v1550, 4
    %v1565 = vadd.f32 %v1550, %v1564
    %v1566 = vrot.slane %v1565, 2
    %v1567 = vadd.f32 %v1565, %v1566
    %v1568 = vrot.slane %v1567, 1
    %v1569 = vadd.f32 %v1567, %v1568
    %v1570 = vrot.slane %v1551, 4
    %v1571 = vadd.f32 %v1551, %v1570
    %v1572 = vrot.slane %v1571, 2
    %v1573 = vadd.f32 %v1571, %v1572
    %v1574 = vrot.slane %v1573, 1
    %v1575 = vadd.f32 %v1573, %v1574
    %v1580 = vsel %vm1342, %v1569, %v1557
    %v1581 = vsel %vm1342, %v1575, %v1563
    %1584 = vmatprep.subr.mxu0 0.0
    %1585 = vmatpush1.msra.mxu0 %v1321
    %1586 = vmatprep.subr.mxu0 0.0
    %1587 = vmatpush1.msra.mxu0 %v1320
    %1588 = vmatprep.subr.mxu0 0.0
    %1589 = vmatpush1.msra.mxu0 %v1319
    %1590 = vmatprep.subr.mxu0 0.0
    %1591 = vmatpush1.msra.mxu0 %v1318
    %1592 = vmatprep.subr.mxu0 0.0
    %1593 = vmatpush1.msra.mxu0 %v1317
    %1594 = vmatprep.subr.mxu0 0.0
    %1595 = vmatpush1.msra.mxu0 %v1316
    %1596 = vmatprep.subr.mxu0 0.0
    %1597 = vmatpush1.msra.mxu0 %v1315
    %1598 = vmatprep.subr.mxu0 0.0
    %1599 = vmatpush1.msra.mxu0 %v1314
    %1600 = vmatprep.subr.mxu0 0.0
    %1601 = vmatpush1.msra.mxu0 %v1313
    %1602 = vmatprep.subr.mxu0 0.0
    %1603 = vmatpush1.msra.mxu0 %v1312
    %1604 = vmatprep.subr.mxu0 0.0
    %1605 = vmatpush1.msra.mxu0 %v1311
    %1606 = vmatprep.subr.mxu0 0.0
    %1607 = vmatpush1.msra.mxu0 %v1310
    %1608 = vmatprep.subr.mxu0 0.0
    %1609 = vmatpush1.msra.mxu0 %v1309
    %1610 = vmatprep.subr.mxu0 0.0
    %1611 = vmatpush1.msra.mxu0 %v1308
    %1612 = vmatprep.subr.mxu0 0.0
    %1613 = vmatpush1.msra.mxu0 %v1307
    %1614 = vmatprep.subr.mxu0 0.0
    %1615 = vmatpush1.msra.mxu0 %v1306
    %1616 = vmatprep.subr.mxu0 0.0
    %1617 = vmatpush2.msra.mxu0 %v1337
    %1618 = vmatprep.subr.mxu0 0.0
    %1619 = vmatpush2.msra.mxu0 %v1336
    %1620 = vmatprep.subr.mxu0 0.0
    %1621 = vmatpush2.msra.mxu0 %v1335
    %1622 = vmatprep.subr.mxu0 0.0
    %1623 = vmatpush2.msra.mxu0 %v1334
    %1624 = vmatprep.subr.mxu0 0.0
    %1625 = vmatpush2.msra.mxu0 %v1333
    %1626 = vmatprep.subr.mxu0 0.0
    %1627 = vmatpush2.msra.mxu0 %v1332
    %1628 = vmatprep.subr.mxu0 0.0
    %1629 = vmatpush2.msra.mxu0 %v1331
    %1630 = vmatprep.subr.mxu0 0.0
    %1631 = vmatpush2.msra.mxu0 %v1330
    %1632 = vmatprep.subr.mxu0 0.0
    %1633 = vmatpush2.msra.mxu0 %v1329
    %1634 = vmatprep.subr.mxu0 0.0
    %1635 = vmatpush2.msra.mxu0 %v1328
    %1636 = vmatprep.subr.mxu0 0.0
    %1637 = vmatpush2.msra.mxu0 %v1327
    %1638 = vmatprep.subr.mxu0 0.0
    %1639 = vmatpush2.msra.mxu0 %v1326
    %1640 = vmatprep.subr.mxu0 0.0
    %1641 = vmatpush2.msra.mxu0 %v1325
    %1642 = vmatprep.subr.mxu0 0.0
    %1643 = vmatpush2.msra.mxu0 %v1324
    %1644 = vmatprep.subr.mxu0 0.0
    %1645 = vmatpush2.msra.mxu0 %v1323
    %1646 = vmatprep.subr.mxu0 0.0
    %1647 = vmatpush2.msra.mxu0 %v1322
    %1648 = vmatprep.mubr.f32.mxu0 %v1581
    %1649 = vmatmul.mubr.f32.gmra.mxu0 %v1580
    %v1650 = vpop.f32.mrf.mxu0
    %v1651 = vadd.f32 0.0, %v1650
    %v1652 = vpop.f32.mrf.mxu0
    %1653 = vdwg.mxu0
    %v1655 = vsel %vm1420, %v1651, 0
    %1657 = vmatprep.subr.mxu0 0.0
    %1658 = vmatpush1.msra.mxu0 0.0
    %1659 = vmatprep.subr.mxu0 0.0
    %1660 = vmatpush1.msra.mxu0 0.0
    %1661 = vmatprep.subr.mxu0 0.0
    %1662 = vmatpush1.msra.mxu0 0.0
    %1663 = vmatprep.subr.mxu0 0.0
    %1664 = vmatpush1.msra.mxu0 0.0
    %1665 = vmatprep.subr.mxu0 0.0
    %1666 = vmatpush1.msra.mxu0 0.0
    %1667 = vmatprep.subr.mxu0 0.0
    %1668 = vmatpush1.msra.mxu0 0.0
    %1669 = vmatprep.subr.mxu0 0.0
    %1670 = vmatpush1.msra.mxu0 0.0
    %1671 = vmatprep.subr.mxu0 0.0
    %1672 = vmatpush1.msra.mxu0 0.0
    %1673 = vmatprep.subr.mxu0 0.0
    %1674 = vmatpush1.msra.mxu0 0.0
    %1675 = vmatprep.subr.mxu0 0.0
    %1676 = vmatpush1.msra.mxu0 0.0
    %1677 = vmatprep.subr.mxu0 0.0
    %1678 = vmatpush1.msra.mxu0 0.0
    %1679 = vmatprep.subr.mxu0 0.0
    %1680 = vmatpush1.msra.mxu0 0.0
    %1681 = vmatprep.subr.mxu0 0.0
    %1682 = vmatpush1.msra.mxu0 0.0
    %1683 = vmatprep.subr.mxu0 0.0
    %1684 = vmatpush1.msra.mxu0 0.0
    %1685 = vmatprep.subr.mxu0 0.0
    %1686 = vmatpush1.msra.mxu0 0.0
    %1687 = vmatprep.subr.mxu0 %v1426
    %1688 = vmatpush1.msra.mxu0 %v1424
    %1689 = vmatprep.subr.mxu0 0.0
    %1690 = vmatpush2.msra.mxu0 0.0
    %1691 = vmatprep.subr.mxu0 0.0
    %1692 = vmatpush2.msra.mxu0 0.0
    %1693 = vmatprep.subr.mxu0 0.0
    %1694 = vmatpush2.msra.mxu0 0.0
    %1695 = vmatprep.subr.mxu0 0.0
    %1696 = vmatpush2.msra.mxu0 0.0
    %1697 = vmatprep.subr.mxu0 0.0
    %1698 = vmatpush2.msra.mxu0 0.0
    %1699 = vmatprep.subr.mxu0 0.0
    %1700 = vmatpush2.msra.mxu0 0.0
    %1701 = vmatprep.subr.mxu0 0.0
    %1702 = vmatpush2.msra.mxu0 0.0
    %1703 = vmatprep.subr.mxu0 0.0
    %1704 = vmatpush2.msra.mxu0 0.0
    %1705 = vmatprep.subr.mxu0 0.0
    %1706 = vmatpush2.msra.mxu0 0.0
    %1707 = vmatprep.subr.mxu0 0.0
    %1708 = vmatpush2.msra.mxu0 0.0
    %1709 = vmatprep.subr.mxu0 0.0
    %1710 = vmatpush2.msra.mxu0 0.0
    %1711 = vmatprep.subr.mxu0 0.0
    %1712 = vmatpush2.msra.mxu0 0.0
    %1713 = vmatprep.subr.mxu0 0.0
    %1714 = vmatpush2.msra.mxu0 0.0
    %1715 = vmatprep.subr.mxu0 0.0
    %1716 = vmatpush2.msra.mxu0 0.0
    %1717 = vmatprep.subr.mxu0 0.0
    %1718 = vmatpush2.msra.mxu0 0.0
    %1719 = vmatprep.subr.mxu0 0.0
    %1720 = vmatpush2.msra.mxu0 0.0
    %1721 = vmatprep.mubr.f32.mxu0 0.0
    %1722 = vmatmul.mubr.f32.gmra.mxu0 %v1655
    %v1723 = vpop.f32.mrf.mxu0
    %v1724 = vadd.f32 0.0001, %v1723
    %v1725 = vpop.f32.mrf.mxu0
    %v1726 = vadd.f32 0.0001, %v1725
    %1727 = vdwg.mxu0
    %v1728 = vrsqrt.pop %v1724
    %v1729 = vrsqrt.pop %v1726
    %v1732 = vcombine.low %v1728, %v1729
    %v1734 = vunpack.c.l.s4 1966171168
    %v1735 = vunpack.c.0.s8 %v1734
    %v1736 = vlaneseq
    %v1737 = vshrl.u32 %v1736, 7
    %v1738 = vsub.s32 %v1735, %v1737
    %v1739 = vrot.slane %v1732, %v1738
    %v1740 = vcombine.high %v1739, %v1739
    %v1742 = vunpack.c.l.s4 1966171168
    %v1743 = vunpack.c.0.s8 %v1742
    %v1744 = vlaneseq
    %v1745 = vshrl.u32 %v1744, 7
    %v1746 = vsub.s32 %v1743, %v1745
    %v1747 = vrot.slane %v1739, %v1746
    %v1749 = vunpack.c.l.s4 1966171168
    %v1750 = vunpack.c.0.s8 %v1749
    %v1751 = vlaneseq
    %v1752 = vshrl.u32 %v1751, 7
    %v1753 = vsub.s32 %v1750, %v1752
    %v1754 = vrot.slane %v1740, %v1753
    %v1755 = vlaneseq
    %v1756 = vshrl.u32 %v1755, 7
    %v1757 = vsub.s32 0, %v1756
    %v1758 = vrot.slane %v1747, %v1757
    %v1759 = vlaneseq
    %v1760 = vshrl.u32 %v1759, 7
    %v1761 = vsub.s32 1, %v1760
    %v1762 = vrot.slane %v1747, %v1761
    %v1763 = vlaneseq
    %v1764 = vshrl.u32 %v1763, 7
    %v1765 = vsub.s32 0, %v1764
    %v1766 = vrot.slane %v1754, %v1765
    %v1767 = vlaneseq
    %v1768 = vshrl.u32 %v1767, 7
    %v1769 = vsub.s32 1, %v1768
    %v1770 = vrot.slane %v1754, %v1769
    %v1775 = vmul.f32 %v1544, %v1758
    %v1776 = vmul.f32 %v1545, %v1762
    %v1777 = vmul.f32 %v1546, %v1766
    %v1778 = vmul.f32 %v1547, %v1770
    %v1779 = vld [vmem:[%s7] sm:$0x3]
    %v1781 = vlaneseq
    %v1782 = vshrl.u32 %v1781, 7
    %v1783 = vsub.s32 0, %v1782
    %v1784 = vrot.slane %v1779, %v1783
    %v1785 = vlaneseq
    %v1786 = vshrl.u32 %v1785, 7
    %v1787 = vsub.s32 1, %v1786
    %v1788 = vrot.slane %v1779, %v1787
    %v1791 = vmul.f32 %v1775, %v1784
    %v1792 = vmul.f32 %v1776, %v1788
    %v1793 = vmul.f32 %v1777, %v1784
    %v1794 = vmul.f32 %v1778, %v1788
    %v1795 = vld [vmem:[%s8] sm:$0x3]
    %v1797 = vlaneseq
    %v1798 = vshrl.u32 %v1797, 7
    %v1799 = vsub.s32 0, %v1798
    %v1800 = vrot.slane %v1795, %v1799
    %v1801 = vlaneseq
    %v1802 = vshrl.u32 %v1801, 7
    %v1803 = vsub.s32 1, %v1802
    %v1804 = vrot.slane %v1795, %v1803
    %v1807 = vadd.f32 %v1791, %v1800
    %v1808 = vadd.f32 %v1792, %v1804
    %v1809 = vadd.f32 %v1793, %v1800
    %v1810 = vadd.f32 %v1794, %v1804
    %v1811 = vmax.f32 %v1807, 0.0
    %v1812 = vmax.f32 %v1808, 0.0
    %v1813 = vmax.f32 %v1809, 0.0
    %v1814 = vmax.f32 %v1810, 0.0
    %v1815 = vld [vmem:[%s9] sm:$0xf]
    %v1816 = vld [vmem:[%s9 + $0x4] sm:$0xf]
    %v1817 = vld [vmem:[%s9 + $0x8] sm:$0xf]
    %v1818 = vld [vmem:[%s9 + $0xc] sm:$0xf]
    %v1819 = vpack.c.bf16 %v1813, %v1811
    %v1820 = vpack.c.bf16 %v1814, %v1812
    %v1825 = vunpack.c.l.b16 %v1815
    %v1826 = vunpack.c.l.b16 %v1816
    %v1827 = vunpack.c.l.b16 %v1817
    %v1828 = vunpack.c.l.b16 %v1818
    %v1829 = vpack.c.b16 %v1826, %v1825
    %v1830 = vpack.c.b16 %v1828, %v1827
    %vm1831 = vcmask 130048
    %v1833 = vsel %vm1831, %v1829, 0
    %v1836 = vsel %vm1831, %v1830, 0
    %1838 = vmatprep.subr.bf16.mxu0 0
    %1839 = vmatpush1.bf16.msra.mxu0 0
    %1840 = vmatprep.subr.bf16.mxu0 0
    %1841 = vmatpush1.bf16.msra.mxu0 0
    %1842 = vmatprep.subr.bf16.mxu0 0
    %1843 = vmatpush1.bf16.msra.mxu0 0
    %1844 = vmatprep.subr.bf16.mxu0 0
    %1845 = vmatpush1.bf16.msra.mxu0 0
    %1846 = vmatprep.subr.bf16.mxu0 0
    %1847 = vmatpush1.bf16.msra.mxu0 0
    %1848 = vmatprep.subr.bf16.mxu0 0
    %1849 = vmatpush1.bf16.msra.mxu0 0
    %1850 = vmatprep.subr.bf16.mxu0 0
    %1851 = vmatpush1.bf16.msra.mxu0 0
    %1852 = vmatprep.subr.bf16.mxu0 %v1820
    %1853 = vmatpush1.bf16.msra.mxu0 %v1819
    %1854 = vmatprep.subr.bf16.mxu0 0
    %1855 = vmatpush2.bf16.msra.mxu0 0
    %1856 = vmatprep.subr.bf16.mxu0 0
    %1857 = vmatpush2.bf16.msra.mxu0 0
    %1858 = vmatprep.subr.bf16.mxu0 0
    %1859 = vmatpush2.bf16.msra.mxu0 0
    %1860 = vmatprep.subr.bf16.mxu0 0
    %1861 = vmatpush2.bf16.msra.mxu0 0
    %1862 = vmatprep.subr.bf16.mxu0 0
    %1863 = vmatpush2.bf16.msra.mxu0 0
    %1864 = vmatprep.subr.bf16.mxu0 0
    %1865 = vmatpush2.bf16.msra.mxu0 0
    %1866 = vmatprep.subr.bf16.mxu0 0
    %1867 = vmatpush2.bf16.msra.mxu0 0
    %1868 = vmatprep.subr.bf16.mxu0 0
    %1869 = vmatpush2.bf16.msra.mxu0 0
    %1870 = vmatprep.mubr.bf16.mxu0 0
    %1871 = vmatmul.mubr.bf16.gmra.mxu0 %v1833
    %v1872 = vpop.f32.mrf.mxu0
    %v1873 = vadd.f32 0.0, %v1872
    %v1874 = vpop.f32.mrf.mxu0
    %v1875 = vadd.f32 0.0, %v1874
    %v1876 = vpop.f32.mrf.mxu0
    %v1877 = vadd.f32 0.0, %v1876
    %v1878 = vpop.f32.mrf.mxu0
    %v1879 = vadd.f32 0.0, %v1878
    %1880 = vmatprep.mubr.bf16.mxu0 0
    %1881 = vmatmul.mubr.bf16.gmra.mxu0 %v1836
    %v1882 = vpop.f32.mrf.mxu0
    %v1883 = vadd.f32 0.0, %v1882
    %v1884 = vpop.f32.mrf.mxu0
    %v1885 = vadd.f32 0.0, %v1884
    %v1886 = vpop.f32.mrf.mxu0
    %v1887 = vadd.f32 0.0, %v1886
    %v1888 = vpop.f32.mrf.mxu0
    %v1889 = vadd.f32 0.0, %v1888
    %1890 = vdwg.mxu0
    %v1891 = vpack.c.bf16 %v1877, %v1873
    %v1892 = vpack.c.bf16 %v1879, %v1875
    %v1893 = vpack.c.bf16 %v1887, %v1883
    %v1894 = vpack.c.bf16 %v1889, %v1885
    %v1895 = vld [vmem:[#allocation10] sm:$0xff]
    %v1896 = vld [vmem:[#allocation10 + $0x8] sm:$0xff]
    %v1897 = vld [vmem:[#allocation10 + $0x10] sm:$0xff]
    %v1898 = vld [vmem:[#allocation10 + $0x18] sm:$0xff]
    %v1899 = vld [vmem:[#allocation10 + $0x20] sm:$0xff]
    %v1900 = vld [vmem:[#allocation10 + $0x28] sm:$0xff]
    %v1901 = vld [vmem:[#allocation10 + $0x30] sm:$0xff]
    %v1902 = vld [vmem:[#allocation10 + $0x38] sm:$0xff]
    %v1903 = vld [vmem:[#allocation10 + $0x40] sm:$0xff]
    %v1904 = vld [vmem:[#allocation10 + $0x48] sm:$0xff]
    %v1905 = vld [vmem:[#allocation10 + $0x50] sm:$0xff]
    %v1906 = vld [vmem:[#allocation10 + $0x58] sm:$0xff]
    %v1907 = vld [vmem:[#allocation10 + $0x60] sm:$0xff]
    %v1908 = vld [vmem:[#allocation10 + $0x68] sm:$0xff]
    %v1909 = vld [vmem:[#allocation10 + $0x70] sm:$0xff]
    %v1910 = vld [vmem:[#allocation10 + $0x78] sm:$0xff]
    %v1911 = vld [vmem:[#allocation10 + $0x80] sm:$0xff]
    %v1912 = vld [vmem:[#allocation10 + $0x88] sm:$0xff]
    %v1913 = vld [vmem:[#allocation10 + $0x90] sm:$0xff]
    %v1914 = vld [vmem:[#allocation10 + $0x98] sm:$0xff]
    %v1915 = vld [vmem:[#allocation10 + $0xa0] sm:$0xff]
    %v1916 = vld [vmem:[#allocation10 + $0xa8] sm:$0xff]
    %v1917 = vld [vmem:[#allocation10 + $0xb0] sm:$0xff]
    %v1918 = vld [vmem:[#allocation10 + $0xb8] sm:$0xff]
    %v1919 = vld [vmem:[#allocation10 + $0xc0] sm:$0xff]
    %v1920 = vld [vmem:[#allocation10 + $0xc8] sm:$0xff]
    %v1921 = vld [vmem:[#allocation10 + $0xd0] sm:$0xff]
    %v1922 = vld [vmem:[#allocation10 + $0xd8] sm:$0xff]
    %v1923 = vld [vmem:[#allocation10 + $0xe0] sm:$0xff]
    %v1924 = vld [vmem:[#allocation10 + $0xe8] sm:$0xff]
    %v1925 = vld [vmem:[#allocation10 + $0xf0] sm:$0xff]
    %v1926 = vld [vmem:[#allocation10 + $0xf8] sm:$0xff]
    %v1927 = vld [vmem:[#allocation10 + $0x100] sm:$0xff]
    %v1928 = vld [vmem:[#allocation10 + $0x108] sm:$0xff]
    %v1929 = vld [vmem:[#allocation10 + $0x110] sm:$0xff]
    %v1930 = vld [vmem:[#allocation10 + $0x118] sm:$0xff]
    %v1931 = vld [vmem:[#allocation10 + $0x120] sm:$0xff]
    %v1932 = vld [vmem:[#allocation10 + $0x128] sm:$0xff]
    %v1933 = vld [vmem:[#allocation10 + $0x130] sm:$0xff]
    %v1934 = vld [vmem:[#allocation10 + $0x138] sm:$0xff]
    %v1935 = vld [vmem:[#allocation10 + $0x140] sm:$0xff]
    %v1936 = vld [vmem:[#allocation10 + $0x148] sm:$0xff]
    %v1937 = vld [vmem:[#allocation10 + $0x150] sm:$0xff]
    %v1938 = vld [vmem:[#allocation10 + $0x158] sm:$0xff]
    %v1939 = vld [vmem:[#allocation10 + $0x160] sm:$0xff]
    %v1940 = vld [vmem:[#allocation10 + $0x168] sm:$0xff]
    %v1941 = vld [vmem:[#allocation10 + $0x170] sm:$0xff]
    %v1942 = vld [vmem:[#allocation10 + $0x178] sm:$0xff]
    %v1943 = vld [vmem:[#allocation10 + $0x180] sm:$0xff]
    %v1944 = vld [vmem:[#allocation10 + $0x188] sm:$0xff]
    %v1945 = vld [vmem:[#allocation10 + $0x190] sm:$0xff]
    %v1946 = vld [vmem:[#allocation10 + $0x198] sm:$0xff]
    %v1947 = vld [vmem:[#allocation10 + $0x1a0] sm:$0xff]
    %v1948 = vld [vmem:[#allocation10 + $0x1a8] sm:$0xff]
    %v1949 = vld [vmem:[#allocation10 + $0x1b0] sm:$0xff]
    %v1950 = vld [vmem:[#allocation10 + $0x1b8] sm:$0xff]
    %v1951 = vld [vmem:[#allocation10 + $0x1c0] sm:$0xff]
    %v1952 = vld [vmem:[#allocation10 + $0x1c8] sm:$0xff]
    %v1953 = vld [vmem:[#allocation10 + $0x1d0] sm:$0xff]
    %v1954 = vld [vmem:[#allocation10 + $0x1d8] sm:$0xff]
    %v1955 = vld [vmem:[#allocation10 + $0x1e0] sm:$0xff]
    %v1956 = vld [vmem:[#allocation10 + $0x1e8] sm:$0xff]
    %v1957 = vld [vmem:[#allocation10 + $0x1f0] sm:$0xff]
    %v1958 = vld [vmem:[#allocation10 + $0x1f8] sm:$0xff]
    %v2023 = vunpack.c.l.b16 %v1895
    %v2024 = vunpack.c.h.b16 %v1895
    %v2025 = vunpack.c.l.b16 %v1896
    %v2026 = vunpack.c.h.b16 %v1896
    %v2027 = vunpack.c.l.b16 %v1897
    %v2028 = vunpack.c.h.b16 %v1897
    %v2029 = vunpack.c.l.b16 %v1898
    %v2030 = vunpack.c.h.b16 %v1898
    %v2031 = vunpack.c.l.b16 %v1899
    %v2032 = vunpack.c.h.b16 %v1899
    %v2033 = vunpack.c.l.b16 %v1900
    %v2034 = vunpack.c.h.b16 %v1900
    %v2035 = vunpack.c.l.b16 %v1901
    %v2036 = vunpack.c.h.b16 %v1901
    %v2037 = vunpack.c.l.b16 %v1902
    %v2038 = vunpack.c.h.b16 %v1902
    %v2039 = vunpack.c.l.b16 %v1903
    %v2040 = vunpack.c.h.b16 %v1903
    %v2041 = vunpack.c.l.b16 %v1904
    %v2042 = vunpack.c.h.b16 %v1904
    %v2043 = vunpack.c.l.b16 %v1905
    %v2044 = vunpack.c.h.b16 %v1905
    %v2045 = vunpack.c.l.b16 %v1906
    %v2046 = vunpack.c.h.b16 %v1906
    %v2047 = vunpack.c.l.b16 %v1907
    %v2048 = vunpack.c.h.b16 %v1907
    %v2049 = vunpack.c.l.b16 %v1908
    %v2050 = vunpack.c.h.b16 %v1908
    %v2051 = vunpack.c.l.b16 %v1909
    %v2052 = vunpack.c.h.b16 %v1909
    %v2053 = vunpack.c.l.b16 %v1910
    %v2054 = vunpack.c.h.b16 %v1910
    %v2055 = vunpack.c.l.b16 %v1911
    %v2056 = vunpack.c.h.b16 %v1911
    %v2057 = vunpack.c.l.b16 %v1912
    %v2058 = vunpack.c.h.b16 %v1912
    %v2059 = vunpack.c.l.b16 %v1913
    %v2060 = vunpack.c.h.b16 %v1913
    %v2061 = vunpack.c.l.b16 %v1914
    %v2062 = vunpack.c.h.b16 %v1914
    %v2063 = vunpack.c.l.b16 %v1915
    %v2064 = vunpack.c.h.b16 %v1915
    %v2065 = vunpack.c.l.b16 %v1916
    %v2066 = vunpack.c.h.b16 %v1916
    %v2067 = vunpack.c.l.b16 %v1917
    %v2068 = vunpack.c.h.b16 %v1917
    %v2069 = vunpack.c.l.b16 %v1918
    %v2070 = vunpack.c.h.b16 %v1918
    %v2071 = vunpack.c.l.b16 %v1919
    %v2072 = vunpack.c.h.b16 %v1919
    %v2073 = vunpack.c.l.b16 %v1920
    %v2074 = vunpack.c.h.b16 %v1920
    %v2075 = vunpack.c.l.b16 %v1921
    %v2076 = vunpack.c.h.b16 %v1921
    %v2077 = vunpack.c.l.b16 %v1922
    %v2078 = vunpack.c.h.b16 %v1922
    %v2079 = vunpack.c.l.b16 %v1923
    %v2080 = vunpack.c.h.b16 %v1923
    %v2081 = vunpack.c.l.b16 %v1924
    %v2082 = vunpack.c.h.b16 %v1924
    %v2083 = vunpack.c.l.b16 %v1925
    %v2084 = vunpack.c.h.b16 %v1925
    %v2085 = vunpack.c.l.b16 %v1926
    %v2086 = vunpack.c.h.b16 %v1926
    %v2087 = vunpack.c.l.b16 %v1927
    %v2088 = vunpack.c.h.b16 %v1927
    %v2089 = vunpack.c.l.b16 %v1928
    %v2090 = vunpack.c.h.b16 %v1928
    %v2091 = vunpack.c.l.b16 %v1929
    %v2092 = vunpack.c.h.b16 %v1929
    %v2093 = vunpack.c.l.b16 %v1930
    %v2094 = vunpack.c.h.b16 %v1930
    %v2095 = vunpack.c.l.b16 %v1931
    %v2096 = vunpack.c.h.b16 %v1931
    %v2097 = vunpack.c.l.b16 %v1932
    %v2098 = vunpack.c.h.b16 %v1932
    %v2099 = vunpack.c.l.b16 %v1933
    %v2100 = vunpack.c.h.b16 %v1933
    %v2101 = vunpack.c.l.b16 %v1934
    %v2102 = vunpack.c.h.b16 %v1934
    %v2103 = vunpack.c.l.b16 %v1935
    %v2104 = vunpack.c.h.b16 %v1935
    %v2105 = vunpack.c.l.b16 %v1936
    %v2106 = vunpack.c.h.b16 %v1936
    %v2107 = vunpack.c.l.b16 %v1937
    %v2108 = vunpack.c.h.b16 %v1937
    %v2109 = vunpack.c.l.b16 %v1938
    %v2110 = vunpack.c.h.b16 %v1938
    %v2111 = vunpack.c.l.b16 %v1939
    %v2112 = vunpack.c.h.b16 %v1939
    %v2113 = vunpack.c.l.b16 %v1940
    %v2114 = vunpack.c.h.b16 %v1940
    %v2115 = vunpack.c.l.b16 %v1941
    %v2116 = vunpack.c.h.b16 %v1941
    %v2117 = vunpack.c.l.b16 %v1942
    %v2118 = vunpack.c.h.b16 %v1942
    %v2119 = vunpack.c.l.b16 %v1943
    %v2120 = vunpack.c.h.b16 %v1943
    %v2121 = vunpack.c.l.b16 %v1944
    %v2122 = vunpack.c.h.b16 %v1944
    %v2123 = vunpack.c.l.b16 %v1945
    %v2124 = vunpack.c.h.b16 %v1945
    %v2125 = vunpack.c.l.b16 %v1946
    %v2126 = vunpack.c.h.b16 %v1946
    %v2127 = vunpack.c.l.b16 %v1947
    %v2128 = vunpack.c.h.b16 %v1947
    %v2129 = vunpack.c.l.b16 %v1948
    %v2130 = vunpack.c.h.b16 %v1948
    %v2131 = vunpack.c.l.b16 %v1949
    %v2132 = vunpack.c.h.b16 %v1949
    %v2133 = vunpack.c.l.b16 %v1950
    %v2134 = vunpack.c.h.b16 %v1950
    %v2135 = vunpack.c.l.b16 %v1951
    %v2136 = vunpack.c.h.b16 %v1951
    %v2137 = vunpack.c.l.b16 %v1952
    %v2138 = vunpack.c.h.b16 %v1952
    %v2139 = vunpack.c.l.b16 %v1953
    %v2140 = vunpack.c.h.b16 %v1953
    %v2141 = vunpack.c.l.b16 %v1954
    %v2142 = vunpack.c.h.b16 %v1954
    %v2143 = vunpack.c.l.b16 %v1955
    %v2144 = vunpack.c.h.b16 %v1955
    %v2145 = vunpack.c.l.b16 %v1956
    %v2146 = vunpack.c.h.b16 %v1956
    %v2147 = vunpack.c.l.b16 %v1957
    %v2148 = vunpack.c.h.b16 %v1957
    %v2149 = vunpack.c.l.b16 %v1958
    %v2150 = vunpack.c.h.b16 %v1958
    %v2151 = vpack.c.b16 %v2027, %v2023
    %v2152 = vpack.c.b16 %v2028, %v2024
    %v2153 = vpack.c.b16 %v2029, %v2025
    %v2154 = vpack.c.b16 %v2030, %v2026
    %v2155 = vpack.c.b16 %v2035, %v2031
    %v2156 = vpack.c.b16 %v2036, %v2032
    %v2157 = vpack.c.b16 %v2037, %v2033
    %v2158 = vpack.c.b16 %v2038, %v2034
    %v2159 = vpack.c.b16 %v2043, %v2039
    %v2160 = vpack.c.b16 %v2044, %v2040
    %v2161 = vpack.c.b16 %v2045, %v2041
    %v2162 = vpack.c.b16 %v2046, %v2042
    %v2163 = vpack.c.b16 %v2051, %v2047
    %v2164 = vpack.c.b16 %v2052, %v2048
    %v2165 = vpack.c.b16 %v2053, %v2049
    %v2166 = vpack.c.b16 %v2054, %v2050
    %v2167 = vpack.c.b16 %v2059, %v2055
    %v2168 = vpack.c.b16 %v2060, %v2056
    %v2169 = vpack.c.b16 %v2061, %v2057
    %v2170 = vpack.c.b16 %v2062, %v2058
    %v2171 = vpack.c.b16 %v2067, %v2063
    %v2172 = vpack.c.b16 %v2068, %v2064
    %v2173 = vpack.c.b16 %v2069, %v2065
    %v2174 = vpack.c.b16 %v2070, %v2066
    %v2175 = vpack.c.b16 %v2075, %v2071
    %v2176 = vpack.c.b16 %v2076, %v2072
    %v2177 = vpack.c.b16 %v2077, %v2073
    %v2178 = vpack.c.b16 %v2078, %v2074
    %v2179 = vpack.c.b16 %v2083, %v2079
    %v2180 = vpack.c.b16 %v2084, %v2080
    %v2181 = vpack.c.b16 %v2085, %v2081
    %v2182 = vpack.c.b16 %v2086, %v2082
    %v2183 = vpack.c.b16 %v2091, %v2087
    %v2184 = vpack.c.b16 %v2092, %v2088
    %v2185 = vpack.c.b16 %v2093, %v2089
    %v2186 = vpack.c.b16 %v2094, %v2090
    %v2187 = vpack.c.b16 %v2099, %v2095
    %v2188 = vpack.c.b16 %v2100, %v2096
    %v2189 = vpack.c.b16 %v2101, %v2097
    %v2190 = vpack.c.b16 %v2102, %v2098
    %v2191 = vpack.c.b16 %v2107, %v2103
    %v2192 = vpack.c.b16 %v2108, %v2104
    %v2193 = vpack.c.b16 %v2109, %v2105
    %v2194 = vpack.c.b16 %v2110, %v2106
    %v2195 = vpack.c.b16 %v2115, %v2111
    %v2196 = vpack.c.b16 %v2116, %v2112
    %v2197 = vpack.c.b16 %v2117, %v2113
    %v2198 = vpack.c.b16 %v2118, %v2114
    %v2199 = vpack.c.b16 %v2123, %v2119
    %v2200 = vpack.c.b16 %v2124, %v2120
    %v2201 = vpack.c.b16 %v2125, %v2121
    %v2202 = vpack.c.b16 %v2126, %v2122
    %v2203 = vpack.c.b16 %v2131, %v2127
    %v2204 = vpack.c.b16 %v2132, %v2128
    %v2205 = vpack.c.b16 %v2133, %v2129
    %v2206 = vpack.c.b16 %v2134, %v2130
    %v2207 = vpack.c.b16 %v2139, %v2135
    %v2208 = vpack.c.b16 %v2140, %v2136
    %v2209 = vpack.c.b16 %v2141, %v2137
    %v2210 = vpack.c.b16 %v2142, %v2138
    %v2211 = vpack.c.b16 %v2147, %v2143
    %v2212 = vpack.c.b16 %v2148, %v2144
    %v2213 = vpack.c.b16 %v2149, %v2145
    %v2214 = vpack.c.b16 %v2150, %v2146
    %2279 = vmatprep.subr.bf16.mxu0 %v2180
    %2280 = vmatpush1.bf16.msra.mxu0 %v2179
    %2281 = vmatprep.subr.bf16.mxu0 %v2176
    %2282 = vmatpush1.bf16.msra.mxu0 %v2175
    %2283 = vmatprep.subr.bf16.mxu0 %v2172
    %2284 = vmatpush1.bf16.msra.mxu0 %v2171
    %2285 = vmatprep.subr.bf16.mxu0 %v2168
    %2286 = vmatpush1.bf16.msra.mxu0 %v2167
    %2287 = vmatprep.subr.bf16.mxu0 %v2164
    %2288 = vmatpush1.bf16.msra.mxu0 %v2163
    %2289 = vmatprep.subr.bf16.mxu0 %v2160
    %2290 = vmatpush1.bf16.msra.mxu0 %v2159
    %2291 = vmatprep.subr.bf16.mxu0 %v2156
    %2292 = vmatpush1.bf16.msra.mxu0 %v2155
    %2293 = vmatprep.subr.bf16.mxu0 %v2152
    %2294 = vmatpush1.bf16.msra.mxu0 %v2151
    %2295 = vmatprep.subr.bf16.mxu0 %v2212
    %2296 = vmatpush2.bf16.msra.mxu0 %v2211
    %2297 = vmatprep.subr.bf16.mxu0 %v2208
    %2298 = vmatpush2.bf16.msra.mxu0 %v2207
    %2299 = vmatprep.subr.bf16.mxu0 %v2204
    %2300 = vmatpush2.bf16.msra.mxu0 %v2203
    %2301 = vmatprep.subr.bf16.mxu0 %v2200
    %2302 = vmatpush2.bf16.msra.mxu0 %v2199
    %2303 = vmatprep.subr.bf16.mxu0 %v2196
    %2304 = vmatpush2.bf16.msra.mxu0 %v2195
    %2305 = vmatprep.subr.bf16.mxu0 %v2192
    %2306 = vmatpush2.bf16.msra.mxu0 %v2191
    %2307 = vmatprep.subr.bf16.mxu0 %v2188
    %2308 = vmatpush2.bf16.msra.mxu0 %v2187
    %2309 = vmatprep.subr.bf16.mxu0 %v2184
    %2310 = vmatpush2.bf16.msra.mxu0 %v2183
    %2311 = vmatprep.mubr.bf16.mxu0 %v1892
    %2312 = vmatmul.mubr.bf16.gmra.mxu0 %v1891
    %v2313 = vpop.f32.mrf.mxu0
    %v2314 = vadd.f32 0.0, %v2313
    %v2315 = vpop.f32.mrf.mxu0
    %v2316 = vadd.f32 0.0, %v2315
    %v2317 = vpop.f32.mrf.mxu0
    %v2318 = vadd.f32 0.0, %v2317
    %v2319 = vpop.f32.mrf.mxu0
    %v2320 = vadd.f32 0.0, %v2319
    %2321 = vmatprep.mubr.bf16.mxu0 %v1894
    %2322 = vmatmul.mubr.bf16.gmra.mxu0 %v1893
    %v2323 = vpop.f32.mrf.mxu0
    %v2324 = vadd.f32 0.0, %v2323
    %v2325 = vpop.f32.mrf.mxu0
    %v2326 = vadd.f32 0.0, %v2325
    %v2327 = vpop.f32.mrf.mxu0
    %v2328 = vadd.f32 0.0, %v2327
    %v2329 = vpop.f32.mrf.mxu0
    %v2330 = vadd.f32 0.0, %v2329
    %2331 = vdwg.mxu0
    %2332 = vmatprep.subr.bf16.mxu0 %v2182
    %2333 = vmatpush1.bf16.msra.mxu0 %v2181
    %2334 = vmatprep.subr.bf16.mxu0 %v2178
    %2335 = vmatpush1.bf16.msra.mxu0 %v2177
    %2336 = vmatprep.subr.bf16.mxu0 %v2174
    %2337 = vmatpush1.bf16.msra.mxu0 %v2173
    %2338 = vmatprep.subr.bf16.mxu0 %v2170
    %2339 = vmatpush1.bf16.msra.mxu0 %v2169
    %2340 = vmatprep.subr.bf16.mxu0 %v2166
    %2341 = vmatpush1.bf16.msra.mxu0 %v2165
    %2342 = vmatprep.subr.bf16.mxu0 %v2162
    %2343 = vmatpush1.bf16.msra.mxu0 %v2161
    %2344 = vmatprep.subr.bf16.mxu0 %v2158
    %2345 = vmatpush1.bf16.msra.mxu0 %v2157
    %2346 = vmatprep.subr.bf16.mxu0 %v2154
    %2347 = vmatpush1.bf16.msra.mxu0 %v2153
    %2348 = vmatprep.subr.bf16.mxu0 %v2214
    %2349 = vmatpush2.bf16.msra.mxu0 %v2213
    %2350 = vmatprep.subr.bf16.mxu0 %v2210
    %2351 = vmatpush2.bf16.msra.mxu0 %v2209
    %2352 = vmatprep.subr.bf16.mxu0 %v2206
    %2353 = vmatpush2.bf16.msra.mxu0 %v2205
    %2354 = vmatprep.subr.bf16.mxu0 %v2202
    %2355 = vmatpush2.bf16.msra.mxu0 %v2201
    %2356 = vmatprep.subr.bf16.mxu0 %v2198
    %2357 = vmatpush2.bf16.msra.mxu0 %v2197
    %2358 = vmatprep.subr.bf16.mxu0 %v2194
    %2359 = vmatpush2.bf16.msra.mxu0 %v2193
    %2360 = vmatprep.subr.bf16.mxu0 %v2190
    %2361 = vmatpush2.bf16.msra.mxu0 %v2189
    %2362 = vmatprep.subr.bf16.mxu0 %v2186
    %2363 = vmatpush2.bf16.msra.mxu0 %v2185
    %2364 = vmatprep.mubr.bf16.mxu0 %v1892
    %2365 = vmatmul.mubr.bf16.gmra.mxu0 %v1891
    %v2366 = vpop.f32.mrf.mxu0
    %v2367 = vadd.f32 0.0, %v2366
    %v2368 = vpop.f32.mrf.mxu0
    %v2369 = vadd.f32 0.0, %v2368
    %v2370 = vpop.f32.mrf.mxu0
    %v2371 = vadd.f32 0.0, %v2370
    %v2372 = vpop.f32.mrf.mxu0
    %v2373 = vadd.f32 0.0, %v2372
    %2374 = vmatprep.mubr.bf16.mxu0 %v1894
    %2375 = vmatmul.mubr.bf16.gmra.mxu0 %v1893
    %v2376 = vpop.f32.mrf.mxu0
    %v2377 = vadd.f32 0.0, %v2376
    %v2378 = vpop.f32.mrf.mxu0
    %v2379 = vadd.f32 0.0, %v2378
    %v2380 = vpop.f32.mrf.mxu0
    %v2381 = vadd.f32 0.0, %v2380
    %v2382 = vpop.f32.mrf.mxu0
    %v2383 = vadd.f32 0.0, %v2382
    %2384 = vdwg.mxu0
    %v2385 = vadd.s32 %v194, 16
    %v2386 = vadd.s32 %v194, 24
    %vm2387 = vcmp.lt.s32.totalorder %v194, 0
    %v2388 = vsub.s32 0, %v194
    %v2389 = vsel %vm2387, %v2388, %v194
    %v2390 = vshrl.u32 %v2389, 4
    %v2391 = vand.u32 %v2389, 15
    %v2392 = vsub.s32 0, %v2391
    %v2393 = vsel %vm2387, %v2392, %v2391
    %vm2394 = vcmp.lt.s32.totalorder %v516, 0
    %v2395 = vsub.s32 0, %v516
    %v2396 = vsel %vm2394, %v2395, %v516
    %v2397 = vshrl.u32 %v2396, 4
    %v2398 = vand.u32 %v2396, 15
    %v2399 = vsub.s32 0, %v2398
    %v2400 = vsel %vm2394, %v2399, %v2398
    %vm2401 = vcmp.lt.s32.totalorder %v2385, 0
    %v2402 = vsub.s32 0, %v2385
    %v2403 = vsel %vm2401, %v2402, %v2385
    %v2404 = vshrl.u32 %v2403, 4
    %v2405 = vand.u32 %v2403, 15
    %v2406 = vsub.s32 0, %v2405
    %v2407 = vsel %vm2401, %v2406, %v2405
    %vm2408 = vcmp.lt.s32.totalorder %v2386, 0
    %v2409 = vsub.s32 0, %v2386
    %v2410 = vsel %vm2408, %v2409, %v2386
    %v2411 = vshrl.u32 %v2410, 4
    %v2412 = vand.u32 %v2410, 15
    %v2413 = vsub.s32 0, %v2412
    %v2414 = vsel %vm2408, %v2413, %v2412
    %vm2415 = vcmp.ne.s32.totalorder %v2393, 0
    %vm2416 = vcmp.ne.s32.totalorder %v2400, 0
    %vm2417 = vcmp.ne.s32.totalorder %v2407, 0
    %vm2418 = vcmp.ne.s32.totalorder %v2414, 0
    %vm2419 = vcmp.lt.s32.totalorder %v2393, 0
    %vm2420 = vcmp.lt.s32.totalorder %v2400, 0
    %vm2421 = vcmp.lt.s32.totalorder %v2407, 0
    %vm2422 = vcmp.lt.s32.totalorder %v2414, 0
    %vm2423 = vmand %vm2419, %vm2415
    %vm2424 = vmand %vm2420, %vm2416
    %vm2425 = vmand %vm2421, %vm2417
    %vm2426 = vmand %vm2422, %vm2418
    %v2427 = vadd.s32 %v2393, 16
    %v2428 = vadd.s32 %v2400, 16
    %v2429 = vadd.s32 %v2407, 16
    %v2430 = vadd.s32 %v2414, 16
    %v2431 = vsel %vm2423, %v2427, %v2393
    %v2432 = vsel %vm2424, %v2428, %v2400
    %v2433 = vsel %vm2425, %v2429, %v2407
    %v2434 = vsel %vm2426, %v2430, %v2414
    %vm2435 = vcmp.ne.s32.totalorder %v2431, 0
    %vm2436 = vcmp.ne.s32.totalorder %v2432, 0
    %vm2437 = vcmp.ne.s32.totalorder %v2433, 0
    %vm2438 = vcmp.ne.s32.totalorder %v2434, 0
    %v2439 = vrot.slane %v2314, 7
    %v2440 = vrot.slane %v2316, 7
    %v2441 = vrot.slane %v2367, 7
    %v2442 = vrot.slane %v2369, 7
    %v2443 = vrot.slane %v2318, 7
    %v2444 = vrot.slane %v2320, 7
    %v2445 = vrot.slane %v2371, 7
    %v2446 = vrot.slane %v2373, 7
    %v2447 = vrot.slane %v2324, 7
    %v2448 = vrot.slane %v2326, 7
    %v2449 = vrot.slane %v2377, 7
    %v2450 = vrot.slane %v2379, 7
    %v2451 = vrot.slane %v2328, 7
    %v2452 = vrot.slane %v2330, 7
    %v2453 = vrot.slane %v2381, 7
    %v2454 = vrot.slane %v2383, 7
    %v2455 = vsel %vm547, %v2447, %v2451
    %v2456 = vsel %vm547, %v2448, %v2452
    %v2457 = vsel %vm547, %v2449, %v2453
    %v2458 = vsel %vm547, %v2450, %v2454
    %v2459 = vsel %vm547, %v2443, %v2447
    %v2460 = vsel %vm547, %v2444, %v2448
    %v2461 = vsel %vm547, %v2445, %v2449
    %v2462 = vsel %vm547, %v2446, %v2450
    %v2463 = vsel %vm547, %v2439, %v2443
    %v2464 = vsel %vm547, %v2440, %v2444
    %v2465 = vsel %vm547, %v2441, %v2445
    %v2466 = vsel %vm547, %v2442, %v2446
    %v2467 = vsel %vm547, %v2451, %v2439
    %v2468 = vsel %vm547, %v2452, %v2440
    %v2469 = vsel %vm547, %v2453, %v2441
    %v2470 = vsel %vm547, %v2454, %v2442
    %v2471 = vsel %vm2435, %v2467, 0.0
    %v2472 = vsel %vm2435, %v2468, 0.0
    %v2473 = vsel %vm2435, %v2469, 0.0
    %v2474 = vsel %vm2435, %v2470, 0.0
    %v2475 = vsel %vm2436, %v2463, 0.0
    %v2476 = vsel %vm2436, %v2464, 0.0
    %v2477 = vsel %vm2436, %v2465, 0.0
    %v2478 = vsel %vm2436, %v2466, 0.0
    %v2479 = vsel %vm2437, %v2459, 0.0
    %v2480 = vsel %vm2437, %v2460, 0.0
    %v2481 = vsel %vm2437, %v2461, 0.0
    %v2482 = vsel %vm2437, %v2462, 0.0
    %v2483 = vsel %vm2438, %v2455, 0.0
    %v2484 = vsel %vm2438, %v2456, 0.0
    %v2485 = vsel %vm2438, %v2457, 0.0
    %v2486 = vsel %vm2438, %v2458, 0.0
    %vm2487 = vcmp.ne.s32.totalorder %v2431, 15
    %vm2488 = vcmp.ne.s32.totalorder %v2432, 15
    %vm2489 = vcmp.ne.s32.totalorder %v2433, 15
    %vm2490 = vcmp.ne.s32.totalorder %v2434, 15
    %v2491 = vrot.slane %v2314, 1
    %v2492 = vrot.slane %v2316, 1
    %v2493 = vrot.slane %v2367, 1
    %v2494 = vrot.slane %v2369, 1
    %v2495 = vrot.slane %v2318, 1
    %v2496 = vrot.slane %v2320, 1
    %v2497 = vrot.slane %v2371, 1
    %v2498 = vrot.slane %v2373, 1
    %v2499 = vrot.slane %v2324, 1
    %v2500 = vrot.slane %v2326, 1
    %v2501 = vrot.slane %v2377, 1
    %v2502 = vrot.slane %v2379, 1
    %v2503 = vrot.slane %v2328, 1
    %v2504 = vrot.slane %v2330, 1
    %v2505 = vrot.slane %v2381, 1
    %v2506 = vrot.slane %v2383, 1
    %v2507 = vsel %vm562, %v2499, %v2503
    %v2508 = vsel %vm562, %v2500, %v2504
    %v2509 = vsel %vm562, %v2501, %v2505
    %v2510 = vsel %vm562, %v2502, %v2506
    %v2511 = vsel %vm562, %v2495, %v2499
    %v2512 = vsel %vm562, %v2496, %v2500
    %v2513 = vsel %vm562, %v2497, %v2501
    %v2514 = vsel %vm562, %v2498, %v2502
    %v2515 = vsel %vm562, %v2491, %v2495
    %v2516 = vsel %vm562, %v2492, %v2496
    %v2517 = vsel %vm562, %v2493, %v2497
    %v2518 = vsel %vm562, %v2494, %v2498
    %v2519 = vsel %vm562, %v2503, %v2491
    %v2520 = vsel %vm562, %v2504, %v2492
    %v2521 = vsel %vm562, %v2505, %v2493
    %v2522 = vsel %vm562, %v2506, %v2494
    %v2523 = vsel %vm2487, %v2515, 0.0
    %v2524 = vsel %vm2487, %v2516, 0.0
    %v2525 = vsel %vm2487, %v2517, 0.0
    %v2526 = vsel %vm2487, %v2518, 0.0
    %v2527 = vsel %vm2488, %v2511, 0.0
    %v2528 = vsel %vm2488, %v2512, 0.0
    %v2529 = vsel %vm2488, %v2513, 0.0
    %v2530 = vsel %vm2488, %v2514, 0.0
    %v2531 = vsel %vm2489, %v2507, 0.0
    %v2532 = vsel %vm2489, %v2508, 0.0
    %v2533 = vsel %vm2489, %v2509, 0.0
    %v2534 = vsel %vm2489, %v2510, 0.0
    %v2535 = vsel %vm2490, %v2519, 0.0
    %v2536 = vsel %vm2490, %v2520, 0.0
    %v2537 = vsel %vm2490, %v2521, 0.0
    %v2538 = vsel %vm2490, %v2522, 0.0
    %v2539 = vpack.c.bf16 %v2475, %v2471
    %v2540 = vpack.c.bf16 %v2476, %v2472
    %v2541 = vpack.c.bf16 %v2477, %v2473
    %v2542 = vpack.c.bf16 %v2478, %v2474
    %v2543 = vpack.c.bf16 %v2318, %v2314
    %v2544 = vpack.c.bf16 %v2320, %v2316
    %v2545 = vpack.c.bf16 %v2371, %v2367
    %v2546 = vpack.c.bf16 %v2373, %v2369
    %v2547 = vpack.c.bf16 %v2527, %v2523
    %v2548 = vpack.c.bf16 %v2528, %v2524
    %v2549 = vpack.c.bf16 %v2529, %v2525
    %v2550 = vpack.c.bf16 %v2530, %v2526
    %v2551 = vpack.c.bf16 %v2483, %v2479
    %v2552 = vpack.c.bf16 %v2484, %v2480
    %v2553 = vpack.c.bf16 %v2485, %v2481
    %v2554 = vpack.c.bf16 %v2486, %v2482
    %v2555 = vpack.c.bf16 %v2328, %v2324
    %v2556 = vpack.c.bf16 %v2330, %v2326
    %v2557 = vpack.c.bf16 %v2381, %v2377
    %v2558 = vpack.c.bf16 %v2383, %v2379
    %v2559 = vpack.c.bf16 %v2535, %v2531
    %v2560 = vpack.c.bf16 %v2536, %v2532
    %v2561 = vpack.c.bf16 %v2537, %v2533
    %v2562 = vpack.c.bf16 %v2538, %v2534
    %v2563 = vld [vmem:[#allocation12] sm:$0xff]
    %v2564 = vld [vmem:[#allocation12 + $0x8] sm:$0xff]
    %v2565 = vld [vmem:[#allocation12 + $0x10] sm:$0xff]
    %v2566 = vld [vmem:[#allocation12 + $0x18] sm:$0xff]
    %v2567 = vld [vmem:[#allocation12 + $0x20] sm:$0xff]
    %v2568 = vld [vmem:[#allocation12 + $0x28] sm:$0xff]
    %v2569 = vld [vmem:[#allocation12 + $0x30] sm:$0xff]
    %v2570 = vld [vmem:[#allocation12 + $0x38] sm:$0xff]
    %v2571 = vld [vmem:[#allocation12 + $0x40] sm:$0xff]
    %v2572 = vld [vmem:[#allocation12 + $0x48] sm:$0xff]
    %v2573 = vld [vmem:[#allocation12 + $0x50] sm:$0xff]
    %v2574 = vld [vmem:[#allocation12 + $0x58] sm:$0xff]
    %v2575 = vld [vmem:[#allocation12 + $0x60] sm:$0xff]
    %v2576 = vld [vmem:[#allocation12 + $0x68] sm:$0xff]
    %v2577 = vld [vmem:[#allocation12 + $0x70] sm:$0xff]
    %v2578 = vld [vmem:[#allocation12 + $0x78] sm:$0xff]
    %v2579 = vld [vmem:[#allocation12 + $0x80] sm:$0xff]
    %v2580 = vld [vmem:[#allocation12 + $0x88] sm:$0xff]
    %v2581 = vld [vmem:[#allocation12 + $0x90] sm:$0xff]
    %v2582 = vld [vmem:[#allocation12 + $0x98] sm:$0xff]
    %v2583 = vld [vmem:[#allocation12 + $0xa0] sm:$0xff]
    %v2584 = vld [vmem:[#allocation12 + $0xa8] sm:$0xff]
    %v2585 = vld [vmem:[#allocation12 + $0xb0] sm:$0xff]
    %v2586 = vld [vmem:[#allocation12 + $0xb8] sm:$0xff]
    %v2587 = vld [vmem:[#allocation12 + $0xc0] sm:$0xff]
    %v2588 = vld [vmem:[#allocation12 + $0xc8] sm:$0xff]
    %v2589 = vld [vmem:[#allocation12 + $0xd0] sm:$0xff]
    %v2590 = vld [vmem:[#allocation12 + $0xd8] sm:$0xff]
    %v2591 = vld [vmem:[#allocation12 + $0xe0] sm:$0xff]
    %v2592 = vld [vmem:[#allocation12 + $0xe8] sm:$0xff]
    %v2593 = vld [vmem:[#allocation12 + $0xf0] sm:$0xff]
    %v2594 = vld [vmem:[#allocation12 + $0xf8] sm:$0xff]
    %v2595 = vld [vmem:[#allocation12 + $0x100] sm:$0xff]
    %v2596 = vld [vmem:[#allocation12 + $0x108] sm:$0xff]
    %v2597 = vld [vmem:[#allocation12 + $0x110] sm:$0xff]
    %v2598 = vld [vmem:[#allocation12 + $0x118] sm:$0xff]
    %v2599 = vld [vmem:[#allocation12 + $0x120] sm:$0xff]
    %v2600 = vld [vmem:[#allocation12 + $0x128] sm:$0xff]
    %v2601 = vld [vmem:[#allocation12 + $0x130] sm:$0xff]
    %v2602 = vld [vmem:[#allocation12 + $0x138] sm:$0xff]
    %v2603 = vld [vmem:[#allocation12 + $0x140] sm:$0xff]
    %v2604 = vld [vmem:[#allocation12 + $0x148] sm:$0xff]
    %v2605 = vld [vmem:[#allocation12 + $0x150] sm:$0xff]
    %v2606 = vld [vmem:[#allocation12 + $0x158] sm:$0xff]
    %v2607 = vld [vmem:[#allocation12 + $0x160] sm:$0xff]
    %v2608 = vld [vmem:[#allocation12 + $0x168] sm:$0xff]
    %v2609 = vld [vmem:[#allocation12 + $0x170] sm:$0xff]
    %v2610 = vld [vmem:[#allocation12 + $0x178] sm:$0xff]
    %v2611 = vld [vmem:[#allocation12 + $0x180] sm:$0xff]
    %v2612 = vld [vmem:[#allocation12 + $0x188] sm:$0xff]
    %v2613 = vld [vmem:[#allocation12 + $0x190] sm:$0xff]
    %v2614 = vld [vmem:[#allocation12 + $0x198] sm:$0xff]
    %v2615 = vld [vmem:[#allocation12 + $0x1a0] sm:$0xff]
    %v2616 = vld [vmem:[#allocation12 + $0x1a8] sm:$0xff]
    %v2617 = vld [vmem:[#allocation12 + $0x1b0] sm:$0xff]
    %v2618 = vld [vmem:[#allocation12 + $0x1b8] sm:$0xff]
    %v2619 = vld [vmem:[#allocation12 + $0x1c0] sm:$0xff]
    %v2620 = vld [vmem:[#allocation12 + $0x1c8] sm:$0xff]
    %v2621 = vld [vmem:[#allocation12 + $0x1d0] sm:$0xff]
    %v2622 = vld [vmem:[#allocation12 + $0x1d8] sm:$0xff]
    %v2623 = vld [vmem:[#allocation12 + $0x1e0] sm:$0xff]
    %v2624 = vld [vmem:[#allocation12 + $0x1e8] sm:$0xff]
    %v2625 = vld [vmem:[#allocation12 + $0x1f0] sm:$0xff]
    %v2626 = vld [vmem:[#allocation12 + $0x1f8] sm:$0xff]
    %v2627 = vld [vmem:[#allocation12 + $0x200] sm:$0xff]
    %v2628 = vld [vmem:[#allocation12 + $0x208] sm:$0xff]
    %v2629 = vld [vmem:[#allocation12 + $0x210] sm:$0xff]
    %v2630 = vld [vmem:[#allocation12 + $0x218] sm:$0xff]
    %v2631 = vld [vmem:[#allocation12 + $0x220] sm:$0xff]
    %v2632 = vld [vmem:[#allocation12 + $0x228] sm:$0xff]
    %v2633 = vld [vmem:[#allocation12 + $0x230] sm:$0xff]
    %v2634 = vld [vmem:[#allocation12 + $0x238] sm:$0xff]
    %v2635 = vld [vmem:[#allocation12 + $0x240] sm:$0xff]
    %v2636 = vld [vmem:[#allocation12 + $0x248] sm:$0xff]
    %v2637 = vld [vmem:[#allocation12 + $0x250] sm:$0xff]
    %v2638 = vld [vmem:[#allocation12 + $0x258] sm:$0xff]
    %v2639 = vld [vmem:[#allocation12 + $0x260] sm:$0xff]
    %v2640 = vld [vmem:[#allocation12 + $0x268] sm:$0xff]
    %v2641 = vld [vmem:[#allocation12 + $0x270] sm:$0xff]
    %v2642 = vld [vmem:[#allocation12 + $0x278] sm:$0xff]
    %v2643 = vld [vmem:[#allocation12 + $0x280] sm:$0xff]
    %v2644 = vld [vmem:[#allocation12 + $0x288] sm:$0xff]
    %v2645 = vld [vmem:[#allocation12 + $0x290] sm:$0xff]
    %v2646 = vld [vmem:[#allocation12 + $0x298] sm:$0xff]
    %v2647 = vld [vmem:[#allocation12 + $0x2a0] sm:$0xff]
    %v2648 = vld [vmem:[#allocation12 + $0x2a8] sm:$0xff]
    %v2649 = vld [vmem:[#allocation12 + $0x2b0] sm:$0xff]
    %v2650 = vld [vmem:[#allocation12 + $0x2b8] sm:$0xff]
    %v2651 = vld [vmem:[#allocation12 + $0x2c0] sm:$0xff]
    %v2652 = vld [vmem:[#allocation12 + $0x2c8] sm:$0xff]
    %v2653 = vld [vmem:[#allocation12 + $0x2d0] sm:$0xff]
    %v2654 = vld [vmem:[#allocation12 + $0x2d8] sm:$0xff]
    %v2655 = vld [vmem:[#allocation12 + $0x2e0] sm:$0xff]
    %v2656 = vld [vmem:[#allocation12 + $0x2e8] sm:$0xff]
    %v2657 = vld [vmem:[#allocation12 + $0x2f0] sm:$0xff]
    %v2658 = vld [vmem:[#allocation12 + $0x2f8] sm:$0xff]
    %v2659 = vld [vmem:[#allocation12 + $0x300] sm:$0xff]
    %v2660 = vld [vmem:[#allocation12 + $0x308] sm:$0xff]
    %v2661 = vld [vmem:[#allocation12 + $0x310] sm:$0xff]
    %v2662 = vld [vmem:[#allocation12 + $0x318] sm:$0xff]
    %v2663 = vld [vmem:[#allocation12 + $0x320] sm:$0xff]
    %v2664 = vld [vmem:[#allocation12 + $0x328] sm:$0xff]
    %v2665 = vld [vmem:[#allocation12 + $0x330] sm:$0xff]
    %v2666 = vld [vmem:[#allocation12 + $0x338] sm:$0xff]
    %v2667 = vld [vmem:[#allocation12 + $0x340] sm:$0xff]
    %v2668 = vld [vmem:[#allocation12 + $0x348] sm:$0xff]
    %v2669 = vld [vmem:[#allocation12 + $0x350] sm:$0xff]
    %v2670 = vld [vmem:[#allocation12 + $0x358] sm:$0xff]
    %v2671 = vld [vmem:[#allocation12 + $0x360] sm:$0xff]
    %v2672 = vld [vmem:[#allocation12 + $0x368] sm:$0xff]
    %v2673 = vld [vmem:[#allocation12 + $0x370] sm:$0xff]
    %v2674 = vld [vmem:[#allocation12 + $0x378] sm:$0xff]
    %v2675 = vld [vmem:[#allocation12 + $0x380] sm:$0xff]
    %v2676 = vld [vmem:[#allocation12 + $0x388] sm:$0xff]
    %v2677 = vld [vmem:[#allocation12 + $0x390] sm:$0xff]
    %v2678 = vld [vmem:[#allocation12 + $0x398] sm:$0xff]
    %v2679 = vld [vmem:[#allocation12 + $0x3a0] sm:$0xff]
    %v2680 = vld [vmem:[#allocation12 + $0x3a8] sm:$0xff]
    %v2681 = vld [vmem:[#allocation12 + $0x3b0] sm:$0xff]
    %v2682 = vld [vmem:[#allocation12 + $0x3b8] sm:$0xff]
    %v2683 = vld [vmem:[#allocation12 + $0x3c0] sm:$0xff]
    %v2684 = vld [vmem:[#allocation12 + $0x3c8] sm:$0xff]
    %v2685 = vld [vmem:[#allocation12 + $0x3d0] sm:$0xff]
    %v2686 = vld [vmem:[#allocation12 + $0x3d8] sm:$0xff]
    %v2687 = vld [vmem:[#allocation12 + $0x3e0] sm:$0xff]
    %v2688 = vld [vmem:[#allocation12 + $0x3e8] sm:$0xff]
    %v2689 = vld [vmem:[#allocation12 + $0x3f0] sm:$0xff]
    %v2690 = vld [vmem:[#allocation12 + $0x3f8] sm:$0xff]
    %v2691 = vld [vmem:[#allocation12 + $0x400] sm:$0xff]
    %v2692 = vld [vmem:[#allocation12 + $0x408] sm:$0xff]
    %v2693 = vld [vmem:[#allocation12 + $0x410] sm:$0xff]
    %v2694 = vld [vmem:[#allocation12 + $0x418] sm:$0xff]
    %v2695 = vld [vmem:[#allocation12 + $0x420] sm:$0xff]
    %v2696 = vld [vmem:[#allocation12 + $0x428] sm:$0xff]
    %v2697 = vld [vmem:[#allocation12 + $0x430] sm:$0xff]
    %v2698 = vld [vmem:[#allocation12 + $0x438] sm:$0xff]
    %v2699 = vld [vmem:[#allocation12 + $0x440] sm:$0xff]
    %v2700 = vld [vmem:[#allocation12 + $0x448] sm:$0xff]
    %v2701 = vld [vmem:[#allocation12 + $0x450] sm:$0xff]
    %v2702 = vld [vmem:[#allocation12 + $0x458] sm:$0xff]
    %v2703 = vld [vmem:[#allocation12 + $0x460] sm:$0xff]
    %v2704 = vld [vmem:[#allocation12 + $0x468] sm:$0xff]
    %v2705 = vld [vmem:[#allocation12 + $0x470] sm:$0xff]
    %v2706 = vld [vmem:[#allocation12 + $0x478] sm:$0xff]
    %v2707 = vld [vmem:[#allocation12 + $0x480] sm:$0xff]
    %v2708 = vld [vmem:[#allocation12 + $0x488] sm:$0xff]
    %v2709 = vld [vmem:[#allocation12 + $0x490] sm:$0xff]
    %v2710 = vld [vmem:[#allocation12 + $0x498] sm:$0xff]
    %v2711 = vld [vmem:[#allocation12 + $0x4a0] sm:$0xff]
    %v2712 = vld [vmem:[#allocation12 + $0x4a8] sm:$0xff]
    %v2713 = vld [vmem:[#allocation12 + $0x4b0] sm:$0xff]
    %v2714 = vld [vmem:[#allocation12 + $0x4b8] sm:$0xff]
    %v2715 = vld [vmem:[#allocation12 + $0x4c0] sm:$0xff]
    %v2716 = vld [vmem:[#allocation12 + $0x4c8] sm:$0xff]
    %v2717 = vld [vmem:[#allocation12 + $0x4d0] sm:$0xff]
    %v2718 = vld [vmem:[#allocation12 + $0x4d8] sm:$0xff]
    %v2719 = vld [vmem:[#allocation12 + $0x4e0] sm:$0xff]
    %v2720 = vld [vmem:[#allocation12 + $0x4e8] sm:$0xff]
    %v2721 = vld [vmem:[#allocation12 + $0x4f0] sm:$0xff]
    %v2722 = vld [vmem:[#allocation12 + $0x4f8] sm:$0xff]
    %v2723 = vld [vmem:[#allocation12 + $0x500] sm:$0xff]
    %v2724 = vld [vmem:[#allocation12 + $0x508] sm:$0xff]
    %v2725 = vld [vmem:[#allocation12 + $0x510] sm:$0xff]
    %v2726 = vld [vmem:[#allocation12 + $0x518] sm:$0xff]
    %v2727 = vld [vmem:[#allocation12 + $0x520] sm:$0xff]
    %v2728 = vld [vmem:[#allocation12 + $0x528] sm:$0xff]
    %v2729 = vld [vmem:[#allocation12 + $0x530] sm:$0xff]
    %v2730 = vld [vmem:[#allocation12 + $0x538] sm:$0xff]
    %v2731 = vld [vmem:[#allocation12 + $0x540] sm:$0xff]
    %v2732 = vld [vmem:[#allocation12 + $0x548] sm:$0xff]
    %v2733 = vld [vmem:[#allocation12 + $0x550] sm:$0xff]
    %v2734 = vld [vmem:[#allocation12 + $0x558] sm:$0xff]
    %v2735 = vld [vmem:[#allocation12 + $0x560] sm:$0xff]
    %v2736 = vld [vmem:[#allocation12 + $0x568] sm:$0xff]
    %v2737 = vld [vmem:[#allocation12 + $0x570] sm:$0xff]
    %v2738 = vld [vmem:[#allocation12 + $0x578] sm:$0xff]
    %v2739 = vld [vmem:[#allocation12 + $0x580] sm:$0xff]
    %v2740 = vld [vmem:[#allocation12 + $0x588] sm:$0xff]
    %v2741 = vld [vmem:[#allocation12 + $0x590] sm:$0xff]
    %v2742 = vld [vmem:[#allocation12 + $0x598] sm:$0xff]
    %v2743 = vld [vmem:[#allocation12 + $0x5a0] sm:$0xff]
    %v2744 = vld [vmem:[#allocation12 + $0x5a8] sm:$0xff]
    %v2745 = vld [vmem:[#allocation12 + $0x5b0] sm:$0xff]
    %v2746 = vld [vmem:[#allocation12 + $0x5b8] sm:$0xff]
    %v2747 = vld [vmem:[#allocation12 + $0x5c0] sm:$0xff]
    %v2748 = vld [vmem:[#allocation12 + $0x5c8] sm:$0xff]
    %v2749 = vld [vmem:[#allocation12 + $0x5d0] sm:$0xff]
    %v2750 = vld [vmem:[#allocation12 + $0x5d8] sm:$0xff]
    %v2751 = vld [vmem:[#allocation12 + $0x5e0] sm:$0xff]
    %v2752 = vld [vmem:[#allocation12 + $0x5e8] sm:$0xff]
    %v2753 = vld [vmem:[#allocation12 + $0x5f0] sm:$0xff]
    %v2754 = vld [vmem:[#allocation12 + $0x5f8] sm:$0xff]
    %v2947 = vunpack.c.l.b16 %v2563
    %v2948 = vunpack.c.h.b16 %v2563
    %v2949 = vunpack.c.l.b16 %v2564
    %v2950 = vunpack.c.h.b16 %v2564
    %v2951 = vunpack.c.l.b16 %v2565
    %v2952 = vunpack.c.h.b16 %v2565
    %v2953 = vunpack.c.l.b16 %v2566
    %v2954 = vunpack.c.h.b16 %v2566
    %v2955 = vunpack.c.l.b16 %v2567
    %v2956 = vunpack.c.h.b16 %v2567
    %v2957 = vunpack.c.l.b16 %v2568
    %v2958 = vunpack.c.h.b16 %v2568
    %v2959 = vunpack.c.l.b16 %v2569
    %v2960 = vunpack.c.h.b16 %v2569
    %v2961 = vunpack.c.l.b16 %v2570
    %v2962 = vunpack.c.h.b16 %v2570
    %v2963 = vunpack.c.l.b16 %v2571
    %v2964 = vunpack.c.h.b16 %v2571
    %v2965 = vunpack.c.l.b16 %v2572
    %v2966 = vunpack.c.h.b16 %v2572
    %v2967 = vunpack.c.l.b16 %v2573
    %v2968 = vunpack.c.h.b16 %v2573
    %v2969 = vunpack.c.l.b16 %v2574
    %v2970 = vunpack.c.h.b16 %v2574
    %v2971 = vunpack.c.l.b16 %v2575
    %v2972 = vunpack.c.h.b16 %v2575
    %v2973 = vunpack.c.l.b16 %v2576
    %v2974 = vunpack.c.h.b16 %v2576
    %v2975 = vunpack.c.l.b16 %v2577
    %v2976 = vunpack.c.h.b16 %v2577
    %v2977 = vunpack.c.l.b16 %v2578
    %v2978 = vunpack.c.h.b16 %v2578
    %v2979 = vunpack.c.l.b16 %v2579
    %v2980 = vunpack.c.h.b16 %v2579
    %v2981 = vunpack.c.l.b16 %v2580
    %v2982 = vunpack.c.h.b16 %v2580
    %v2983 = vunpack.c.l.b16 %v2581
    %v2984 = vunpack.c.h.b16 %v2581
    %v2985 = vunpack.c.l.b16 %v2582
    %v2986 = vunpack.c.h.b16 %v2582
    %v2987 = vunpack.c.l.b16 %v2583
    %v2988 = vunpack.c.h.b16 %v2583
    %v2989 = vunpack.c.l.b16 %v2584
    %v2990 = vunpack.c.h.b16 %v2584
    %v2991 = vunpack.c.l.b16 %v2585
    %v2992 = vunpack.c.h.b16 %v2585
    %v2993 = vunpack.c.l.b16 %v2586
    %v2994 = vunpack.c.h.b16 %v2586
    %v2995 = vunpack.c.l.b16 %v2587
    %v2996 = vunpack.c.h.b16 %v2587
    %v2997 = vunpack.c.l.b16 %v2588
    %v2998 = vunpack.c.h.b16 %v2588
    %v2999 = vunpack.c.l.b16 %v2589
    %v3000 = vunpack.c.h.b16 %v2589
    %v3001 = vunpack.c.l.b16 %v2590
    %v3002 = vunpack.c.h.b16 %v2590
    %v3003 = vunpack.c.l.b16 %v2591
    %v3004 = vunpack.c.h.b16 %v2591
    %v3005 = vunpack.c.l.b16 %v2592
    %v3006 = vunpack.c.h.b16 %v2592
    %v3007 = vunpack.c.l.b16 %v2593
    %v3008 = vunpack.c.h.b16 %v2593
    %v3009 = vunpack.c.l.b16 %v2594
    %v3010 = vunpack.c.h.b16 %v2594
    %v3011 = vunpack.c.l.b16 %v2595
    %v3012 = vunpack.c.h.b16 %v2595
    %v3013 = vunpack.c.l.b16 %v2596
    %v3014 = vunpack.c.h.b16 %v2596
    %v3015 = vunpack.c.l.b16 %v2597
    %v3016 = vunpack.c.h.b16 %v2597
    %v3017 = vunpack.c.l.b16 %v2598
    %v3018 = vunpack.c.h.b16 %v2598
    %v3019 = vunpack.c.l.b16 %v2599
    %v3020 = vunpack.c.h.b16 %v2599
    %v3021 = vunpack.c.l.b16 %v2600
    %v3022 = vunpack.c.h.b16 %v2600
    %v3023 = vunpack.c.l.b16 %v2601
    %v3024 = vunpack.c.h.b16 %v2601
    %v3025 = vunpack.c.l.b16 %v2602
    %v3026 = vunpack.c.h.b16 %v2602
    %v3027 = vunpack.c.l.b16 %v2603
    %v3028 = vunpack.c.h.b16 %v2603
    %v3029 = vunpack.c.l.b16 %v2604
    %v3030 = vunpack.c.h.b16 %v2604
    %v3031 = vunpack.c.l.b16 %v2605
    %v3032 = vunpack.c.h.b16 %v2605
    %v3033 = vunpack.c.l.b16 %v2606
    %v3034 = vunpack.c.h.b16 %v2606
    %v3035 = vunpack.c.l.b16 %v2607
    %v3036 = vunpack.c.h.b16 %v2607
    %v3037 = vunpack.c.l.b16 %v2608
    %v3038 = vunpack.c.h.b16 %v2608
    %v3039 = vunpack.c.l.b16 %v2609
    %v3040 = vunpack.c.h.b16 %v2609
    %v3041 = vunpack.c.l.b16 %v2610
    %v3042 = vunpack.c.h.b16 %v2610
    %v3043 = vunpack.c.l.b16 %v2611
    %v3044 = vunpack.c.h.b16 %v2611
    %v3045 = vunpack.c.l.b16 %v2612
    %v3046 = vunpack.c.h.b16 %v2612
    %v3047 = vunpack.c.l.b16 %v2613
    %v3048 = vunpack.c.h.b16 %v2613
    %v3049 = vunpack.c.l.b16 %v2614
    %v3050 = vunpack.c.h.b16 %v2614
    %v3051 = vunpack.c.l.b16 %v2615
    %v3052 = vunpack.c.h.b16 %v2615
    %v3053 = vunpack.c.l.b16 %v2616
    %v3054 = vunpack.c.h.b16 %v2616
    %v3055 = vunpack.c.l.b16 %v2617
    %v3056 = vunpack.c.h.b16 %v2617
    %v3057 = vunpack.c.l.b16 %v2618
    %v3058 = vunpack.c.h.b16 %v2618
    %v3059 = vunpack.c.l.b16 %v2619
    %v3060 = vunpack.c.h.b16 %v2619
    %v3061 = vunpack.c.l.b16 %v2620
    %v3062 = vunpack.c.h.b16 %v2620
    %v3063 = vunpack.c.l.b16 %v2621
    %v3064 = vunpack.c.h.b16 %v2621
    %v3065 = vunpack.c.l.b16 %v2622
    %v3066 = vunpack.c.h.b16 %v2622
    %v3067 = vunpack.c.l.b16 %v2623
    %v3068 = vunpack.c.h.b16 %v2623
    %v3069 = vunpack.c.l.b16 %v2624
    %v3070 = vunpack.c.h.b16 %v2624
    %v3071 = vunpack.c.l.b16 %v2625
    %v3072 = vunpack.c.h.b16 %v2625
    %v3073 = vunpack.c.l.b16 %v2626
    %v3074 = vunpack.c.h.b16 %v2626
    %v3075 = vunpack.c.l.b16 %v2627
    %v3076 = vunpack.c.h.b16 %v2627
    %v3077 = vunpack.c.l.b16 %v2628
    %v3078 = vunpack.c.h.b16 %v2628
    %v3079 = vunpack.c.l.b16 %v2629
    %v3080 = vunpack.c.h.b16 %v2629
    %v3081 = vunpack.c.l.b16 %v2630
    %v3082 = vunpack.c.h.b16 %v2630
    %v3083 = vunpack.c.l.b16 %v2631
    %v3084 = vunpack.c.h.b16 %v2631
    %v3085 = vunpack.c.l.b16 %v2632
    %v3086 = vunpack.c.h.b16 %v2632
    %v3087 = vunpack.c.l.b16 %v2633
    %v3088 = vunpack.c.h.b16 %v2633
    %v3089 = vunpack.c.l.b16 %v2634
    %v3090 = vunpack.c.h.b16 %v2634
    %v3091 = vunpack.c.l.b16 %v2635
    %v3092 = vunpack.c.h.b16 %v2635
    %v3093 = vunpack.c.l.b16 %v2636
    %v3094 = vunpack.c.h.b16 %v2636
    %v3095 = vunpack.c.l.b16 %v2637
    %v3096 = vunpack.c.h.b16 %v2637
    %v3097 = vunpack.c.l.b16 %v2638
    %v3098 = vunpack.c.h.b16 %v2638
    %v3099 = vunpack.c.l.b16 %v2639
    %v3100 = vunpack.c.h.b16 %v2639
    %v3101 = vunpack.c.l.b16 %v2640
    %v3102 = vunpack.c.h.b16 %v2640
    %v3103 = vunpack.c.l.b16 %v2641
    %v3104 = vunpack.c.h.b16 %v2641
    %v3105 = vunpack.c.l.b16 %v2642
    %v3106 = vunpack.c.h.b16 %v2642
    %v3107 = vunpack.c.l.b16 %v2643
    %v3108 = vunpack.c.h.b16 %v2643
    %v3109 = vunpack.c.l.b16 %v2644
    %v3110 = vunpack.c.h.b16 %v2644
    %v3111 = vunpack.c.l.b16 %v2645
    %v3112 = vunpack.c.h.b16 %v2645
    %v3113 = vunpack.c.l.b16 %v2646
    %v3114 = vunpack.c.h.b16 %v2646
    %v3115 = vunpack.c.l.b16 %v2647
    %v3116 = vunpack.c.h.b16 %v2647
    %v3117 = vunpack.c.l.b16 %v2648
    %v3118 = vunpack.c.h.b16 %v2648
    %v3119 = vunpack.c.l.b16 %v2649
    %v3120 = vunpack.c.h.b16 %v2649
    %v3121 = vunpack.c.l.b16 %v2650
    %v3122 = vunpack.c.h.b16 %v2650
    %v3123 = vunpack.c.l.b16 %v2651
    %v3124 = vunpack.c.h.b16 %v2651
    %v3125 = vunpack.c.l.b16 %v2652
    %v3126 = vunpack.c.h.b16 %v2652
    %v3127 = vunpack.c.l.b16 %v2653
    %v3128 = vunpack.c.h.b16 %v2653
    %v3129 = vunpack.c.l.b16 %v2654
    %v3130 = vunpack.c.h.b16 %v2654
    %v3131 = vunpack.c.l.b16 %v2655
    %v3132 = vunpack.c.h.b16 %v2655
    %v3133 = vunpack.c.l.b16 %v2656
    %v3134 = vunpack.c.h.b16 %v2656
    %v3135 = vunpack.c.l.b16 %v2657
    %v3136 = vunpack.c.h.b16 %v2657
    %v3137 = vunpack.c.l.b16 %v2658
    %v3138 = vunpack.c.h.b16 %v2658
    %v3139 = vunpack.c.l.b16 %v2659
    %v3140 = vunpack.c.h.b16 %v2659
    %v3141 = vunpack.c.l.b16 %v2660
    %v3142 = vunpack.c.h.b16 %v2660
    %v3143 = vunpack.c.l.b16 %v2661
    %v3144 = vunpack.c.h.b16 %v2661
    %v3145 = vunpack.c.l.b16 %v2662
    %v3146 = vunpack.c.h.b16 %v2662
    %v3147 = vunpack.c.l.b16 %v2663
    %v3148 = vunpack.c.h.b16 %v2663
    %v3149 = vunpack.c.l.b16 %v2664
    %v3150 = vunpack.c.h.b16 %v2664
    %v3151 = vunpack.c.l.b16 %v2665
    %v3152 = vunpack.c.h.b16 %v2665
    %v3153 = vunpack.c.l.b16 %v2666
    %v3154 = vunpack.c.h.b16 %v2666
    %v3155 = vunpack.c.l.b16 %v2667
    %v3156 = vunpack.c.h.b16 %v2667
    %v3157 = vunpack.c.l.b16 %v2668
    %v3158 = vunpack.c.h.b16 %v2668
    %v3159 = vunpack.c.l.b16 %v2669
    %v3160 = vunpack.c.h.b16 %v2669
    %v3161 = vunpack.c.l.b16 %v2670
    %v3162 = vunpack.c.h.b16 %v2670
    %v3163 = vunpack.c.l.b16 %v2671
    %v3164 = vunpack.c.h.b16 %v2671
    %v3165 = vunpack.c.l.b16 %v2672
    %v3166 = vunpack.c.h.b16 %v2672
    %v3167 = vunpack.c.l.b16 %v2673
    %v3168 = vunpack.c.h.b16 %v2673
    %v3169 = vunpack.c.l.b16 %v2674
    %v3170 = vunpack.c.h.b16 %v2674
    %v3171 = vunpack.c.l.b16 %v2675
    %v3172 = vunpack.c.h.b16 %v2675
    %v3173 = vunpack.c.l.b16 %v2676
    %v3174 = vunpack.c.h.b16 %v2676
    %v3175 = vunpack.c.l.b16 %v2677
    %v3176 = vunpack.c.h.b16 %v2677
    %v3177 = vunpack.c.l.b16 %v2678
    %v3178 = vunpack.c.h.b16 %v2678
    %v3179 = vunpack.c.l.b16 %v2679
    %v3180 = vunpack.c.h.b16 %v2679
    %v3181 = vunpack.c.l.b16 %v2680
    %v3182 = vunpack.c.h.b16 %v2680
    %v3183 = vunpack.c.l.b16 %v2681
    %v3184 = vunpack.c.h.b16 %v2681
    %v3185 = vunpack.c.l.b16 %v2682
    %v3186 = vunpack.c.h.b16 %v2682
    %v3187 = vunpack.c.l.b16 %v2683
    %v3188 = vunpack.c.h.b16 %v2683
    %v3189 = vunpack.c.l.b16 %v2684
    %v3190 = vunpack.c.h.b16 %v2684
    %v3191 = vunpack.c.l.b16 %v2685
    %v3192 = vunpack.c.h.b16 %v2685
    %v3193 = vunpack.c.l.b16 %v2686
    %v3194 = vunpack.c.h.b16 %v2686
    %v3195 = vunpack.c.l.b16 %v2687
    %v3196 = vunpack.c.h.b16 %v2687
    %v3197 = vunpack.c.l.b16 %v2688
    %v3198 = vunpack.c.h.b16 %v2688
    %v3199 = vunpack.c.l.b16 %v2689
    %v3200 = vunpack.c.h.b16 %v2689
    %v3201 = vunpack.c.l.b16 %v2690
    %v3202 = vunpack.c.h.b16 %v2690
    %v3203 = vunpack.c.l.b16 %v2691
    %v3204 = vunpack.c.h.b16 %v2691
    %v3205 = vunpack.c.l.b16 %v2692
    %v3206 = vunpack.c.h.b16 %v2692
    %v3207 = vunpack.c.l.b16 %v2693
    %v3208 = vunpack.c.h.b16 %v2693
    %v3209 = vunpack.c.l.b16 %v2694
    %v3210 = vunpack.c.h.b16 %v2694
    %v3211 = vunpack.c.l.b16 %v2695
    %v3212 = vunpack.c.h.b16 %v2695
    %v3213 = vunpack.c.l.b16 %v2696
    %v3214 = vunpack.c.h.b16 %v2696
    %v3215 = vunpack.c.l.b16 %v2697
    %v3216 = vunpack.c.h.b16 %v2697
    %v3217 = vunpack.c.l.b16 %v2698
    %v3218 = vunpack.c.h.b16 %v2698
    %v3219 = vunpack.c.l.b16 %v2699
    %v3220 = vunpack.c.h.b16 %v2699
    %v3221 = vunpack.c.l.b16 %v2700
    %v3222 = vunpack.c.h.b16 %v2700
    %v3223 = vunpack.c.l.b16 %v2701
    %v3224 = vunpack.c.h.b16 %v2701
    %v3225 = vunpack.c.l.b16 %v2702
    %v3226 = vunpack.c.h.b16 %v2702
    %v3227 = vunpack.c.l.b16 %v2703
    %v3228 = vunpack.c.h.b16 %v2703
    %v3229 = vunpack.c.l.b16 %v2704
    %v3230 = vunpack.c.h.b16 %v2704
    %v3231 = vunpack.c.l.b16 %v2705
    %v3232 = vunpack.c.h.b16 %v2705
    %v3233 = vunpack.c.l.b16 %v2706
    %v3234 = vunpack.c.h.b16 %v2706
    %v3235 = vunpack.c.l.b16 %v2707
    %v3236 = vunpack.c.h.b16 %v2707
    %v3237 = vunpack.c.l.b16 %v2708
    %v3238 = vunpack.c.h.b16 %v2708
    %v3239 = vunpack.c.l.b16 %v2709
    %v3240 = vunpack.c.h.b16 %v2709
    %v3241 = vunpack.c.l.b16 %v2710
    %v3242 = vunpack.c.h.b16 %v2710
    %v3243 = vunpack.c.l.b16 %v2711
    %v3244 = vunpack.c.h.b16 %v2711
    %v3245 = vunpack.c.l.b16 %v2712
    %v3246 = vunpack.c.h.b16 %v2712
    %v3247 = vunpack.c.l.b16 %v2713
    %v3248 = vunpack.c.h.b16 %v2713
    %v3249 = vunpack.c.l.b16 %v2714
    %v3250 = vunpack.c.h.b16 %v2714
    %v3251 = vunpack.c.l.b16 %v2715
    %v3252 = vunpack.c.h.b16 %v2715
    %v3253 = vunpack.c.l.b16 %v2716
    %v3254 = vunpack.c.h.b16 %v2716
    %v3255 = vunpack.c.l.b16 %v2717
    %v3256 = vunpack.c.h.b16 %v2717
    %v3257 = vunpack.c.l.b16 %v2718
    %v3258 = vunpack.c.h.b16 %v2718
    %v3259 = vunpack.c.l.b16 %v2719
    %v3260 = vunpack.c.h.b16 %v2719
    %v3261 = vunpack.c.l.b16 %v2720
    %v3262 = vunpack.c.h.b16 %v2720
    %v3263 = vunpack.c.l.b16 %v2721
    %v3264 = vunpack.c.h.b16 %v2721
    %v3265 = vunpack.c.l.b16 %v2722
    %v3266 = vunpack.c.h.b16 %v2722
    %v3267 = vunpack.c.l.b16 %v2723
    %v3268 = vunpack.c.h.b16 %v2723
    %v3269 = vunpack.c.l.b16 %v2724
    %v3270 = vunpack.c.h.b16 %v2724
    %v3271 = vunpack.c.l.b16 %v2725
    %v3272 = vunpack.c.h.b16 %v2725
    %v3273 = vunpack.c.l.b16 %v2726
    %v3274 = vunpack.c.h.b16 %v2726
    %v3275 = vunpack.c.l.b16 %v2727
    %v3276 = vunpack.c.h.b16 %v2727
    %v3277 = vunpack.c.l.b16 %v2728
    %v3278 = vunpack.c.h.b16 %v2728
    %v3279 = vunpack.c.l.b16 %v2729
    %v3280 = vunpack.c.h.b16 %v2729
    %v3281 = vunpack.c.l.b16 %v2730
    %v3282 = vunpack.c.h.b16 %v2730
    %v3283 = vunpack.c.l.b16 %v2731
    %v3284 = vunpack.c.h.b16 %v2731
    %v3285 = vunpack.c.l.b16 %v2732
    %v3286 = vunpack.c.h.b16 %v2732
    %v3287 = vunpack.c.l.b16 %v2733
    %v3288 = vunpack.c.h.b16 %v2733
    %v3289 = vunpack.c.l.b16 %v2734
    %v3290 = vunpack.c.h.b16 %v2734
    %v3291 = vunpack.c.l.b16 %v2735
    %v3292 = vunpack.c.h.b16 %v2735
    %v3293 = vunpack.c.l.b16 %v2736
    %v3294 = vunpack.c.h.b16 %v2736
    %v3295 = vunpack.c.l.b16 %v2737
    %v3296 = vunpack.c.h.b16 %v2737
    %v3297 = vunpack.c.l.b16 %v2738
    %v3298 = vunpack.c.h.b16 %v2738
    %v3299 = vunpack.c.l.b16 %v2739
    %v3300 = vunpack.c.h.b16 %v2739
    %v3301 = vunpack.c.l.b16 %v2740
    %v3302 = vunpack.c.h.b16 %v2740
    %v3303 = vunpack.c.l.b16 %v2741
    %v3304 = vunpack.c.h.b16 %v2741
    %v3305 = vunpack.c.l.b16 %v2742
    %v3306 = vunpack.c.h.b16 %v2742
    %v3307 = vunpack.c.l.b16 %v2743
    %v3308 = vunpack.c.h.b16 %v2743
    %v3309 = vunpack.c.l.b16 %v2744
    %v3310 = vunpack.c.h.b16 %v2744
    %v3311 = vunpack.c.l.b16 %v2745
    %v3312 = vunpack.c.h.b16 %v2745
    %v3313 = vunpack.c.l.b16 %v2746
    %v3314 = vunpack.c.h.b16 %v2746
    %v3315 = vunpack.c.l.b16 %v2747
    %v3316 = vunpack.c.h.b16 %v2747
    %v3317 = vunpack.c.l.b16 %v2748
    %v3318 = vunpack.c.h.b16 %v2748
    %v3319 = vunpack.c.l.b16 %v2749
    %v3320 = vunpack.c.h.b16 %v2749
    %v3321 = vunpack.c.l.b16 %v2750
    %v3322 = vunpack.c.h.b16 %v2750
    %v3323 = vunpack.c.l.b16 %v2751
    %v3324 = vunpack.c.h.b16 %v2751
    %v3325 = vunpack.c.l.b16 %v2752
    %v3326 = vunpack.c.h.b16 %v2752
    %v3327 = vunpack.c.l.b16 %v2753
    %v3328 = vunpack.c.h.b16 %v2753
    %v3329 = vunpack.c.l.b16 %v2754
    %v3330 = vunpack.c.h.b16 %v2754
    %v3331 = vpack.c.b16 %v2949, %v2947
    %v3332 = vpack.c.b16 %v2950, %v2948
    %v3333 = vpack.c.b16 %v2953, %v2951
    %v3334 = vpack.c.b16 %v2954, %v2952
    %v3335 = vpack.c.b16 %v2957, %v2955
    %v3336 = vpack.c.b16 %v2958, %v2956
    %v3337 = vpack.c.b16 %v2961, %v2959
    %v3338 = vpack.c.b16 %v2962, %v2960
    %v3339 = vpack.c.b16 %v2965, %v2963
    %v3340 = vpack.c.b16 %v2966, %v2964
    %v3341 = vpack.c.b16 %v2969, %v2967
    %v3342 = vpack.c.b16 %v2970, %v2968
    %v3343 = vpack.c.b16 %v2973, %v2971
    %v3344 = vpack.c.b16 %v2974, %v2972
    %v3345 = vpack.c.b16 %v2977, %v2975
    %v3346 = vpack.c.b16 %v2978, %v2976
    %v3347 = vpack.c.b16 %v2981, %v2979
    %v3348 = vpack.c.b16 %v2982, %v2980
    %v3349 = vpack.c.b16 %v2985, %v2983
    %v3350 = vpack.c.b16 %v2986, %v2984
    %v3351 = vpack.c.b16 %v2989, %v2987
    %v3352 = vpack.c.b16 %v2990, %v2988
    %v3353 = vpack.c.b16 %v2993, %v2991
    %v3354 = vpack.c.b16 %v2994, %v2992
    %v3355 = vpack.c.b16 %v2997, %v2995
    %v3356 = vpack.c.b16 %v2998, %v2996
    %v3357 = vpack.c.b16 %v3001, %v2999
    %v3358 = vpack.c.b16 %v3002, %v3000
    %v3359 = vpack.c.b16 %v3005, %v3003
    %v3360 = vpack.c.b16 %v3006, %v3004
    %v3361 = vpack.c.b16 %v3009, %v3007
    %v3362 = vpack.c.b16 %v3010, %v3008
    %v3363 = vpack.c.b16 %v3013, %v3011
    %v3364 = vpack.c.b16 %v3014, %v3012
    %v3365 = vpack.c.b16 %v3017, %v3015
    %v3366 = vpack.c.b16 %v3018, %v3016
    %v3367 = vpack.c.b16 %v3021, %v3019
    %v3368 = vpack.c.b16 %v3022, %v3020
    %v3369 = vpack.c.b16 %v3025, %v3023
    %v3370 = vpack.c.b16 %v3026, %v3024
    %v3371 = vpack.c.b16 %v3029, %v3027
    %v3372 = vpack.c.b16 %v3030, %v3028
    %v3373 = vpack.c.b16 %v3033, %v3031
    %v3374 = vpack.c.b16 %v3034, %v3032
    %v3375 = vpack.c.b16 %v3037, %v3035
    %v3376 = vpack.c.b16 %v3038, %v3036
    %v3377 = vpack.c.b16 %v3041, %v3039
    %v3378 = vpack.c.b16 %v3042, %v3040
    %v3379 = vpack.c.b16 %v3045, %v3043
    %v3380 = vpack.c.b16 %v3046, %v3044
    %v3381 = vpack.c.b16 %v3049, %v3047
    %v3382 = vpack.c.b16 %v3050, %v3048
    %v3383 = vpack.c.b16 %v3053, %v3051
    %v3384 = vpack.c.b16 %v3054, %v3052
    %v3385 = vpack.c.b16 %v3057, %v3055
    %v3386 = vpack.c.b16 %v3058, %v3056
    %v3387 = vpack.c.b16 %v3061, %v3059
    %v3388 = vpack.c.b16 %v3062, %v3060
    %v3389 = vpack.c.b16 %v3065, %v3063
    %v3390 = vpack.c.b16 %v3066, %v3064
    %v3391 = vpack.c.b16 %v3069, %v3067
    %v3392 = vpack.c.b16 %v3070, %v3068
    %v3393 = vpack.c.b16 %v3073, %v3071
    %v3394 = vpack.c.b16 %v3074, %v3072
    %v3395 = vpack.c.b16 %v3077, %v3075
    %v3396 = vpack.c.b16 %v3078, %v3076
    %v3397 = vpack.c.b16 %v3081, %v3079
    %v3398 = vpack.c.b16 %v3082, %v3080
    %v3399 = vpack.c.b16 %v3085, %v3083
    %v3400 = vpack.c.b16 %v3086, %v3084
    %v3401 = vpack.c.b16 %v3089, %v3087
    %v3402 = vpack.c.b16 %v3090, %v3088
    %v3403 = vpack.c.b16 %v3093, %v3091
    %v3404 = vpack.c.b16 %v3094, %v3092
    %v3405 = vpack.c.b16 %v3097, %v3095
    %v3406 = vpack.c.b16 %v3098, %v3096
    %v3407 = vpack.c.b16 %v3101, %v3099
    %v3408 = vpack.c.b16 %v3102, %v3100
    %v3409 = vpack.c.b16 %v3105, %v3103
    %v3410 = vpack.c.b16 %v3106, %v3104
    %v3411 = vpack.c.b16 %v3109, %v3107
    %v3412 = vpack.c.b16 %v3110, %v3108
    %v3413 = vpack.c.b16 %v3113, %v3111
    %v3414 = vpack.c.b16 %v3114, %v3112
    %v3415 = vpack.c.b16 %v3117, %v3115
    %v3416 = vpack.c.b16 %v3118, %v3116
    %v3417 = vpack.c.b16 %v3121, %v3119
    %v3418 = vpack.c.b16 %v3122, %v3120
    %v3419 = vpack.c.b16 %v3125, %v3123
    %v3420 = vpack.c.b16 %v3126, %v3124
    %v3421 = vpack.c.b16 %v3129, %v3127
    %v3422 = vpack.c.b16 %v3130, %v3128
    %v3423 = vpack.c.b16 %v3133, %v3131
    %v3424 = vpack.c.b16 %v3134, %v3132
    %v3425 = vpack.c.b16 %v3137, %v3135
    %v3426 = vpack.c.b16 %v3138, %v3136
    %v3427 = vpack.c.b16 %v3141, %v3139
    %v3428 = vpack.c.b16 %v3142, %v3140
    %v3429 = vpack.c.b16 %v3145, %v3143
    %v3430 = vpack.c.b16 %v3146, %v3144
    %v3431 = vpack.c.b16 %v3149, %v3147
    %v3432 = vpack.c.b16 %v3150, %v3148
    %v3433 = vpack.c.b16 %v3153, %v3151
    %v3434 = vpack.c.b16 %v3154, %v3152
    %v3435 = vpack.c.b16 %v3157, %v3155
    %v3436 = vpack.c.b16 %v3158, %v3156
    %v3437 = vpack.c.b16 %v3161, %v3159
    %v3438 = vpack.c.b16 %v3162, %v3160
    %v3439 = vpack.c.b16 %v3165, %v3163
    %v3440 = vpack.c.b16 %v3166, %v3164
    %v3441 = vpack.c.b16 %v3169, %v3167
    %v3442 = vpack.c.b16 %v3170, %v3168
    %v3443 = vpack.c.b16 %v3173, %v3171
    %v3444 = vpack.c.b16 %v3174, %v3172
    %v3445 = vpack.c.b16 %v3177, %v3175
    %v3446 = vpack.c.b16 %v3178, %v3176
    %v3447 = vpack.c.b16 %v3181, %v3179
    %v3448 = vpack.c.b16 %v3182, %v3180
    %v3449 = vpack.c.b16 %v3185, %v3183
    %v3450 = vpack.c.b16 %v3186, %v3184
    %v3451 = vpack.c.b16 %v3189, %v3187
    %v3452 = vpack.c.b16 %v3190, %v3188
    %v3453 = vpack.c.b16 %v3193, %v3191
    %v3454 = vpack.c.b16 %v3194, %v3192
    %v3455 = vpack.c.b16 %v3197, %v3195
    %v3456 = vpack.c.b16 %v3198, %v3196
    %v3457 = vpack.c.b16 %v3201, %v3199
    %v3458 = vpack.c.b16 %v3202, %v3200
    %v3459 = vpack.c.b16 %v3205, %v3203
    %v3460 = vpack.c.b16 %v3206, %v3204
    %v3461 = vpack.c.b16 %v3209, %v3207
    %v3462 = vpack.c.b16 %v3210, %v3208
    %v3463 = vpack.c.b16 %v3213, %v3211
    %v3464 = vpack.c.b16 %v3214, %v3212
    %v3465 = vpack.c.b16 %v3217, %v3215
    %v3466 = vpack.c.b16 %v3218, %v3216
    %v3467 = vpack.c.b16 %v3221, %v3219
    %v3468 = vpack.c.b16 %v3222, %v3220
    %v3469 = vpack.c.b16 %v3225, %v3223
    %v3470 = vpack.c.b16 %v3226, %v3224
    %v3471 = vpack.c.b16 %v3229, %v3227
    %v3472 = vpack.c.b16 %v3230, %v3228
    %v3473 = vpack.c.b16 %v3233, %v3231
    %v3474 = vpack.c.b16 %v3234, %v3232
    %v3475 = vpack.c.b16 %v3237, %v3235
    %v3476 = vpack.c.b16 %v3238, %v3236
    %v3477 = vpack.c.b16 %v3241, %v3239
    %v3478 = vpack.c.b16 %v3242, %v3240
    %v3479 = vpack.c.b16 %v3245, %v3243
    %v3480 = vpack.c.b16 %v3246, %v3244
    %v3481 = vpack.c.b16 %v3249, %v3247
    %v3482 = vpack.c.b16 %v3250, %v3248
    %v3483 = vpack.c.b16 %v3253, %v3251
    %v3484 = vpack.c.b16 %v3254, %v3252
    %v3485 = vpack.c.b16 %v3257, %v3255
    %v3486 = vpack.c.b16 %v3258, %v3256
    %v3487 = vpack.c.b16 %v3261, %v3259
    %v3488 = vpack.c.b16 %v3262, %v3260
    %v3489 = vpack.c.b16 %v3265, %v3263
    %v3490 = vpack.c.b16 %v3266, %v3264
    %v3491 = vpack.c.b16 %v3269, %v3267
    %v3492 = vpack.c.b16 %v3270, %v3268
    %v3493 = vpack.c.b16 %v3273, %v3271
    %v3494 = vpack.c.b16 %v3274, %v3272
    %v3495 = vpack.c.b16 %v3277, %v3275
    %v3496 = vpack.c.b16 %v3278, %v3276
    %v3497 = vpack.c.b16 %v3281, %v3279
    %v3498 = vpack.c.b16 %v3282, %v3280
    %v3499 = vpack.c.b16 %v3285, %v3283
    %v3500 = vpack.c.b16 %v3286, %v3284
    %v3501 = vpack.c.b16 %v3289, %v3287
    %v3502 = vpack.c.b16 %v3290, %v3288
    %v3503 = vpack.c.b16 %v3293, %v3291
    %v3504 = vpack.c.b16 %v3294, %v3292
    %v3505 = vpack.c.b16 %v3297, %v3295
    %v3506 = vpack.c.b16 %v3298, %v3296
    %v3507 = vpack.c.b16 %v3301, %v3299
    %v3508 = vpack.c.b16 %v3302, %v3300
    %v3509 = vpack.c.b16 %v3305, %v3303
    %v3510 = vpack.c.b16 %v3306, %v3304
    %v3511 = vpack.c.b16 %v3309, %v3307
    %v3512 = vpack.c.b16 %v3310, %v3308
    %v3513 = vpack.c.b16 %v3313, %v3311
    %v3514 = vpack.c.b16 %v3314, %v3312
    %v3515 = vpack.c.b16 %v3317, %v3315
    %v3516 = vpack.c.b16 %v3318, %v3316
    %v3517 = vpack.c.b16 %v3321, %v3319
    %v3518 = vpack.c.b16 %v3322, %v3320
    %v3519 = vpack.c.b16 %v3325, %v3323
    %v3520 = vpack.c.b16 %v3326, %v3324
    %v3521 = vpack.c.b16 %v3329, %v3327
    %v3522 = vpack.c.b16 %v3330, %v3328
    %3715 = vmatprep.subr.bf16.mxu0 %v3346
    %3716 = vmatpush1.bf16.msra.mxu0 %v3345
    %3717 = vmatprep.subr.bf16.mxu0 %v3344
    %3718 = vmatpush1.bf16.msra.mxu0 %v3343
    %3719 = vmatprep.subr.bf16.mxu0 %v3342
    %3720 = vmatpush1.bf16.msra.mxu0 %v3341
    %3721 = vmatprep.subr.bf16.mxu0 %v3340
    %3722 = vmatpush1.bf16.msra.mxu0 %v3339
    %3723 = vmatprep.subr.bf16.mxu0 %v3338
    %3724 = vmatpush1.bf16.msra.mxu0 %v3337
    %3725 = vmatprep.subr.bf16.mxu0 %v3336
    %3726 = vmatpush1.bf16.msra.mxu0 %v3335
    %3727 = vmatprep.subr.bf16.mxu0 %v3334
    %3728 = vmatpush1.bf16.msra.mxu0 %v3333
    %3729 = vmatprep.subr.bf16.mxu0 %v3332
    %3730 = vmatpush1.bf16.msra.mxu0 %v3331
    %3731 = vmatprep.subr.bf16.mxu0 %v3362
    %3732 = vmatpush2.bf16.msra.mxu0 %v3361
    %3733 = vmatprep.subr.bf16.mxu0 %v3360
    %3734 = vmatpush2.bf16.msra.mxu0 %v3359
    %3735 = vmatprep.subr.bf16.mxu0 %v3358
    %3736 = vmatpush2.bf16.msra.mxu0 %v3357
    %3737 = vmatprep.subr.bf16.mxu0 %v3356
    %3738 = vmatpush2.bf16.msra.mxu0 %v3355
    %3739 = vmatprep.subr.bf16.mxu0 %v3354
    %3740 = vmatpush2.bf16.msra.mxu0 %v3353
    %3741 = vmatprep.subr.bf16.mxu0 %v3352
    %3742 = vmatpush2.bf16.msra.mxu0 %v3351
    %3743 = vmatprep.subr.bf16.mxu0 %v3350
    %3744 = vmatpush2.bf16.msra.mxu0 %v3349
    %3745 = vmatprep.subr.bf16.mxu0 %v3348
    %3746 = vmatpush2.bf16.msra.mxu0 %v3347
    %3747 = vmatprep.mubr.bf16.mxu0 %v2540
    %3748 = vmatmul.mubr.bf16.gmra.mxu0 %v2539
    %v3749 = vpop.f32.mrf.mxu0
    %v3750 = vadd.f32 0.0, %v3749
    %v3751 = vpop.f32.mrf.mxu0
    %v3752 = vadd.f32 0.0, %v3751
    %v3753 = vpop.f32.mrf.mxu0
    %v3754 = vadd.f32 0.0, %v3753
    %v3755 = vpop.f32.mrf.mxu0
    %v3756 = vadd.f32 0.0, %v3755
    %3757 = vmatprep.mubr.bf16.mxu0 %v2552
    %3758 = vmatmul.mubr.bf16.gmra.mxu0 %v2551
    %v3759 = vpop.f32.mrf.mxu0
    %v3760 = vadd.f32 0.0, %v3759
    %v3761 = vpop.f32.mrf.mxu0
    %v3762 = vadd.f32 0.0, %v3761
    %v3763 = vpop.f32.mrf.mxu0
    %v3764 = vadd.f32 0.0, %v3763
    %v3765 = vpop.f32.mrf.mxu0
    %v3766 = vadd.f32 0.0, %v3765
    %3767 = vdwg.mxu0
    %3768 = vmatprep.subr.bf16.mxu0 %v3378
    %3769 = vmatpush1.bf16.msra.mxu0 %v3377
    %3770 = vmatprep.subr.bf16.mxu0 %v3376
    %3771 = vmatpush1.bf16.msra.mxu0 %v3375
    %3772 = vmatprep.subr.bf16.mxu0 %v3374
    %3773 = vmatpush1.bf16.msra.mxu0 %v3373
    %3774 = vmatprep.subr.bf16.mxu0 %v3372
    %3775 = vmatpush1.bf16.msra.mxu0 %v3371
    %3776 = vmatprep.subr.bf16.mxu0 %v3370
    %3777 = vmatpush1.bf16.msra.mxu0 %v3369
    %3778 = vmatprep.subr.bf16.mxu0 %v3368
    %3779 = vmatpush1.bf16.msra.mxu0 %v3367
    %3780 = vmatprep.subr.bf16.mxu0 %v3366
    %3781 = vmatpush1.bf16.msra.mxu0 %v3365
    %3782 = vmatprep.subr.bf16.mxu0 %v3364
    %3783 = vmatpush1.bf16.msra.mxu0 %v3363
    %3784 = vmatprep.subr.bf16.mxu0 %v3394
    %3785 = vmatpush2.bf16.msra.mxu0 %v3393
    %3786 = vmatprep.subr.bf16.mxu0 %v3392
    %3787 = vmatpush2.bf16.msra.mxu0 %v3391
    %3788 = vmatprep.subr.bf16.mxu0 %v3390
    %3789 = vmatpush2.bf16.msra.mxu0 %v3389
    %3790 = vmatprep.subr.bf16.mxu0 %v3388
    %3791 = vmatpush2.bf16.msra.mxu0 %v3387
    %3792 = vmatprep.subr.bf16.mxu0 %v3386
    %3793 = vmatpush2.bf16.msra.mxu0 %v3385
    %3794 = vmatprep.subr.bf16.mxu0 %v3384
    %3795 = vmatpush2.bf16.msra.mxu0 %v3383
    %3796 = vmatprep.subr.bf16.mxu0 %v3382
    %3797 = vmatpush2.bf16.msra.mxu0 %v3381
    %3798 = vmatprep.subr.bf16.mxu0 %v3380
    %3799 = vmatpush2.bf16.msra.mxu0 %v3379
    %3800 = vmatprep.mubr.bf16.mxu0 %v2542
    %3801 = vmatmul.mubr.bf16.gmra.mxu0 %v2541
    %v3802 = vpop.f32.mrf.mxu0
    %v3803 = vadd.f32 %v3750, %v3802
    %v3804 = vpop.f32.mrf.mxu0
    %v3805 = vadd.f32 %v3752, %v3804
    %v3806 = vpop.f32.mrf.mxu0
    %v3807 = vadd.f32 %v3754, %v3806
    %v3808 = vpop.f32.mrf.mxu0
    %v3809 = vadd.f32 %v3756, %v3808
    %3810 = vmatprep.mubr.bf16.mxu0 %v2554
    %3811 = vmatmul.mubr.bf16.gmra.mxu0 %v2553
    %v3812 = vpop.f32.mrf.mxu0
    %v3813 = vadd.f32 %v3760, %v3812
    %v3814 = vpop.f32.mrf.mxu0
    %v3815 = vadd.f32 %v3762, %v3814
    %v3816 = vpop.f32.mrf.mxu0
    %v3817 = vadd.f32 %v3764, %v3816
    %v3818 = vpop.f32.mrf.mxu0
    %v3819 = vadd.f32 %v3766, %v3818
    %3820 = vdwg.mxu0
    %3821 = vmatprep.subr.bf16.mxu0 %v3410
    %3822 = vmatpush1.bf16.msra.mxu0 %v3409
    %3823 = vmatprep.subr.bf16.mxu0 %v3408
    %3824 = vmatpush1.bf16.msra.mxu0 %v3407
    %3825 = vmatprep.subr.bf16.mxu0 %v3406
    %3826 = vmatpush1.bf16.msra.mxu0 %v3405
    %3827 = vmatprep.subr.bf16.mxu0 %v3404
    %3828 = vmatpush1.bf16.msra.mxu0 %v3403
    %3829 = vmatprep.subr.bf16.mxu0 %v3402
    %3830 = vmatpush1.bf16.msra.mxu0 %v3401
    %3831 = vmatprep.subr.bf16.mxu0 %v3400
    %3832 = vmatpush1.bf16.msra.mxu0 %v3399
    %3833 = vmatprep.subr.bf16.mxu0 %v3398
    %3834 = vmatpush1.bf16.msra.mxu0 %v3397
    %3835 = vmatprep.subr.bf16.mxu0 %v3396
    %3836 = vmatpush1.bf16.msra.mxu0 %v3395
    %3837 = vmatprep.subr.bf16.mxu0 %v3426
    %3838 = vmatpush2.bf16.msra.mxu0 %v3425
    %3839 = vmatprep.subr.bf16.mxu0 %v3424
    %3840 = vmatpush2.bf16.msra.mxu0 %v3423
    %3841 = vmatprep.subr.bf16.mxu0 %v3422
    %3842 = vmatpush2.bf16.msra.mxu0 %v3421
    %3843 = vmatprep.subr.bf16.mxu0 %v3420
    %3844 = vmatpush2.bf16.msra.mxu0 %v3419
    %3845 = vmatprep.subr.bf16.mxu0 %v3418
    %3846 = vmatpush2.bf16.msra.mxu0 %v3417
    %3847 = vmatprep.subr.bf16.mxu0 %v3416
    %3848 = vmatpush2.bf16.msra.mxu0 %v3415
    %3849 = vmatprep.subr.bf16.mxu0 %v3414
    %3850 = vmatpush2.bf16.msra.mxu0 %v3413
    %3851 = vmatprep.subr.bf16.mxu0 %v3412
    %3852 = vmatpush2.bf16.msra.mxu0 %v3411
    %3853 = vmatprep.mubr.bf16.mxu0 %v2544
    %3854 = vmatmul.mubr.bf16.gmra.mxu0 %v2543
    %v3855 = vpop.f32.mrf.mxu0
    %v3856 = vadd.f32 %v3803, %v3855
    %v3857 = vpop.f32.mrf.mxu0
    %v3858 = vadd.f32 %v3805, %v3857
    %v3859 = vpop.f32.mrf.mxu0
    %v3860 = vadd.f32 %v3807, %v3859
    %v3861 = vpop.f32.mrf.mxu0
    %v3862 = vadd.f32 %v3809, %v3861
    %3863 = vmatprep.mubr.bf16.mxu0 %v2556
    %3864 = vmatmul.mubr.bf16.gmra.mxu0 %v2555
    %v3865 = vpop.f32.mrf.mxu0
    %v3866 = vadd.f32 %v3813, %v3865
    %v3867 = vpop.f32.mrf.mxu0
    %v3868 = vadd.f32 %v3815, %v3867
    %v3869 = vpop.f32.mrf.mxu0
    %v3870 = vadd.f32 %v3817, %v3869
    %v3871 = vpop.f32.mrf.mxu0
    %v3872 = vadd.f32 %v3819, %v3871
    %3873 = vdwg.mxu0
    %3874 = vmatprep.subr.bf16.mxu0 %v3442
    %3875 = vmatpush1.bf16.msra.mxu0 %v3441
    %3876 = vmatprep.subr.bf16.mxu0 %v3440
    %3877 = vmatpush1.bf16.msra.mxu0 %v3439
    %3878 = vmatprep.subr.bf16.mxu0 %v3438
    %3879 = vmatpush1.bf16.msra.mxu0 %v3437
    %3880 = vmatprep.subr.bf16.mxu0 %v3436
    %3881 = vmatpush1.bf16.msra.mxu0 %v3435
    %3882 = vmatprep.subr.bf16.mxu0 %v3434
    %3883 = vmatpush1.bf16.msra.mxu0 %v3433
    %3884 = vmatprep.subr.bf16.mxu0 %v3432
    %3885 = vmatpush1.bf16.msra.mxu0 %v3431
    %3886 = vmatprep.subr.bf16.mxu0 %v3430
    %3887 = vmatpush1.bf16.msra.mxu0 %v3429
    %3888 = vmatprep.subr.bf16.mxu0 %v3428
    %3889 = vmatpush1.bf16.msra.mxu0 %v3427
    %3890 = vmatprep.subr.bf16.mxu0 %v3458
    %3891 = vmatpush2.bf16.msra.mxu0 %v3457
    %3892 = vmatprep.subr.bf16.mxu0 %v3456
    %3893 = vmatpush2.bf16.msra.mxu0 %v3455
    %3894 = vmatprep.subr.bf16.mxu0 %v3454
    %3895 = vmatpush2.bf16.msra.mxu0 %v3453
    %3896 = vmatprep.subr.bf16.mxu0 %v3452
    %3897 = vmatpush2.bf16.msra.mxu0 %v3451
    %3898 = vmatprep.subr.bf16.mxu0 %v3450
    %3899 = vmatpush2.bf16.msra.mxu0 %v3449
    %3900 = vmatprep.subr.bf16.mxu0 %v3448
    %3901 = vmatpush2.bf16.msra.mxu0 %v3447
    %3902 = vmatprep.subr.bf16.mxu0 %v3446
    %3903 = vmatpush2.bf16.msra.mxu0 %v3445
    %3904 = vmatprep.subr.bf16.mxu0 %v3444
    %3905 = vmatpush2.bf16.msra.mxu0 %v3443
    %3906 = vmatprep.mubr.bf16.mxu0 %v2546
    %3907 = vmatmul.mubr.bf16.gmra.mxu0 %v2545
    %v3908 = vpop.f32.mrf.mxu0
    %v3909 = vadd.f32 %v3856, %v3908
    %v3910 = vpop.f32.mrf.mxu0
    %v3911 = vadd.f32 %v3858, %v3910
    %v3912 = vpop.f32.mrf.mxu0
    %v3913 = vadd.f32 %v3860, %v3912
    %v3914 = vpop.f32.mrf.mxu0
    %v3915 = vadd.f32 %v3862, %v3914
    %3916 = vmatprep.mubr.bf16.mxu0 %v2558
    %3917 = vmatmul.mubr.bf16.gmra.mxu0 %v2557
    %v3918 = vpop.f32.mrf.mxu0
    %v3919 = vadd.f32 %v3866, %v3918
    %v3920 = vpop.f32.mrf.mxu0
    %v3921 = vadd.f32 %v3868, %v3920
    %v3922 = vpop.f32.mrf.mxu0
    %v3923 = vadd.f32 %v3870, %v3922
    %v3924 = vpop.f32.mrf.mxu0
    %v3925 = vadd.f32 %v3872, %v3924
    %3926 = vdwg.mxu0
    %3927 = vmatprep.subr.bf16.mxu0 %v3474
    %3928 = vmatpush1.bf16.msra.mxu0 %v3473
    %3929 = vmatprep.subr.bf16.mxu0 %v3472
    %3930 = vmatpush1.bf16.msra.mxu0 %v3471
    %3931 = vmatprep.subr.bf16.mxu0 %v3470
    %3932 = vmatpush1.bf16.msra.mxu0 %v3469
    %3933 = vmatprep.subr.bf16.mxu0 %v3468
    %3934 = vmatpush1.bf16.msra.mxu0 %v3467
    %3935 = vmatprep.subr.bf16.mxu0 %v3466
    %3936 = vmatpush1.bf16.msra.mxu0 %v3465
    %3937 = vmatprep.subr.bf16.mxu0 %v3464
    %3938 = vmatpush1.bf16.msra.mxu0 %v3463
    %3939 = vmatprep.subr.bf16.mxu0 %v3462
    %3940 = vmatpush1.bf16.msra.mxu0 %v3461
    %3941 = vmatprep.subr.bf16.mxu0 %v3460
    %3942 = vmatpush1.bf16.msra.mxu0 %v3459
    %3943 = vmatprep.subr.bf16.mxu0 %v3490
    %3944 = vmatpush2.bf16.msra.mxu0 %v3489
    %3945 = vmatprep.subr.bf16.mxu0 %v3488
    %3946 = vmatpush2.bf16.msra.mxu0 %v3487
    %3947 = vmatprep.subr.bf16.mxu0 %v3486
    %3948 = vmatpush2.bf16.msra.mxu0 %v3485
    %3949 = vmatprep.subr.bf16.mxu0 %v3484
    %3950 = vmatpush2.bf16.msra.mxu0 %v3483
    %3951 = vmatprep.subr.bf16.mxu0 %v3482
    %3952 = vmatpush2.bf16.msra.mxu0 %v3481
    %3953 = vmatprep.subr.bf16.mxu0 %v3480
    %3954 = vmatpush2.bf16.msra.mxu0 %v3479
    %3955 = vmatprep.subr.bf16.mxu0 %v3478
    %3956 = vmatpush2.bf16.msra.mxu0 %v3477
    %3957 = vmatprep.subr.bf16.mxu0 %v3476
    %3958 = vmatpush2.bf16.msra.mxu0 %v3475
    %3959 = vmatprep.mubr.bf16.mxu0 %v2548
    %3960 = vmatmul.mubr.bf16.gmra.mxu0 %v2547
    %v3961 = vpop.f32.mrf.mxu0
    %v3962 = vadd.f32 %v3909, %v3961
    %v3963 = vpop.f32.mrf.mxu0
    %v3964 = vadd.f32 %v3911, %v3963
    %v3965 = vpop.f32.mrf.mxu0
    %v3966 = vadd.f32 %v3913, %v3965
    %v3967 = vpop.f32.mrf.mxu0
    %v3968 = vadd.f32 %v3915, %v3967
    %3969 = vmatprep.mubr.bf16.mxu0 %v2560
    %3970 = vmatmul.mubr.bf16.gmra.mxu0 %v2559
    %v3971 = vpop.f32.mrf.mxu0
    %v3972 = vadd.f32 %v3919, %v3971
    %v3973 = vpop.f32.mrf.mxu0
    %v3974 = vadd.f32 %v3921, %v3973
    %v3975 = vpop.f32.mrf.mxu0
    %v3976 = vadd.f32 %v3923, %v3975
    %v3977 = vpop.f32.mrf.mxu0
    %v3978 = vadd.f32 %v3925, %v3977
    %3979 = vdwg.mxu0
    %3980 = vmatprep.subr.bf16.mxu0 %v3506
    %3981 = vmatpush1.bf16.msra.mxu0 %v3505
    %3982 = vmatprep.subr.bf16.mxu0 %v3504
    %3983 = vmatpush1.bf16.msra.mxu0 %v3503
    %3984 = vmatprep.subr.bf16.mxu0 %v3502
    %3985 = vmatpush1.bf16.msra.mxu0 %v3501
    %3986 = vmatprep.subr.bf16.mxu0 %v3500
    %3987 = vmatpush1.bf16.msra.mxu0 %v3499
    %3988 = vmatprep.subr.bf16.mxu0 %v3498
    %3989 = vmatpush1.bf16.msra.mxu0 %v3497
    %3990 = vmatprep.subr.bf16.mxu0 %v3496
    %3991 = vmatpush1.bf16.msra.mxu0 %v3495
    %3992 = vmatprep.subr.bf16.mxu0 %v3494
    %3993 = vmatpush1.bf16.msra.mxu0 %v3493
    %3994 = vmatprep.subr.bf16.mxu0 %v3492
    %3995 = vmatpush1.bf16.msra.mxu0 %v3491
    %3996 = vmatprep.subr.bf16.mxu0 %v3522
    %3997 = vmatpush2.bf16.msra.mxu0 %v3521
    %3998 = vmatprep.subr.bf16.mxu0 %v3520
    %3999 = vmatpush2.bf16.msra.mxu0 %v3519
    %4000 = vmatprep.subr.bf16.mxu0 %v3518
    %4001 = vmatpush2.bf16.msra.mxu0 %v3517
    %4002 = vmatprep.subr.bf16.mxu0 %v3516
    %4003 = vmatpush2.bf16.msra.mxu0 %v3515
    %4004 = vmatprep.subr.bf16.mxu0 %v3514
    %4005 = vmatpush2.bf16.msra.mxu0 %v3513
    %4006 = vmatprep.subr.bf16.mxu0 %v3512
    %4007 = vmatpush2.bf16.msra.mxu0 %v3511
    %4008 = vmatprep.subr.bf16.mxu0 %v3510
    %4009 = vmatpush2.bf16.msra.mxu0 %v3509
    %4010 = vmatprep.subr.bf16.mxu0 %v3508
    %4011 = vmatpush2.bf16.msra.mxu0 %v3507
    %4012 = vmatprep.mubr.bf16.mxu0 %v2550
    %4013 = vmatmul.mubr.bf16.gmra.mxu0 %v2549
    %v4014 = vpop.f32.mrf.mxu0
    %v4015 = vadd.f32 %v3962, %v4014
    %v4016 = vpop.f32.mrf.mxu0
    %v4017 = vadd.f32 %v3964, %v4016
    %v4018 = vpop.f32.mrf.mxu0
    %v4019 = vadd.f32 %v3966, %v4018
    %v4020 = vpop.f32.mrf.mxu0
    %v4021 = vadd.f32 %v3968, %v4020
    %4022 = vmatprep.mubr.bf16.mxu0 %v2562
    %4023 = vmatmul.mubr.bf16.gmra.mxu0 %v2561
    %v4024 = vpop.f32.mrf.mxu0
    %v4025 = vadd.f32 %v3972, %v4024
    %v4026 = vpop.f32.mrf.mxu0
    %v4027 = vadd.f32 %v3974, %v4026
    %v4028 = vpop.f32.mrf.mxu0
    %v4029 = vadd.f32 %v3976, %v4028
    %v4030 = vpop.f32.mrf.mxu0
    %v4031 = vadd.f32 %v3978, %v4030
    %4032 = vdwg.mxu0
    %v4033 = vadd.f32 %v4015, %v4019
    %v4034 = vrot.slane %v4033, 4
    %v4035 = vadd.f32 %v4033, %v4034
    %v4036 = vrot.slane %v4035, 2
    %v4037 = vadd.f32 %v4035, %v4036
    %v4038 = vrot.slane %v4037, 1
    %v4039 = vadd.f32 %v4037, %v4038
    %v4040 = vadd.f32 %v4017, %v4021
    %v4041 = vrot.slane %v4040, 4
    %v4042 = vadd.f32 %v4040, %v4041
    %v4043 = vrot.slane %v4042, 2
    %v4044 = vadd.f32 %v4042, %v4043
    %v4045 = vrot.slane %v4044, 1
    %v4046 = vadd.f32 %v4044, %v4045
    %v4047 = vadd.f32 %v4025, %v4029
    %v4048 = vrot.slane %v4047, 4
    %v4049 = vadd.f32 %v4047, %v4048
    %v4050 = vrot.slane %v4049, 2
    %v4051 = vadd.f32 %v4049, %v4050
    %v4052 = vrot.slane %v4051, 1
    %v4053 = vadd.f32 %v4051, %v4052
    %v4054 = vadd.f32 %v4027, %v4031
    %v4055 = vrot.slane %v4054, 4
    %v4056 = vadd.f32 %v4054, %v4055
    %v4057 = vrot.slane %v4056, 2
    %v4058 = vadd.f32 %v4056, %v4057
    %v4059 = vrot.slane %v4058, 1
    %v4060 = vadd.f32 %v4058, %v4059
    %v4061 = vld [vmem:[#allocation13] sm:$0xff]
    %v4062 = vld [vmem:[#allocation13 + $0x8] sm:$0xff]
    %v4063 = vld [vmem:[#allocation13 + $0x10] sm:$0xff]
    %v4064 = vld [vmem:[#allocation13 + $0x18] sm:$0xff]
    %v4065 = vld [vmem:[#allocation13 + $0x20] sm:$0xff]
    %v4066 = vld [vmem:[#allocation13 + $0x28] sm:$0xff]
    %v4067 = vld [vmem:[#allocation13 + $0x30] sm:$0xff]
    %v4068 = vld [vmem:[#allocation13 + $0x38] sm:$0xff]
    %v4069 = vld [vmem:[#allocation13 + $0x40] sm:$0xff]
    %v4070 = vld [vmem:[#allocation13 + $0x48] sm:$0xff]
    %v4071 = vld [vmem:[#allocation13 + $0x50] sm:$0xff]
    %v4072 = vld [vmem:[#allocation13 + $0x58] sm:$0xff]
    %v4073 = vld [vmem:[#allocation13 + $0x60] sm:$0xff]
    %v4074 = vld [vmem:[#allocation13 + $0x68] sm:$0xff]
    %v4075 = vld [vmem:[#allocation13 + $0x70] sm:$0xff]
    %v4076 = vld [vmem:[#allocation13 + $0x78] sm:$0xff]
    %v4077 = vld [vmem:[#allocation13 + $0x80] sm:$0xff]
    %v4078 = vld [vmem:[#allocation13 + $0x88] sm:$0xff]
    %v4079 = vld [vmem:[#allocation13 + $0x90] sm:$0xff]
    %v4080 = vld [vmem:[#allocation13 + $0x98] sm:$0xff]
    %v4081 = vld [vmem:[#allocation13 + $0xa0] sm:$0xff]
    %v4082 = vld [vmem:[#allocation13 + $0xa8] sm:$0xff]
    %v4083 = vld [vmem:[#allocation13 + $0xb0] sm:$0xff]
    %v4084 = vld [vmem:[#allocation13 + $0xb8] sm:$0xff]
    %v4085 = vld [vmem:[#allocation13 + $0xc0] sm:$0xff]
    %v4086 = vld [vmem:[#allocation13 + $0xc8] sm:$0xff]
    %v4087 = vld [vmem:[#allocation13 + $0xd0] sm:$0xff]
    %v4088 = vld [vmem:[#allocation13 + $0xd8] sm:$0xff]
    %v4089 = vld [vmem:[#allocation13 + $0xe0] sm:$0xff]
    %v4090 = vld [vmem:[#allocation13 + $0xe8] sm:$0xff]
    %v4091 = vld [vmem:[#allocation13 + $0xf0] sm:$0xff]
    %v4092 = vld [vmem:[#allocation13 + $0xf8] sm:$0xff]
    %v4097 = vsel %vm1342, %v4053, %v4039
    %v4098 = vsel %vm1342, %v4060, %v4046
    %4101 = vmatprep.subr.mxu0 0.0
    %4102 = vmatpush1.msra.mxu0 %v4076
    %4103 = vmatprep.subr.mxu0 0.0
    %4104 = vmatpush1.msra.mxu0 %v4075
    %4105 = vmatprep.subr.mxu0 0.0
    %4106 = vmatpush1.msra.mxu0 %v4074
    %4107 = vmatprep.subr.mxu0 0.0
    %4108 = vmatpush1.msra.mxu0 %v4073
    %4109 = vmatprep.subr.mxu0 0.0
    %4110 = vmatpush1.msra.mxu0 %v4072
    %4111 = vmatprep.subr.mxu0 0.0
    %4112 = vmatpush1.msra.mxu0 %v4071
    %4113 = vmatprep.subr.mxu0 0.0
    %4114 = vmatpush1.msra.mxu0 %v4070
    %4115 = vmatprep.subr.mxu0 0.0
    %4116 = vmatpush1.msra.mxu0 %v4069
    %4117 = vmatprep.subr.mxu0 0.0
    %4118 = vmatpush1.msra.mxu0 %v4068
    %4119 = vmatprep.subr.mxu0 0.0
    %4120 = vmatpush1.msra.mxu0 %v4067
    %4121 = vmatprep.subr.mxu0 0.0
    %4122 = vmatpush1.msra.mxu0 %v4066
    %4123 = vmatprep.subr.mxu0 0.0
    %4124 = vmatpush1.msra.mxu0 %v4065
    %4125 = vmatprep.subr.mxu0 0.0
    %4126 = vmatpush1.msra.mxu0 %v4064
    %4127 = vmatprep.subr.mxu0 0.0
    %4128 = vmatpush1.msra.mxu0 %v4063
    %4129 = vmatprep.subr.mxu0 0.0
    %4130 = vmatpush1.msra.mxu0 %v4062
    %4131 = vmatprep.subr.mxu0 0.0
    %4132 = vmatpush1.msra.mxu0 %v4061
    %4133 = vmatprep.subr.mxu0 0.0
    %4134 = vmatpush2.msra.mxu0 %v4092
    %4135 = vmatprep.subr.mxu0 0.0
    %4136 = vmatpush2.msra.mxu0 %v4091
    %4137 = vmatprep.subr.mxu0 0.0
    %4138 = vmatpush2.msra.mxu0 %v4090
    %4139 = vmatprep.subr.mxu0 0.0
    %4140 = vmatpush2.msra.mxu0 %v4089
    %4141 = vmatprep.subr.mxu0 0.0
    %4142 = vmatpush2.msra.mxu0 %v4088
    %4143 = vmatprep.subr.mxu0 0.0
    %4144 = vmatpush2.msra.mxu0 %v4087
    %4145 = vmatprep.subr.mxu0 0.0
    %4146 = vmatpush2.msra.mxu0 %v4086
    %4147 = vmatprep.subr.mxu0 0.0
    %4148 = vmatpush2.msra.mxu0 %v4085
    %4149 = vmatprep.subr.mxu0 0.0
    %4150 = vmatpush2.msra.mxu0 %v4084
    %4151 = vmatprep.subr.mxu0 0.0
    %4152 = vmatpush2.msra.mxu0 %v4083
    %4153 = vmatprep.subr.mxu0 0.0
    %4154 = vmatpush2.msra.mxu0 %v4082
    %4155 = vmatprep.subr.mxu0 0.0
    %4156 = vmatpush2.msra.mxu0 %v4081
    %4157 = vmatprep.subr.mxu0 0.0
    %4158 = vmatpush2.msra.mxu0 %v4080
    %4159 = vmatprep.subr.mxu0 0.0
    %4160 = vmatpush2.msra.mxu0 %v4079
    %4161 = vmatprep.subr.mxu0 0.0
    %4162 = vmatpush2.msra.mxu0 %v4078
    %4163 = vmatprep.subr.mxu0 0.0
    %4164 = vmatpush2.msra.mxu0 %v4077
    %4165 = vmatprep.mubr.f32.mxu0 %v4098
    %4166 = vmatmul.mubr.f32.gmra.mxu0 %v4097
    %v4167 = vpop.f32.mrf.mxu0
    %v4168 = vadd.f32 0.0, %v4167
    %v4169 = vpop.f32.mrf.mxu0
    %4170 = vdwg.mxu0
    %v4171 = vld [vmem:[#allocation15] sm:$0xff]
    %v4173 = vcombine.high %v4171, %v4171
    %v4175 = vsel %vm1420, %v4168, 0
    %v4177 = vsel %vm331, %v4171, 0
    %v4179 = vsel %vm331, %v4173, 0
    %4181 = vmatprep.subr.mxu0 0.0
    %4182 = vmatpush1.msra.mxu0 0.0
    %4183 = vmatprep.subr.mxu0 0.0
    %4184 = vmatpush1.msra.mxu0 0.0
    %4185 = vmatprep.subr.mxu0 0.0
    %4186 = vmatpush1.msra.mxu0 0.0
    %4187 = vmatprep.subr.mxu0 0.0
    %4188 = vmatpush1.msra.mxu0 0.0
    %4189 = vmatprep.subr.mxu0 0.0
    %4190 = vmatpush1.msra.mxu0 0.0
    %4191 = vmatprep.subr.mxu0 0.0
    %4192 = vmatpush1.msra.mxu0 0.0
    %4193 = vmatprep.subr.mxu0 0.0
    %4194 = vmatpush1.msra.mxu0 0.0
    %4195 = vmatprep.subr.mxu0 0.0
    %4196 = vmatpush1.msra.mxu0 0.0
    %4197 = vmatprep.subr.mxu0 0.0
    %4198 = vmatpush1.msra.mxu0 0.0
    %4199 = vmatprep.subr.mxu0 0.0
    %4200 = vmatpush1.msra.mxu0 0.0
    %4201 = vmatprep.subr.mxu0 0.0
    %4202 = vmatpush1.msra.mxu0 0.0
    %4203 = vmatprep.subr.mxu0 0.0
    %4204 = vmatpush1.msra.mxu0 0.0
    %4205 = vmatprep.subr.mxu0 0.0
    %4206 = vmatpush1.msra.mxu0 0.0
    %4207 = vmatprep.subr.mxu0 0.0
    %4208 = vmatpush1.msra.mxu0 0.0
    %4209 = vmatprep.subr.mxu0 0.0
    %4210 = vmatpush1.msra.mxu0 0.0
    %4211 = vmatprep.subr.mxu0 %v4179
    %4212 = vmatpush1.msra.mxu0 %v4177
    %4213 = vmatprep.subr.mxu0 0.0
    %4214 = vmatpush2.msra.mxu0 0.0
    %4215 = vmatprep.subr.mxu0 0.0
    %4216 = vmatpush2.msra.mxu0 0.0
    %4217 = vmatprep.subr.mxu0 0.0
    %4218 = vmatpush2.msra.mxu0 0.0
    %4219 = vmatprep.subr.mxu0 0.0
    %4220 = vmatpush2.msra.mxu0 0.0
    %4221 = vmatprep.subr.mxu0 0.0
    %4222 = vmatpush2.msra.mxu0 0.0
    %4223 = vmatprep.subr.mxu0 0.0
    %4224 = vmatpush2.msra.mxu0 0.0
    %4225 = vmatprep.subr.mxu0 0.0
    %4226 = vmatpush2.msra.mxu0 0.0
    %4227 = vmatprep.subr.mxu0 0.0
    %4228 = vmatpush2.msra.mxu0 0.0
    %4229 = vmatprep.subr.mxu0 0.0
    %4230 = vmatpush2.msra.mxu0 0.0
    %4231 = vmatprep.subr.mxu0 0.0
    %4232 = vmatpush2.msra.mxu0 0.0
    %4233 = vmatprep.subr.mxu0 0.0
    %4234 = vmatpush2.msra.mxu0 0.0
    %4235 = vmatprep.subr.mxu0 0.0
    %4236 = vmatpush2.msra.mxu0 0.0
    %4237 = vmatprep.subr.mxu0 0.0
    %4238 = vmatpush2.msra.mxu0 0.0
    %4239 = vmatprep.subr.mxu0 0.0
    %4240 = vmatpush2.msra.mxu0 0.0
    %4241 = vmatprep.subr.mxu0 0.0
    %4242 = vmatpush2.msra.mxu0 0.0
    %4243 = vmatprep.subr.mxu0 0.0
    %4244 = vmatpush2.msra.mxu0 0.0
    %4245 = vmatprep.mubr.f32.mxu0 0.0
    %4246 = vmatmul.mubr.f32.gmra.mxu0 %v4175
    %v4247 = vpop.f32.mrf.mxu0
    %v4248 = vadd.f32 0.0, %v4247
    %v4249 = vpop.f32.mrf.mxu0
    %v4250 = vadd.f32 0.0, %v4249
    %4251 = vdwg.mxu0
    %v4254 = vcombine.low %v4248, %v4250
    %v4256 = vunpack.c.l.s4 1966171168
    %v4257 = vunpack.c.0.s8 %v4256
    %v4258 = vlaneseq
    %v4259 = vshrl.u32 %v4258, 7
    %v4260 = vsub.s32 %v4257, %v4259
    %v4261 = vrot.slane %v4254, %v4260
    %v4262 = vcombine.high %v4261, %v4261
    %v4264 = vunpack.c.l.s4 1966171168
    %v4265 = vunpack.c.0.s8 %v4264
    %v4266 = vlaneseq
    %v4267 = vshrl.u32 %v4266, 7
    %v4268 = vsub.s32 %v4265, %v4267
    %v4269 = vrot.slane %v4261, %v4268
    %v4271 = vunpack.c.l.s4 1966171168
    %v4272 = vunpack.c.0.s8 %v4271
    %v4273 = vlaneseq
    %v4274 = vshrl.u32 %v4273, 7
    %v4275 = vsub.s32 %v4272, %v4274
    %v4276 = vrot.slane %v4262, %v4275
    %v4277 = vlaneseq
    %v4278 = vshrl.u32 %v4277, 7
    %v4279 = vsub.s32 0, %v4278
    %v4280 = vrot.slane %v4269, %v4279
    %v4281 = vlaneseq
    %v4282 = vshrl.u32 %v4281, 7
    %v4283 = vsub.s32 1, %v4282
    %v4284 = vrot.slane %v4269, %v4283
    %v4285 = vlaneseq
    %v4286 = vshrl.u32 %v4285, 7
    %v4287 = vsub.s32 0, %v4286
    %v4288 = vrot.slane %v4276, %v4287
    %v4289 = vlaneseq
    %v4290 = vshrl.u32 %v4289, 7
    %v4291 = vsub.s32 1, %v4290
    %v4292 = vrot.slane %v4276, %v4291
    %v4297 = vsub.f32 %v4015, %v4280
    %v4298 = vsub.f32 %v4017, %v4284
    %v4299 = vsub.f32 %v4019, %v4280
    %v4300 = vsub.f32 %v4021, %v4284
    %v4301 = vsub.f32 %v4025, %v4288
    %v4302 = vsub.f32 %v4027, %v4292
    %v4303 = vsub.f32 %v4029, %v4288
    %v4304 = vsub.f32 %v4031, %v4292
    %v4305 = vmul.f32 %v4297, %v4297
    %v4306 = vmul.f32 %v4298, %v4298
    %v4307 = vmul.f32 %v4299, %v4299
    %v4308 = vmul.f32 %v4300, %v4300
    %v4309 = vmul.f32 %v4301, %v4301
    %v4310 = vmul.f32 %v4302, %v4302
    %v4311 = vmul.f32 %v4303, %v4303
    %v4312 = vmul.f32 %v4304, %v4304
    %v4313 = vadd.f32 %v4305, %v4307
    %v4314 = vrot.slane %v4313, 4
    %v4315 = vadd.f32 %v4313, %v4314
    %v4316 = vrot.slane %v4315, 2
    %v4317 = vadd.f32 %v4315, %v4316
    %v4318 = vrot.slane %v4317, 1
    %v4319 = vadd.f32 %v4317, %v4318
    %v4320 = vadd.f32 %v4306, %v4308
    %v4321 = vrot.slane %v4320, 4
    %v4322 = vadd.f32 %v4320, %v4321
    %v4323 = vrot.slane %v4322, 2
    %v4324 = vadd.f32 %v4322, %v4323
    %v4325 = vrot.slane %v4324, 1
    %v4326 = vadd.f32 %v4324, %v4325
    %v4327 = vadd.f32 %v4309, %v4311
    %v4328 = vrot.slane %v4327, 4
    %v4329 = vadd.f32 %v4327, %v4328
    %v4330 = vrot.slane %v4329, 2
    %v4331 = vadd.f32 %v4329, %v4330
    %v4332 = vrot.slane %v4331, 1
    %v4333 = vadd.f32 %v4331, %v4332
    %v4334 = vadd.f32 %v4310, %v4312
    %v4335 = vrot.slane %v4334, 4
    %v4336 = vadd.f32 %v4334, %v4335
    %v4337 = vrot.slane %v4336, 2
    %v4338 = vadd.f32 %v4336, %v4337
    %v4339 = vrot.slane %v4338, 1
    %v4340 = vadd.f32 %v4338, %v4339
    %v4345 = vsel %vm1342, %v4333, %v4319
    %v4346 = vsel %vm1342, %v4340, %v4326
    %4349 = vmatprep.subr.mxu0 0.0
    %4350 = vmatpush1.msra.mxu0 %v4076
    %4351 = vmatprep.subr.mxu0 0.0
    %4352 = vmatpush1.msra.mxu0 %v4075
    %4353 = vmatprep.subr.mxu0 0.0
    %4354 = vmatpush1.msra.mxu0 %v4074
    %4355 = vmatprep.subr.mxu0 0.0
    %4356 = vmatpush1.msra.mxu0 %v4073
    %4357 = vmatprep.subr.mxu0 0.0
    %4358 = vmatpush1.msra.mxu0 %v4072
    %4359 = vmatprep.subr.mxu0 0.0
    %4360 = vmatpush1.msra.mxu0 %v4071
    %4361 = vmatprep.subr.mxu0 0.0
    %4362 = vmatpush1.msra.mxu0 %v4070
    %4363 = vmatprep.subr.mxu0 0.0
    %4364 = vmatpush1.msra.mxu0 %v4069
    %4365 = vmatprep.subr.mxu0 0.0
    %4366 = vmatpush1.msra.mxu0 %v4068
    %4367 = vmatprep.subr.mxu0 0.0
    %4368 = vmatpush1.msra.mxu0 %v4067
    %4369 = vmatprep.subr.mxu0 0.0
    %4370 = vmatpush1.msra.mxu0 %v4066
    %4371 = vmatprep.subr.mxu0 0.0
    %4372 = vmatpush1.msra.mxu0 %v4065
    %4373 = vmatprep.subr.mxu0 0.0
    %4374 = vmatpush1.msra.mxu0 %v4064
    %4375 = vmatprep.subr.mxu0 0.0
    %4376 = vmatpush1.msra.mxu0 %v4063
    %4377 = vmatprep.subr.mxu0 0.0
    %4378 = vmatpush1.msra.mxu0 %v4062
    %4379 = vmatprep.subr.mxu0 0.0
    %4380 = vmatpush1.msra.mxu0 %v4061
    %4381 = vmatprep.subr.mxu0 0.0
    %4382 = vmatpush2.msra.mxu0 %v4092
    %4383 = vmatprep.subr.mxu0 0.0
    %4384 = vmatpush2.msra.mxu0 %v4091
    %4385 = vmatprep.subr.mxu0 0.0
    %4386 = vmatpush2.msra.mxu0 %v4090
    %4387 = vmatprep.subr.mxu0 0.0
    %4388 = vmatpush2.msra.mxu0 %v4089
    %4389 = vmatprep.subr.mxu0 0.0
    %4390 = vmatpush2.msra.mxu0 %v4088
    %4391 = vmatprep.subr.mxu0 0.0
    %4392 = vmatpush2.msra.mxu0 %v4087
    %4393 = vmatprep.subr.mxu0 0.0
    %4394 = vmatpush2.msra.mxu0 %v4086
    %4395 = vmatprep.subr.mxu0 0.0
    %4396 = vmatpush2.msra.mxu0 %v4085
    %4397 = vmatprep.subr.mxu0 0.0
    %4398 = vmatpush2.msra.mxu0 %v4084
    %4399 = vmatprep.subr.mxu0 0.0
    %4400 = vmatpush2.msra.mxu0 %v4083
    %4401 = vmatprep.subr.mxu0 0.0
    %4402 = vmatpush2.msra.mxu0 %v4082
    %4403 = vmatprep.subr.mxu0 0.0
    %4404 = vmatpush2.msra.mxu0 %v4081
    %4405 = vmatprep.subr.mxu0 0.0
    %4406 = vmatpush2.msra.mxu0 %v4080
    %4407 = vmatprep.subr.mxu0 0.0
    %4408 = vmatpush2.msra.mxu0 %v4079
    %4409 = vmatprep.subr.mxu0 0.0
    %4410 = vmatpush2.msra.mxu0 %v4078
    %4411 = vmatprep.subr.mxu0 0.0
    %4412 = vmatpush2.msra.mxu0 %v4077
    %4413 = vmatprep.mubr.f32.mxu0 %v4346
    %4414 = vmatmul.mubr.f32.gmra.mxu0 %v4345
    %v4415 = vpop.f32.mrf.mxu0
    %v4416 = vadd.f32 0.0, %v4415
    %v4417 = vpop.f32.mrf.mxu0
    %4418 = vdwg.mxu0
    %v4420 = vsel %vm1420, %v4416, 0
    %4422 = vmatprep.subr.mxu0 0.0
    %4423 = vmatpush1.msra.mxu0 0.0
    %4424 = vmatprep.subr.mxu0 0.0
    %4425 = vmatpush1.msra.mxu0 0.0
    %4426 = vmatprep.subr.mxu0 0.0
    %4427 = vmatpush1.msra.mxu0 0.0
    %4428 = vmatprep.subr.mxu0 0.0
    %4429 = vmatpush1.msra.mxu0 0.0
    %4430 = vmatprep.subr.mxu0 0.0
    %4431 = vmatpush1.msra.mxu0 0.0
    %4432 = vmatprep.subr.mxu0 0.0
    %4433 = vmatpush1.msra.mxu0 0.0
    %4434 = vmatprep.subr.mxu0 0.0
    %4435 = vmatpush1.msra.mxu0 0.0
    %4436 = vmatprep.subr.mxu0 0.0
    %4437 = vmatpush1.msra.mxu0 0.0
    %4438 = vmatprep.subr.mxu0 0.0
    %4439 = vmatpush1.msra.mxu0 0.0
    %4440 = vmatprep.subr.mxu0 0.0
    %4441 = vmatpush1.msra.mxu0 0.0
    %4442 = vmatprep.subr.mxu0 0.0
    %4443 = vmatpush1.msra.mxu0 0.0
    %4444 = vmatprep.subr.mxu0 0.0
    %4445 = vmatpush1.msra.mxu0 0.0
    %4446 = vmatprep.subr.mxu0 0.0
    %4447 = vmatpush1.msra.mxu0 0.0
    %4448 = vmatprep.subr.mxu0 0.0
    %4449 = vmatpush1.msra.mxu0 0.0
    %4450 = vmatprep.subr.mxu0 0.0
    %4451 = vmatpush1.msra.mxu0 0.0
    %4452 = vmatprep.subr.mxu0 %v4179
    %4453 = vmatpush1.msra.mxu0 %v4177
    %4454 = vmatprep.subr.mxu0 0.0
    %4455 = vmatpush2.msra.mxu0 0.0
    %4456 = vmatprep.subr.mxu0 0.0
    %4457 = vmatpush2.msra.mxu0 0.0
    %4458 = vmatprep.subr.mxu0 0.0
    %4459 = vmatpush2.msra.mxu0 0.0
    %4460 = vmatprep.subr.mxu0 0.0
    %4461 = vmatpush2.msra.mxu0 0.0
    %4462 = vmatprep.subr.mxu0 0.0
    %4463 = vmatpush2.msra.mxu0 0.0
    %4464 = vmatprep.subr.mxu0 0.0
    %4465 = vmatpush2.msra.mxu0 0.0
    %4466 = vmatprep.subr.mxu0 0.0
    %4467 = vmatpush2.msra.mxu0 0.0
    %4468 = vmatprep.subr.mxu0 0.0
    %4469 = vmatpush2.msra.mxu0 0.0
    %4470 = vmatprep.subr.mxu0 0.0
    %4471 = vmatpush2.msra.mxu0 0.0
    %4472 = vmatprep.subr.mxu0 0.0
    %4473 = vmatpush2.msra.mxu0 0.0
    %4474 = vmatprep.subr.mxu0 0.0
    %4475 = vmatpush2.msra.mxu0 0.0
    %4476 = vmatprep.subr.mxu0 0.0
    %4477 = vmatpush2.msra.mxu0 0.0
    %4478 = vmatprep.subr.mxu0 0.0
    %4479 = vmatpush2.msra.mxu0 0.0
    %4480 = vmatprep.subr.mxu0 0.0
    %4481 = vmatpush2.msra.mxu0 0.0
    %4482 = vmatprep.subr.mxu0 0.0
    %4483 = vmatpush2.msra.mxu0 0.0
    %4484 = vmatprep.subr.mxu0 0.0
    %4485 = vmatpush2.msra.mxu0 0.0
    %4486 = vmatprep.mubr.f32.mxu0 0.0
    %4487 = vmatmul.mubr.f32.gmra.mxu0 %v4420
    %v4488 = vpop.f32.mrf.mxu0
    %v4489 = vadd.f32 0.0001, %v4488
    %v4490 = vpop.f32.mrf.mxu0
    %v4491 = vadd.f32 0.0001, %v4490
    %4492 = vdwg.mxu0
    %v4493 = vrsqrt.pop %v4489
    %v4494 = vrsqrt.pop %v4491
    %v4497 = vcombine.low %v4493, %v4494
    %v4499 = vunpack.c.l.s4 1966171168
    %v4500 = vunpack.c.0.s8 %v4499
    %v4501 = vlaneseq
    %v4502 = vshrl.u32 %v4501, 7
    %v4503 = vsub.s32 %v4500, %v4502
    %v4504 = vrot.slane %v4497, %v4503
    %v4505 = vcombine.high %v4504, %v4504
    %v4507 = vunpack.c.l.s4 1966171168
    %v4508 = vunpack.c.0.s8 %v4507
    %v4509 = vlaneseq
    %v4510 = vshrl.u32 %v4509, 7
    %v4511 = vsub.s32 %v4508, %v4510
    %v4512 = vrot.slane %v4504, %v4511
    %v4514 = vunpack.c.l.s4 1966171168
    %v4515 = vunpack.c.0.s8 %v4514
    %v4516 = vlaneseq
    %v4517 = vshrl.u32 %v4516, 7
    %v4518 = vsub.s32 %v4515, %v4517
    %v4519 = vrot.slane %v4505, %v4518
    %v4520 = vlaneseq
    %v4521 = vshrl.u32 %v4520, 7
    %v4522 = vsub.s32 0, %v4521
    %v4523 = vrot.slane %v4512, %v4522
    %v4524 = vlaneseq
    %v4525 = vshrl.u32 %v4524, 7
    %v4526 = vsub.s32 1, %v4525
    %v4527 = vrot.slane %v4512, %v4526
    %v4528 = vlaneseq
    %v4529 = vshrl.u32 %v4528, 7
    %v4530 = vsub.s32 0, %v4529
    %v4531 = vrot.slane %v4519, %v4530
    %v4532 = vlaneseq
    %v4533 = vshrl.u32 %v4532, 7
    %v4534 = vsub.s32 1, %v4533
    %v4535 = vrot.slane %v4519, %v4534
    %v4540 = vmul.f32 %v4297, %v4523
    %v4541 = vmul.f32 %v4298, %v4527
    %v4542 = vmul.f32 %v4299, %v4523
    %v4543 = vmul.f32 %v4300, %v4527
    %v4544 = vmul.f32 %v4301, %v4531
    %v4545 = vmul.f32 %v4302, %v4535
    %v4546 = vmul.f32 %v4303, %v4531
    %v4547 = vmul.f32 %v4304, %v4535
    %v4548 = vld [vmem:[%s14] sm:$0x3]
    %v4550 = vlaneseq
    %v4551 = vshrl.u32 %v4550, 7
    %v4552 = vsub.s32 0, %v4551
    %v4553 = vrot.slane %v4548, %v4552
    %v4554 = vlaneseq
    %v4555 = vshrl.u32 %v4554, 7
    %v4556 = vsub.s32 1, %v4555
    %v4557 = vrot.slane %v4548, %v4556
    %v4560 = vmul.f32 %v4540, %v4553
    %v4561 = vmul.f32 %v4541, %v4557
    %v4562 = vmul.f32 %v4542, %v4553
    %v4563 = vmul.f32 %v4543, %v4557
    %v4564 = vmul.f32 %v4544, %v4553
    %v4565 = vmul.f32 %v4545, %v4557
    %v4566 = vmul.f32 %v4546, %v4553
    %v4567 = vmul.f32 %v4547, %v4557
    %v4568 = vld [vmem:[%s15] sm:$0x3]
    %v4570 = vlaneseq
    %v4571 = vshrl.u32 %v4570, 7
    %v4572 = vsub.s32 0, %v4571
    %v4573 = vrot.slane %v4568, %v4572
    %v4574 = vlaneseq
    %v4575 = vshrl.u32 %v4574, 7
    %v4576 = vsub.s32 1, %v4575
    %v4577 = vrot.slane %v4568, %v4576
    %v4580 = vadd.f32 %v4560, %v4573
    %v4581 = vadd.f32 %v4561, %v4577
    %v4582 = vadd.f32 %v4562, %v4573
    %v4583 = vadd.f32 %v4563, %v4577
    %v4584 = vadd.f32 %v4564, %v4573
    %v4585 = vadd.f32 %v4565, %v4577
    %v4586 = vadd.f32 %v4566, %v4573
    %v4587 = vadd.f32 %v4567, %v4577
    %v4588 = vmax.f32 %v4580, 0.0
    %v4589 = vmax.f32 %v4581, 0.0
    %v4590 = vmax.f32 %v4582, 0.0
    %v4591 = vmax.f32 %v4583, 0.0
    %v4592 = vmax.f32 %v4584, 0.0
    %v4593 = vmax.f32 %v4585, 0.0
    %v4594 = vmax.f32 %v4586, 0.0
    %v4595 = vmax.f32 %v4587, 0.0
    %v4596 = vpack.c.bf16 %v4590, %v4588
    %v4597 = vpack.c.bf16 %v4591, %v4589
    %v4598 = vpack.c.bf16 %v4594, %v4592
    %v4599 = vpack.c.bf16 %v4595, %v4593
    %v4600 = vld [vmem:[#allocation16] sm:$0xf]
    %v4601 = vld [vmem:[#allocation16 + $0x4] sm:$0xf]
    %v4602 = vld [vmem:[#allocation16 + $0x8] sm:$0xf]
    %v4603 = vld [vmem:[#allocation16 + $0xc] sm:$0xf]
    %v4604 = vld [vmem:[#allocation16 + $0x10] sm:$0xf]
    %v4605 = vld [vmem:[#allocation16 + $0x14] sm:$0xf]
    %v4606 = vld [vmem:[#allocation16 + $0x18] sm:$0xf]
    %v4607 = vld [vmem:[#allocation16 + $0x1c] sm:$0xf]
    %v4608 = vld [vmem:[#allocation16 + $0x20] sm:$0xf]
    %v4609 = vld [vmem:[#allocation16 + $0x24] sm:$0xf]
    %v4610 = vld [vmem:[#allocation16 + $0x28] sm:$0xf]
    %v4611 = vld [vmem:[#allocation16 + $0x2c] sm:$0xf]
    %v4612 = vld [vmem:[#allocation16 + $0x30] sm:$0xf]
    %v4613 = vld [vmem:[#allocation16 + $0x34] sm:$0xf]
    %v4614 = vld [vmem:[#allocation16 + $0x38] sm:$0xf]
    %v4615 = vld [vmem:[#allocation16 + $0x3c] sm:$0xf]
    %v4616 = vld [vmem:[#allocation16 + $0x40] sm:$0xf]
    %v4617 = vld [vmem:[#allocation16 + $0x44] sm:$0xf]
    %v4618 = vld [vmem:[#allocation16 + $0x48] sm:$0xf]
    %v4619 = vld [vmem:[#allocation16 + $0x4c] sm:$0xf]
    %v4620 = vld [vmem:[#allocation16 + $0x50] sm:$0xf]
    %v4621 = vld [vmem:[#allocation16 + $0x54] sm:$0xf]
    %v4622 = vld [vmem:[#allocation16 + $0x58] sm:$0xf]
    %v4623 = vld [vmem:[#allocation16 + $0x5c] sm:$0xf]
    %v4624 = vld [vmem:[#allocation16 + $0x60] sm:$0xf]
    %v4625 = vld [vmem:[#allocation16 + $0x64] sm:$0xf]
    %v4626 = vld [vmem:[#allocation16 + $0x68] sm:$0xf]
    %v4627 = vld [vmem:[#allocation16 + $0x6c] sm:$0xf]
    %v4628 = vld [vmem:[#allocation16 + $0x70] sm:$0xf]
    %v4629 = vld [vmem:[#allocation16 + $0x74] sm:$0xf]
    %v4630 = vld [vmem:[#allocation16 + $0x78] sm:$0xf]
    %v4631 = vld [vmem:[#allocation16 + $0x7c] sm:$0xf]
    %v4632 = vld [vmem:[%s17] sm:$0x1]
    %v4634 = vlaneseq
    %v4635 = vshrl.u32 %v4634, 7
    %v4636 = vsub.s32 0, %v4635
    %v4637 = vrot.slane %v4632, %v4636
    %v4671 = vunpack.c.l.b16 %v4600
    %v4672 = vunpack.c.l.b16 %v4601
    %v4673 = vunpack.c.l.b16 %v4602
    %v4674 = vunpack.c.l.b16 %v4603
    %v4675 = vunpack.c.l.b16 %v4604
    %v4676 = vunpack.c.l.b16 %v4605
    %v4677 = vunpack.c.l.b16 %v4606
    %v4678 = vunpack.c.l.b16 %v4607
    %v4679 = vunpack.c.l.b16 %v4608
    %v4680 = vunpack.c.l.b16 %v4609
    %v4681 = vunpack.c.l.b16 %v4610
    %v4682 = vunpack.c.l.b16 %v4611
    %v4683 = vunpack.c.l.b16 %v4612
    %v4684 = vunpack.c.l.b16 %v4613
    %v4685 = vunpack.c.l.b16 %v4614
    %v4686 = vunpack.c.l.b16 %v4615
    %v4687 = vunpack.c.l.b16 %v4616
    %v4688 = vunpack.c.l.b16 %v4617
    %v4689 = vunpack.c.l.b16 %v4618
    %v4690 = vunpack.c.l.b16 %v4619
    %v4691 = vunpack.c.l.b16 %v4620
    %v4692 = vunpack.c.l.b16 %v4621
    %v4693 = vunpack.c.l.b16 %v4622
    %v4694 = vunpack.c.l.b16 %v4623
    %v4695 = vunpack.c.l.b16 %v4624
    %v4696 = vunpack.c.l.b16 %v4625
    %v4697 = vunpack.c.l.b16 %v4626
    %v4698 = vunpack.c.l.b16 %v4627
    %v4699 = vunpack.c.l.b16 %v4628
    %v4700 = vunpack.c.l.b16 %v4629
    %v4701 = vunpack.c.l.b16 %v4630
    %v4702 = vunpack.c.l.b16 %v4631
    %v4703 = vpack.c.b16 %v4672, %v4671
    %v4704 = vpack.c.b16 %v4674, %v4673
    %v4705 = vpack.c.b16 %v4676, %v4675
    %v4706 = vpack.c.b16 %v4678, %v4677
    %v4707 = vpack.c.b16 %v4680, %v4679
    %v4708 = vpack.c.b16 %v4682, %v4681
    %v4709 = vpack.c.b16 %v4684, %v4683
    %v4710 = vpack.c.b16 %v4686, %v4685
    %v4711 = vpack.c.b16 %v4688, %v4687
    %v4712 = vpack.c.b16 %v4690, %v4689
    %v4713 = vpack.c.b16 %v4692, %v4691
    %v4714 = vpack.c.b16 %v4694, %v4693
    %v4715 = vpack.c.b16 %v4696, %v4695
    %v4716 = vpack.c.b16 %v4698, %v4697
    %v4717 = vpack.c.b16 %v4700, %v4699
    %v4718 = vpack.c.b16 %v4702, %v4701
    %4735 = vmatprep.subr.bf16.mxu0 0
    %4736 = vmatpush1.bf16.msra.mxu0 %v4710
    %4737 = vmatprep.subr.bf16.mxu0 0
    %4738 = vmatpush1.bf16.msra.mxu0 %v4709
    %4739 = vmatprep.subr.bf16.mxu0 0
    %4740 = vmatpush1.bf16.msra.mxu0 %v4708
    %4741 = vmatprep.subr.bf16.mxu0 0
    %4742 = vmatpush1.bf16.msra.mxu0 %v4707
    %4743 = vmatprep.subr.bf16.mxu0 0
    %4744 = vmatpush1.bf16.msra.mxu0 %v4706
    %4745 = vmatprep.subr.bf16.mxu0 0
    %4746 = vmatpush1.bf16.msra.mxu0 %v4705
    %4747 = vmatprep.subr.bf16.mxu0 0
    %4748 = vmatpush1.bf16.msra.mxu0 %v4704
    %4749 = vmatprep.subr.bf16.mxu0 0
    %4750 = vmatpush1.bf16.msra.mxu0 %v4703
    %4751 = vmatprep.subr.bf16.mxu0 0
    %4752 = vmatpush2.bf16.msra.mxu0 %v4718
    %4753 = vmatprep.subr.bf16.mxu0 0
    %4754 = vmatpush2.bf16.msra.mxu0 %v4717
    %4755 = vmatprep.subr.bf16.mxu0 0
    %4756 = vmatpush2.bf16.msra.mxu0 %v4716
    %4757 = vmatprep.subr.bf16.mxu0 0
    %4758 = vmatpush2.bf16.msra.mxu0 %v4715
    %4759 = vmatprep.subr.bf16.mxu0 0
    %4760 = vmatpush2.bf16.msra.mxu0 %v4714
    %4761 = vmatprep.subr.bf16.mxu0 0
    %4762 = vmatpush2.bf16.msra.mxu0 %v4713
    %4763 = vmatprep.subr.bf16.mxu0 0
    %4764 = vmatpush2.bf16.msra.mxu0 %v4712
    %4765 = vmatprep.subr.bf16.mxu0 0
    %4766 = vmatpush2.bf16.msra.mxu0 %v4711
    %4767 = vmatprep.mubr.bf16.mxu0 %v4597
    %4768 = vmatmul.mubr.bf16.gmra.mxu0 %v4596
    %v4769 = vpop.f32.mrf.mxu0
    %v4770 = vadd.f32 %v4637, %v4769
    %v4771 = vpop.f32.mrf.mxu0
    %v4772 = vpop.f32.mrf.mxu0
    %v4773 = vadd.f32 %v4637, %v4772
    %v4774 = vpop.f32.mrf.mxu0
    %4775 = vmatprep.mubr.bf16.mxu0 %v4599
    %4776 = vmatmul.mubr.bf16.gmra.mxu0 %v4598
    %v4777 = vpop.f32.mrf.mxu0
    %v4778 = vadd.f32 %v4637, %v4777
    %v4779 = vpop.f32.mrf.mxu0
    %v4780 = vpop.f32.mrf.mxu0
    %v4781 = vadd.f32 %v4637, %v4780
    %v4782 = vpop.f32.mrf.mxu0
    %4783 = vdwg.mxu0
    %v4784 = vsub.f32 0.0, %v4770
    %v4785 = vsub.f32 0.0, %v4773
    %v4786 = vsub.f32 0.0, %v4778
    %v4787 = vsub.f32 0.0, %v4781
    %v4788 = vmul.f32 %v4784, 1.442695
    %v4789 = vpow.pop %v4788
    %v4790 = vmul.f32 %v4785, 1.442695
    %v4791 = vpow.pop %v4790
    %v4792 = vmul.f32 %v4786, 1.442695
    %v4793 = vpow.pop %v4792
    %v4794 = vmul.f32 %v4787, 1.442695
    %v4795 = vpow.pop %v4794
    %v4796 = vadd.f32 %v4789, 1.0
    %v4797 = vadd.f32 %v4791, 1.0
    %v4798 = vadd.f32 %v4793, 1.0
    %v4799 = vadd.f32 %v4795, 1.0
    %v4800 = vrcp.pop %v4796
    %v4801 = vrcp.pop %v4797
    %v4802 = vrcp.pop %v4798
    %v4803 = vrcp.pop %v4799
    %vm4804 = vcmask 392192
    %4805 = vst.msk [vmem:[%s18] sm:$0xff] %vm4804, %v4800
    %4806 = vst.msk [vmem:[%s18 + $0x8] sm:$0xff] %vm4804, %v4801
    %4807 = vst.msk [vmem:[%s18 + $0x10] sm:$0xff] %vm4804, %v4802
    %4808 = vst.msk [vmem:[%s18 + $0x18] sm:$0xff] %vm4804, %v4803
    // Predicated region
    $region114: #{_lambda_.1} parent=1 // pred_check
      _
    $region115: #{_lambda_.1} parent=1 // pred_check_branch
      %4810 = sbr.rel (0) target = $region117
    $region116: #{_lambda_.1} parent=1 // pred_region
      _
    $region117: #{_lambda_.1} parent=1 // pred_fallthru
      _
    // Predicated region
    $region118: #{_lambda_.1} parent=1 // pred_check
      _
    $region119: #{_lambda_.1} parent=1 // pred_check_branch
      %4812 = sbr.rel (0) target = $region121
    $region120: #{_lambda_.1} parent=1 // pred_region
      _
    $region121: #{_lambda_.1} parent=1 // pred_fallthru
      _
    %4813 = vsyncpa [#allocation3], 1
    %4814 = vsyncpa [#allocation5], 1
    %4815 = vsyncpa [#allocation8], 1
    %4816 = vsyncpa [#allocation11], 1
    %4817 = vsyncpa [#allocation14], 1
    %4818 = vsyncpa [#allocation17], 1

</llo_original>
